<compile_context>
chip_gen: v5e
topology: v5e:2x2
jax: 0.10.0
libtpu: 0.0.40
codegen_flags: <defaults>
</compile_context>

<pallas_src>
import functools

import jax
import jax.numpy as jnp
from jax import lax
from jax.experimental import pallas as pl
from jax.experimental.pallas import tpu as pltpu

B = 2          # graphs per call
N = 128        # nodes per graph
E = 512        # random edges per graph
F_IN = 512     # GATConv in_channels
HEADS = 2      # GATConv heads
F_HID = 128    # GATConv out_channels per head (concat -> 256)
D_A, D_1, D_2, D_OUT = 128, 64, 32, 3
D_PAD = 128    # dense3 output zero-padded to a lane-dense width


def _leaky(x, slope):
    return jnp.where(x > 0, x, slope * x)


def gat_net_kernel(x_ref, adj_ref, w_gat_ref, a_src_ref, a_dst_ref, b_gat_ref,
                   wa_top_ref, wa_bot_ref, ba_ref, w1_ref, b1_ref,
                   w2_ref, b2_ref, w3_ref, b3_ref, out_ref, *, graphs):
    # x arrives f32; cast to bf16 in-kernel (cheap VPU pack, halves glue traffic).
    x_bf = x_ref[...].astype(jnp.bfloat16)                            # (G*N, 512)

    # ---- GATConv(512, 128, heads=2) linear at M = graphs*N ----------------
    h = jnp.dot(x_bf, w_gat_ref[...],
                preferred_element_type=jnp.float32)                   # (G*N, 256) f32
    h_bf = h.astype(jnp.bfloat16)

    # Fused attention projections (block-diagonal att matrices, bf16 MXU).
    # Transposed-RHS contraction = flash-attention q@k.T form (MXU path).
    alpha_src = lax.dot_general(a_src_ref[...], h_bf, (((1,), (1,)), ((), ())),
                                preferred_element_type=jnp.float32)   # (HEADS, G*N)
    alpha_dst = jnp.dot(h_bf, a_dst_ref[...],
                        preferred_element_type=jnp.float32)           # (G*N, HEADS)

    neg_inf = jnp.float32(-1e30)
    y0_parts, y1_parts = [], []
    for g in range(graphs):
        r0 = g * N
        h_g = h_bf[r0:r0 + N, :]
        hh0, hh1 = h_g[:, :F_HID], h_g[:, F_HID:]
        # int8 adjacency -> f32 -> mask (native mask layout for the select).
        mask = adj_ref[g].astype(jnp.float32) > 0.0                   # (N, N)

        ad = alpha_dst[r0:r0 + N, :]                                  # (N, HEADS)
        asr = alpha_src[:, r0:r0 + N]                                 # (HEADS, N)
        e0 = jnp.where(mask, _leaky(ad[:, 0:1] + asr[0:1, :], 0.2), neg_inf)
        e1 = jnp.where(mask, _leaky(ad[:, 1:2] + asr[1:2, :], 0.2), neg_inf)
        # Both heads stacked along sublanes: one max/exp/sum/reciprocal stream.
        e = jnp.concatenate([e0, e1], axis=0)                         # (2N, N)
        e = e - jnp.max(e, axis=-1, keepdims=True)
        # Self-loops guarantee the row max is a real entry: masked entries exp
        # to exactly 0 and denom >= 1 (no post-exp mask, no divide-by-zero).
        p = jnp.exp(e)
        denom = jnp.sum(p, axis=-1, keepdims=True)
        attn = (p * pl.reciprocal(denom, approx=True)).astype(jnp.bfloat16)

        o0 = jnp.dot(attn[:N, :], hh0, preferred_element_type=jnp.float32)
        o1 = jnp.dot(attn[N:, :], hh1, preferred_element_type=jnp.float32)
        # GATConv bias slice + module LeakyReLU folded per head (concat-free).
        y0_parts.append(_leaky(o0 + b_gat_ref[:, :F_HID], 0.01))
        y1_parts.append(_leaky(o1 + b_gat_ref[:, F_HID:], 0.01))

    y0 = y0_parts[0] if graphs == 1 else jnp.concatenate(y0_parts, axis=0)
    y1 = y1_parts[0] if graphs == 1 else jnp.concatenate(y1_parts, axis=0)

    # ---- densea(256, 128) via split weights (no feature concatenate) ------
    y = (jnp.dot(y0.astype(jnp.bfloat16), wa_top_ref[...],
                 preferred_element_type=jnp.float32)
         + jnp.dot(y1.astype(jnp.bfloat16), wa_bot_ref[...],
                   preferred_element_type=jnp.float32)
         + ba_ref[...])
    y = _leaky(y, 0.01)
    y = jnp.dot(y.astype(jnp.bfloat16), w1_ref[...],
                preferred_element_type=jnp.float32) + b1_ref[...]     # (G*N, 64)
    y = _leaky(y, 0.01)
    y = jnp.dot(y.astype(jnp.bfloat16), w2_ref[...],
                preferred_element_type=jnp.float32) + b2_ref[...]     # (G*N, 32)
    y = _leaky(y, 0.01)

    # ---- dense3(32, 3) zero-padded to 128 lanes, bf16 MXU ------------------
    z = jnp.dot(y.astype(jnp.bfloat16), w3_ref[...],
                preferred_element_type=jnp.float32) + b3_ref[...]     # (G*N, 128)

    # ---- cdist(z, z, p=2) per graph from one bf16 gram matmul --------------
    # sq terms are read off gram's diagonal, so d2[i,i] cancels to exactly 0
    # regardless of matmul precision; padded columns are exact zeros.
    zb = z.astype(jnp.bfloat16)
    rows = lax.broadcasted_iota(jnp.int32, (N, N), 0)
    cols = lax.broadcasted_iota(jnp.int32, (N, N), 1)
    diag_mask = rows == cols
    for g in range(graphs):
        zb_g = zb[g * N:(g + 1) * N, :]
        gram = lax.dot_general(zb_g, zb_g, (((1,), (1,)), ((), ())),
                               preferred_element_type=jnp.float32)    # (N, N)
        diag = jnp.where(diag_mask, gram, 0.0)
        sq_col = jnp.sum(diag, axis=1, keepdims=True)                 # (N, 1)
        sq_row = jnp.sum(diag, axis=0, keepdims=True)                 # (1, N)
        d2 = jnp.maximum(sq_col + sq_row - 2.0 * gram, 0.0)
        out_ref[g] = jnp.sqrt(d2)


def _default_graphs_per_block(batch):
    # v7x has 2 TensorCores: keep one graph per grid step so the "parallel"
    # batch axis shards across cores. Single-TC chips (v5e/v6e): fold pairs of
    # graphs so the big matmuls run at M = 256 and per-step overhead is paid once.
    try:
        kind = jax.devices()[0].device_kind.lower()
    except Exception:
        kind = ""
    is_v7 = ("v7" in kind) or ("7x" in kind)
    if is_v7 and batch < 4:
        return 1
    return 2 if batch % 2 == 0 else 1


def prepare_params(params):
    """One-time parameter preprocessing, hoisted out of the per-call hot path."""
    a_src_bd = jnp.zeros((HEADS, HEADS * F_HID), jnp.float32)
    a_dst_bd = jnp.zeros((HEADS * F_HID, HEADS), jnp.float32)
    for hd in range(HEADS):
        a_src_bd = a_src_bd.at[hd, hd * F_HID:(hd + 1) * F_HID].set(params["att_src"][hd])
        a_dst_bd = a_dst_bd.at[hd * F_HID:(hd + 1) * F_HID, hd].set(params["att_dst"][hd])
    w3p = jnp.zeros((D_2, D_PAD), jnp.float32).at[:, :D_OUT].set(params["w3"])
    b3p = jnp.zeros((1, D_PAD), jnp.float32).at[:, :D_OUT].set(params["b3"])
    bf = jnp.bfloat16
    return {
        "w_gat": params["w_gat"].astype(bf),
        "a_src": a_src_bd.astype(bf),
        "a_dst": a_dst_bd.astype(bf),
        "b_gat": params["b_gat"],
        "wa_top": params["wa"][:F_HID].astype(bf),
        "wa_bot": params["wa"][F_HID:].astype(bf),
        "ba": params["ba"],
        "w1": params["w1"].astype(bf), "b1": params["b1"],
        "w2": params["w2"].astype(bf), "b2": params["b2"],
        "w3": w3p.astype(bf), "b3": b3p,
    }


def gat_net_forward(x, adj, prepared, graphs_per_block=None):
    """x: (B, N, F_IN) f32; adj: (B, N, N) int8 with self-loops (adj[i,j]=1 iff edge j->i)."""
    Bx, Nn, Fin = x.shape
    G = graphs_per_block if graphs_per_block is not None else _default_graphs_per_block(Bx)
    assert Bx % G == 0
    num_blocks = Bx // G

    x_flat = x.reshape(Bx * Nn, Fin)   # leading-dim merge: free, no copy

    def const_spec(shape):
        # Whole-array block pinned to block 0: weight DMA paid once,
        # VMEM-resident across grid steps.
        return pl.BlockSpec(shape, lambda b: (0,) * len(shape))

    in_specs = [
        pl.BlockSpec((G * Nn, Fin), lambda b: (b, 0)),        # x (f32, cast in-kernel)
        pl.BlockSpec((G, Nn, Nn), lambda b: (b, 0, 0)),       # adj (int8)
        const_spec((F_IN, HEADS * F_HID)),                    # w_gat
        const_spec((HEADS, HEADS * F_HID)),                   # a_src (block-diag)
        const_spec((HEADS * F_HID, HEADS)),                   # a_dst (block-diag)
        const_spec((1, HEADS * F_HID)),                       # b_gat
        const_spec((F_HID, D_A)),                             # wa_top
        const_spec((F_HID, D_A)),                             # wa_bot
        const_spec((1, D_A)),                                 # ba
        const_spec((D_A, D_1)),                               # w1
        const_spec((1, D_1)),                                 # b1
        const_spec((D_1, D_2)),                               # w2
        const_spec((1, D_2)),                                 # b2
        const_spec((D_2, D_PAD)),                             # w3 (padded)
        const_spec((1, D_PAD)),                               # b3 (padded)
    ]

    mm = lambda m, k, n: 2 * m * k * n
    flops = Bx * (mm(Nn, F_IN, HEADS * F_HID) + mm(Nn, HEADS * F_HID, 2 * HEADS)
                  + HEADS * mm(Nn, Nn, F_HID) + HEADS * mm(Nn, F_HID, D_A)
                  + mm(Nn, D_A, D_1) + mm(Nn, D_1, D_2) + mm(Nn, D_2, D_PAD)
                  + mm(Nn, D_PAD, Nn))
    transcendentals = Bx * (HEADS * Nn * Nn + Nn * Nn + HEADS * Nn)   # exp + sqrt + recip
    weight_bytes = sum(int(v.size) * v.dtype.itemsize for v in prepared.values())
    bytes_accessed = (x_flat.size * x_flat.dtype.itemsize
                      + adj.size * adj.dtype.itemsize
                      + weight_bytes + Bx * Nn * Nn * 4)

    return pl.pallas_call(
        functools.partial(gat_net_kernel, graphs=G),
        out_shape=jax.ShapeDtypeStruct((Bx, Nn, Nn), jnp.float32),
        grid=(num_blocks,),
        in_specs=in_specs,
        out_specs=pl.BlockSpec((G, Nn, Nn), lambda b: (b, 0, 0)),
        compiler_params=pltpu.CompilerParams(
            dimension_semantics=("parallel",)),
        cost_estimate=pl.CostEstimate(
            flops=int(flops), transcendentals=int(transcendentals),
            bytes_accessed=int(bytes_accessed)),
    )(x_flat, adj, prepared["w_gat"], prepared["a_src"], prepared["a_dst"],
      prepared["b_gat"], prepared["wa_top"], prepared["wa_bot"], prepared["ba"],
      prepared["w1"], prepared["b1"], prepared["w2"], prepared["b2"],
      prepared["w3"], prepared["b3"])


# ---------------- plain-JAX f32 reference (same dense-GAT math) -------------
def reference_forward(x, adj, p):
    h = x @ p["w_gat"]
    outs = []
    for hd in range(HEADS):
        hh = h[:, hd * F_HID:(hd + 1) * F_HID]
        a_s = hh @ p["att_src"][hd]
        a_d = hh @ p["att_dst"][hd]
        e = a_d[:, None] + a_s[None, :]
        e = jnp.where(e > 0, e, 0.2 * e)
        e = jnp.where(adj > 0, e, -1e30)
        e = e - jnp.max(e, axis=-1, keepdims=True)
        pr = jnp.exp(e) * (adj > 0)
        attn = pr / jnp.sum(pr, axis=-1, keepdims=True)
        outs.append(attn @ hh)
    g = jnp.concatenate(outs, axis=-1) + p["b_gat"]
    y = jnp.where(g > 0, g, 0.01 * g)
    y = y @ p["wa"] + p["ba"]
    y = jnp.where(y > 0, y, 0.01 * y)
    y = y @ p["w1"] + p["b1"]
    y = jnp.where(y > 0, y, 0.01 * y)
    y = y @ p["w2"] + p["b2"]
    y = jnp.where(y > 0, y, 0.01 * y)
    z = y @ p["w3"] + p["b3"]
    sq = jnp.sum(z * z, axis=-1, keepdims=True)
    d2 = jnp.maximum(sq + sq.T - 2.0 * (z @ z.T), 0.0)
    return jnp.sqrt(d2)


def _glorot(key, shape):
    fan_in, fan_out = shape[0], shape[-1]
    lim = (6.0 / (fan_in + fan_out)) ** 0.5
    return jax.random.uniform(key, shape, jnp.float32, -lim, lim)


if __name__ == "__main__":
    key = jax.random.PRNGKey(0)
    ks = jax.random.split(key, 24)

    # Deterministic synthetic parameters (shapes from the module __init__).
    params = {
        "w_gat":   _glorot(ks[0], (F_IN, HEADS * F_HID)),    # GATConv lin (512, 256)
        "att_src": _glorot(ks[1], (HEADS, F_HID)),           # GATConv att_src
        "att_dst": _glorot(ks[2], (HEADS, F_HID)),           # GATConv att_dst
        "b_gat":   _glorot(ks[3], (1, HEADS * F_HID)),       # GATConv bias
        "wa":      _glorot(ks[4], (HEADS * F_HID, D_A)),     # densea (256, 128)
        "ba":      _glorot(ks[5], (1, D_A)),
        "w1":      _glorot(ks[6], (D_A, D_1)),               # dense1 (128, 64)
        "b1":      _glorot(ks[7], (1, D_1)),
        "w2":      _glorot(ks[8], (D_1, D_2)),               # dense2 (64, 32)
        "b2":      _glorot(ks[9], (1, D_2)),
        "w3":      _glorot(ks[10], (D_2, D_OUT)),            # dense3 (32, 3)
        "b3":      _glorot(ks[11], (1, D_OUT)),
    }
    prepared = prepare_params(params)   # hoisted one-time preprocessing

    # Batch of B graphs: node features + random edge_index per graph.
    x = jax.random.normal(ks[12], (B, N, F_IN), jnp.float32)
    adjs = []
    for b in range(B):
        src = jax.random.randint(ks[13 + 2 * b], (E,), 0, N)
        dst = jax.random.randint(ks[14 + 2 * b], (E,), 0, N)
        a = jnp.zeros((N, N), jnp.int8).at[dst, src].set(1)
        adjs.append(jnp.maximum(a, jnp.eye(N, dtype=jnp.int8)))   # self-loops
    adj = jnp.stack(adjs)                                         # int8 (4x less DMA)

    out = gat_net_forward(x, adj, prepared)
    out = jax.block_until_ready(out)

    ref = jnp.stack([reference_forward(x[b], adj[b], params) for b in range(B)])
    assert out.shape == (B, N, N)
    assert bool(jnp.all(jnp.isfinite(out)))
    assert bool(jnp.allclose(out, ref, atol=5e-2, rtol=5e-2))

    print("KERNEL_OK")
</pallas_src>

<mosaic_0001>
module attributes {stable_mosaic.version = 11 : i64} {
  func.func @gat_net_kernel(%arg0: i32, %arg1: memref<256x512xf32, #tpu.memory_space<vmem>>, %arg2: memref<2x128x128xi8, #tpu.memory_space<vmem>>, %arg3: memref<512x256xbf16, #tpu.memory_space<vmem>>, %arg4: memref<2x256xbf16, #tpu.memory_space<vmem>>, %arg5: memref<256x2xbf16, #tpu.memory_space<vmem>>, %arg6: memref<1x256xf32, #tpu.memory_space<vmem>>, %arg7: memref<128x128xbf16, #tpu.memory_space<vmem>>, %arg8: memref<128x128xbf16, #tpu.memory_space<vmem>>, %arg9: memref<1x128xf32, #tpu.memory_space<vmem>>, %arg10: memref<128x64xbf16, #tpu.memory_space<vmem>>, %arg11: memref<1x64xf32, #tpu.memory_space<vmem>>, %arg12: memref<64x32xbf16, #tpu.memory_space<vmem>>, %arg13: memref<1x32xf32, #tpu.memory_space<vmem>>, %arg14: memref<32x128xbf16, #tpu.memory_space<vmem>>, %arg15: memref<1x128xf32, #tpu.memory_space<vmem>>, %arg16: memref<2x128x128xf32, #tpu.memory_space<vmem>>) attributes {dimension_semantics = [#tpu.dimension_semantics<parallel>], iteration_bounds = array<i64: 1>, scalar_prefetch = 0 : i64, scratch_operands = 0 : i64, tpu.core_type = #tpu.core_type<tc>, window_params = [{transform_indices = @transform_0, window_bounds = array<i64: 256, 512>}, {transform_indices = @transform_1, window_bounds = array<i64: 2, 128, 128>}, {pipeline_mode = #tpu.pipeline_mode<synchronous>, transform_indices = @transform_2, window_bounds = array<i64: 512, 256>}, {pipeline_mode = #tpu.pipeline_mode<synchronous>, transform_indices = @transform_3, window_bounds = array<i64: 2, 256>}, {pipeline_mode = #tpu.pipeline_mode<synchronous>, transform_indices = @transform_4, window_bounds = array<i64: 256, 2>}, {pipeline_mode = #tpu.pipeline_mode<synchronous>, transform_indices = @transform_5, window_bounds = array<i64: 1, 256>}, {pipeline_mode = #tpu.pipeline_mode<synchronous>, transform_indices = @transform_6, window_bounds = array<i64: 128, 128>}, {pipeline_mode = #tpu.pipeline_mode<synchronous>, transform_indices = @transform_7, window_bounds = array<i64: 128, 128>}, {pipeline_mode = #tpu.pipeline_mode<synchronous>, transform_indices = @transform_8, window_bounds = array<i64: 1, 128>}, {pipeline_mode = #tpu.pipeline_mode<synchronous>, transform_indices = @transform_9, window_bounds = array<i64: 128, 64>}, {pipeline_mode = #tpu.pipeline_mode<synchronous>, transform_indices = @transform_10, window_bounds = array<i64: 1, 64>}, {pipeline_mode = #tpu.pipeline_mode<synchronous>, transform_indices = @transform_11, window_bounds = array<i64: 64, 32>}, {pipeline_mode = #tpu.pipeline_mode<synchronous>, transform_indices = @transform_12, window_bounds = array<i64: 1, 32>}, {pipeline_mode = #tpu.pipeline_mode<synchronous>, transform_indices = @transform_13, window_bounds = array<i64: 32, 128>}, {pipeline_mode = #tpu.pipeline_mode<synchronous>, transform_indices = @transform_14, window_bounds = array<i64: 1, 128>}, {transform_indices = @transform_15, window_bounds = array<i64: 2, 128, 128>}]} {
    %c0 = arith.constant 0 : index
    %c0_0 = arith.constant 0 : index
    %0 = vector.load %arg1[%c0, %c0_0] : memref<256x512xf32, #tpu.memory_space<vmem>>, vector<256x512xf32>
    %1 = arith.truncf %0 : vector<256x512xf32> to vector<256x512xbf16>
    %c0_1 = arith.constant 0 : index
    %c0_2 = arith.constant 0 : index
    %2 = vector.load %arg3[%c0_1, %c0_2] : memref<512x256xbf16, #tpu.memory_space<vmem>>, vector<512x256xbf16>
    %cst = arith.constant dense<0.000000e+00> : vector<256x256xf32>
    %3 = tpu.matmul %1, %2, %cst {dimension_numbers = #tpu.dot_dimension_numbers<[1], [0], [0], [1], [0, 0, 1, 1], [], []>} : vector<256x512xbf16>, vector<512x256xbf16>, vector<256x256xf32> -> vector<256x256xf32>
    %4 = arith.truncf %3 : vector<256x256xf32> to vector<256x256xbf16>
    %c0_3 = arith.constant 0 : index
    %c0_4 = arith.constant 0 : index
    %5 = vector.load %arg4[%c0_3, %c0_4] : memref<2x256xbf16, #tpu.memory_space<vmem>>, vector<2x256xbf16>
    %cst_5 = arith.constant dense<0.000000e+00> : vector<2x256xf32>
    %6 = tpu.matmul %5, %4, %cst_5 {dimension_numbers = #tpu.dot_dimension_numbers<[1], [1], [0], [0], [0, 0, 1, 0], [], []>} : vector<2x256xbf16>, vector<256x256xbf16>, vector<2x256xf32> -> vector<2x256xf32>
    %c0_6 = arith.constant 0 : index
    %c0_7 = arith.constant 0 : index
    %7 = vector.load %arg5[%c0_6, %c0_7] : memref<256x2xbf16, #tpu.memory_space<vmem>>, vector<256x2xbf16>
    %cst_8 = arith.constant dense<0.000000e+00> : vector<256x2xf32>
    %8 = tpu.matmul %4, %7, %cst_8 {dimension_numbers = #tpu.dot_dimension_numbers<[1], [0], [0], [1], [0, 0, 1, 1], [], []>} : vector<256x256xbf16>, vector<256x2xbf16>, vector<256x2xf32> -> vector<256x2xf32>
    %9 = vector.extract_strided_slice %4 {offsets = [0, 0], sizes = [128, 256], strides = [1, 1]} : vector<256x256xbf16> to vector<128x256xbf16>
    %10 = vector.extract_strided_slice %9 {offsets = [0, 0], sizes = [128, 128], strides = [1, 1]} : vector<128x256xbf16> to vector<128x128xbf16>
    %11 = vector.extract_strided_slice %9 {offsets = [0, 128], sizes = [128, 128], strides = [1, 1]} : vector<128x256xbf16> to vector<128x128xbf16>
    %c0_9 = arith.constant 0 : index
    %c0_10 = arith.constant 0 : index
    %c0_11 = arith.constant 0 : index
    %12 = vector.load %arg2[%c0_9, %c0_10, %c0_11] : memref<2x128x128xi8, #tpu.memory_space<vmem>>, vector<1x128x128xi8>
    %13 = vector.shape_cast %12 : vector<1x128x128xi8> to vector<128x128xi8>
    %14 = arith.sitofp %13 : vector<128x128xi8> to vector<128x128xf32>
    %cst_12 = arith.constant 0.000000e+00 : f32
    %15 = vector.broadcast %cst_12 : f32 to vector<128x128xf32>
    %16 = arith.cmpf ogt, %14, %15 : vector<128x128xf32>
    %17 = vector.extract_strided_slice %8 {offsets = [0, 0], sizes = [128, 2], strides = [1, 1]} : vector<256x2xf32> to vector<128x2xf32>
    %18 = vector.extract_strided_slice %6 {offsets = [0, 0], sizes = [2, 128], strides = [1, 1]} : vector<2x256xf32> to vector<2x128xf32>
    %19 = vector.extract_strided_slice %17 {offsets = [0, 0], sizes = [128, 1], strides = [1, 1]} : vector<128x2xf32> to vector<128x1xf32>
    %20 = vector.extract_strided_slice %18 {offsets = [0, 0], sizes = [1, 128], strides = [1, 1]} : vector<2x128xf32> to vector<1x128xf32>
    %21 = vector.broadcast %19 : vector<128x1xf32> to vector<128x128xf32>
    %22 = vector.broadcast %20 : vector<1x128xf32> to vector<128x128xf32>
    %23 = arith.addf %21, %22 : vector<128x128xf32>
    %cst_13 = arith.constant 0.000000e+00 : f32
    %24 = vector.broadcast %cst_13 : f32 to vector<128x128xf32>
    %25 = arith.cmpf ogt, %23, %24 : vector<128x128xf32>
    %cst_14 = arith.constant 2.000000e-01 : f32
    %26 = vector.broadcast %cst_14 : f32 to vector<128x128xf32>
    %27 = arith.mulf %26, %23 : vector<128x128xf32>
    %28 = arith.select %25, %23, %27 : vector<128x128xi1>, vector<128x128xf32>
    %cst_15 = arith.constant -1.000000e+30 : f32
    %29 = vector.broadcast %cst_15 : f32 to vector<128x128xf32>
    %30 = arith.select %16, %28, %29 : vector<128x128xi1>, vector<128x128xf32>
    %31 = vector.extract_strided_slice %17 {offsets = [0, 1], sizes = [128, 1], strides = [1, 1]} : vector<128x2xf32> to vector<128x1xf32>
    %32 = vector.extract_strided_slice %18 {offsets = [1, 0], sizes = [1, 128], strides = [1, 1]} : vector<2x128xf32> to vector<1x128xf32>
    %33 = vector.broadcast %31 : vector<128x1xf32> to vector<128x128xf32>
    %34 = vector.broadcast %32 : vector<1x128xf32> to vector<128x128xf32>
    %35 = arith.addf %33, %34 : vector<128x128xf32>
    %cst_16 = arith.constant 0.000000e+00 : f32
    %36 = vector.broadcast %cst_16 : f32 to vector<128x128xf32>
    %37 = arith.cmpf ogt, %35, %36 : vector<128x128xf32>
    %cst_17 = arith.constant 2.000000e-01 : f32
    %38 = vector.broadcast %cst_17 : f32 to vector<128x128xf32>
    %39 = arith.mulf %38, %35 : vector<128x128xf32>
    %40 = arith.select %37, %35, %39 : vector<128x128xi1>, vector<128x128xf32>
    %cst_18 = arith.constant -1.000000e+30 : f32
    %41 = vector.broadcast %cst_18 : f32 to vector<128x128xf32>
    %42 = arith.select %16, %40, %41 : vector<128x128xi1>, vector<128x128xf32>
    %43 = tpu.concatenate %30, %42 in 0 : vector<128x128xf32>, vector<128x128xf32> -> vector<256x128xf32>
    %cst_19 = arith.constant dense<0xFF800000> : vector<256xf32>
    %44 = vector.multi_reduction <maximumf>, %43, %cst_19 [1] : vector<256x128xf32> to vector<256xf32>
    %45 = vector.shape_cast %44 : vector<256xf32> to vector<256x1xf32>
    %46 = vector.broadcast %45 : vector<256x1xf32> to vector<256x128xf32>
    %47 = arith.subf %43, %46 : vector<256x128xf32>
    %48 = math.exp %47 : vector<256x128xf32>
    %cst_20 = arith.constant dense<0.000000e+00> : vector<256xf32>
    %49 = vector.multi_reduction <add>, %48, %cst_20 [1] : vector<256x128xf32> to vector<256xf32>
    %50 = vector.shape_cast %49 : vector<256xf32> to vector<256x1xf32>
    %51 = tpu.reciprocal %50 {approx = true} : vector<256x1xf32> -> vector<256x1xf32>
    %52 = vector.broadcast %51 : vector<256x1xf32> to vector<256x128xf32>
    %53 = arith.mulf %48, %52 : vector<256x128xf32>
    %54 = arith.truncf %53 : vector<256x128xf32> to vector<256x128xbf16>
    %55 = vector.extract_strided_slice %54 {offsets = [0, 0], sizes = [128, 128], strides = [1, 1]} : vector<256x128xbf16> to vector<128x128xbf16>
    %cst_21 = arith.constant dense<0.000000e+00> : vector<128x128xf32>
    %56 = tpu.matmul %55, %10, %cst_21 {dimension_numbers = #tpu.dot_dimension_numbers<[1], [0], [0], [1], [0, 0, 1, 1], [], []>} : vector<128x128xbf16>, vector<128x128xbf16>, vector<128x128xf32> -> vector<128x128xf32>
    %57 = vector.extract_strided_slice %54 {offsets = [128, 0], sizes = [128, 128], strides = [1, 1]} : vector<256x128xbf16> to vector<128x128xbf16>
    %cst_22 = arith.constant dense<0.000000e+00> : vector<128x128xf32>
    %58 = tpu.matmul %57, %11, %cst_22 {dimension_numbers = #tpu.dot_dimension_numbers<[1], [0], [0], [1], [0, 0, 1, 1], [], []>} : vector<128x128xbf16>, vector<128x128xbf16>, vector<128x128xf32> -> vector<128x128xf32>
    %c0_23 = arith.constant 0 : index
    %c0_24 = arith.constant 0 : index
    %59 = vector.load %arg6[%c0_23, %c0_24] : memref<1x256xf32, #tpu.memory_space<vmem>>, vector<1x128xf32>
    %60 = vector.broadcast %59 : vector<1x128xf32> to vector<128x128xf32>
    %61 = arith.addf %56, %60 : vector<128x128xf32>
    %cst_25 = arith.constant 0.000000e+00 : f32
    %62 = vector.broadcast %cst_25 : f32 to vector<128x128xf32>
    %63 = arith.cmpf ogt, %61, %62 : vector<128x128xf32>
    %cst_26 = arith.constant 0.00999999977 : f32
    %64 = vector.broadcast %cst_26 : f32 to vector<128x128xf32>
    %65 = arith.mulf %64, %61 : vector<128x128xf32>
    %66 = arith.select %63, %61, %65 : vector<128x128xi1>, vector<128x128xf32>
    %c0_27 = arith.constant 0 : index
    %c128 = arith.constant 128 : index
    %67 = vector.load %arg6[%c0_27, %c128] : memref<1x256xf32, #tpu.memory_space<vmem>>, vector<1x128xf32>
    %68 = vector.broadcast %67 : vector<1x128xf32> to vector<128x128xf32>
    %69 = arith.addf %58, %68 : vector<128x128xf32>
    %cst_28 = arith.constant 0.000000e+00 : f32
    %70 = vector.broadcast %cst_28 : f32 to vector<128x128xf32>
    %71 = arith.cmpf ogt, %69, %70 : vector<128x128xf32>
    %cst_29 = arith.constant 0.00999999977 : f32
    %72 = vector.broadcast %cst_29 : f32 to vector<128x128xf32>
    %73 = arith.mulf %72, %69 : vector<128x128xf32>
    %74 = arith.select %71, %69, %73 : vector<128x128xi1>, vector<128x128xf32>
    %75 = vector.extract_strided_slice %4 {offsets = [128, 0], sizes = [128, 256], strides = [1, 1]} : vector<256x256xbf16> to vector<128x256xbf16>
    %76 = vector.extract_strided_slice %75 {offsets = [0, 0], sizes = [128, 128], strides = [1, 1]} : vector<128x256xbf16> to vector<128x128xbf16>
    %77 = vector.extract_strided_slice %75 {offsets = [0, 128], sizes = [128, 128], strides = [1, 1]} : vector<128x256xbf16> to vector<128x128xbf16>
    %c1 = arith.constant 1 : index
    %c0_30 = arith.constant 0 : index
    %c0_31 = arith.constant 0 : index
    %78 = vector.load %arg2[%c1, %c0_30, %c0_31] : memref<2x128x128xi8, #tpu.memory_space<vmem>>, vector<1x128x128xi8>
    %79 = vector.shape_cast %78 : vector<1x128x128xi8> to vector<128x128xi8>
    %80 = arith.sitofp %79 : vector<128x128xi8> to vector<128x128xf32>
    %cst_32 = arith.constant 0.000000e+00 : f32
    %81 = vector.broadcast %cst_32 : f32 to vector<128x128xf32>
    %82 = arith.cmpf ogt, %80, %81 : vector<128x128xf32>
    %83 = vector.extract_strided_slice %8 {offsets = [128, 0], sizes = [128, 2], strides = [1, 1]} : vector<256x2xf32> to vector<128x2xf32>
    %84 = vector.extract_strided_slice %6 {offsets = [0, 128], sizes = [2, 128], strides = [1, 1]} : vector<2x256xf32> to vector<2x128xf32>
    %85 = vector.extract_strided_slice %83 {offsets = [0, 0], sizes = [128, 1], strides = [1, 1]} : vector<128x2xf32> to vector<128x1xf32>
    %86 = vector.extract_strided_slice %84 {offsets = [0, 0], sizes = [1, 128], strides = [1, 1]} : vector<2x128xf32> to vector<1x128xf32>
    %87 = vector.broadcast %85 : vector<128x1xf32> to vector<128x128xf32>
    %88 = vector.broadcast %86 : vector<1x128xf32> to vector<128x128xf32>
    %89 = arith.addf %87, %88 : vector<128x128xf32>
    %cst_33 = arith.constant 0.000000e+00 : f32
    %90 = vector.broadcast %cst_33 : f32 to vector<128x128xf32>
    %91 = arith.cmpf ogt, %89, %90 : vector<128x128xf32>
    %cst_34 = arith.constant 2.000000e-01 : f32
    %92 = vector.broadcast %cst_34 : f32 to vector<128x128xf32>
    %93 = arith.mulf %92, %89 : vector<128x128xf32>
    %94 = arith.select %91, %89, %93 : vector<128x128xi1>, vector<128x128xf32>
    %cst_35 = arith.constant -1.000000e+30 : f32
    %95 = vector.broadcast %cst_35 : f32 to vector<128x128xf32>
    %96 = arith.select %82, %94, %95 : vector<128x128xi1>, vector<128x128xf32>
    %97 = vector.extract_strided_slice %83 {offsets = [0, 1], sizes = [128, 1], strides = [1, 1]} : vector<128x2xf32> to vector<128x1xf32>
    %98 = vector.extract_strided_slice %84 {offsets = [1, 0], sizes = [1, 128], strides = [1, 1]} : vector<2x128xf32> to vector<1x128xf32>
    %99 = vector.broadcast %97 : vector<128x1xf32> to vector<128x128xf32>
    %100 = vector.broadcast %98 : vector<1x128xf32> to vector<128x128xf32>
    %101 = arith.addf %99, %100 : vector<128x128xf32>
    %cst_36 = arith.constant 0.000000e+00 : f32
    %102 = vector.broadcast %cst_36 : f32 to vector<128x128xf32>
    %103 = arith.cmpf ogt, %101, %102 : vector<128x128xf32>
    %cst_37 = arith.constant 2.000000e-01 : f32
    %104 = vector.broadcast %cst_37 : f32 to vector<128x128xf32>
    %105 = arith.mulf %104, %101 : vector<128x128xf32>
    %106 = arith.select %103, %101, %105 : vector<128x128xi1>, vector<128x128xf32>
    %cst_38 = arith.constant -1.000000e+30 : f32
    %107 = vector.broadcast %cst_38 : f32 to vector<128x128xf32>
    %108 = arith.select %82, %106, %107 : vector<128x128xi1>, vector<128x128xf32>
    %109 = tpu.concatenate %96, %108 in 0 : vector<128x128xf32>, vector<128x128xf32> -> vector<256x128xf32>
    %cst_39 = arith.constant dense<0xFF800000> : vector<256xf32>
    %110 = vector.multi_reduction <maximumf>, %109, %cst_39 [1] : vector<256x128xf32> to vector<256xf32>
    %111 = vector.shape_cast %110 : vector<256xf32> to vector<256x1xf32>
    %112 = vector.broadcast %111 : vector<256x1xf32> to vector<256x128xf32>
    %113 = arith.subf %109, %112 : vector<256x128xf32>
    %114 = math.exp %113 : vector<256x128xf32>
    %cst_40 = arith.constant dense<0.000000e+00> : vector<256xf32>
    %115 = vector.multi_reduction <add>, %114, %cst_40 [1] : vector<256x128xf32> to vector<256xf32>
    %116 = vector.shape_cast %115 : vector<256xf32> to vector<256x1xf32>
    %117 = tpu.reciprocal %116 {approx = true} : vector<256x1xf32> -> vector<256x1xf32>
    %118 = vector.broadcast %117 : vector<256x1xf32> to vector<256x128xf32>
    %119 = arith.mulf %114, %118 : vector<256x128xf32>
    %120 = arith.truncf %119 : vector<256x128xf32> to vector<256x128xbf16>
    %121 = vector.extract_strided_slice %120 {offsets = [0, 0], sizes = [128, 128], strides = [1, 1]} : vector<256x128xbf16> to vector<128x128xbf16>
    %cst_41 = arith.constant dense<0.000000e+00> : vector<128x128xf32>
    %122 = tpu.matmul %121, %76, %cst_41 {dimension_numbers = #tpu.dot_dimension_numbers<[1], [0], [0], [1], [0, 0, 1, 1], [], []>} : vector<128x128xbf16>, vector<128x128xbf16>, vector<128x128xf32> -> vector<128x128xf32>
    %123 = vector.extract_strided_slice %120 {offsets = [128, 0], sizes = [128, 128], strides = [1, 1]} : vector<256x128xbf16> to vector<128x128xbf16>
    %cst_42 = arith.constant dense<0.000000e+00> : vector<128x128xf32>
    %124 = tpu.matmul %123, %77, %cst_42 {dimension_numbers = #tpu.dot_dimension_numbers<[1], [0], [0], [1], [0, 0, 1, 1], [], []>} : vector<128x128xbf16>, vector<128x128xbf16>, vector<128x128xf32> -> vector<128x128xf32>
    %c0_43 = arith.constant 0 : index
    %c0_44 = arith.constant 0 : index
    %125 = vector.load %arg6[%c0_43, %c0_44] : memref<1x256xf32, #tpu.memory_space<vmem>>, vector<1x128xf32>
    %126 = vector.broadcast %125 : vector<1x128xf32> to vector<128x128xf32>
    %127 = arith.addf %122, %126 : vector<128x128xf32>
    %cst_45 = arith.constant 0.000000e+00 : f32
    %128 = vector.broadcast %cst_45 : f32 to vector<128x128xf32>
    %129 = arith.cmpf ogt, %127, %128 : vector<128x128xf32>
    %cst_46 = arith.constant 0.00999999977 : f32
    %130 = vector.broadcast %cst_46 : f32 to vector<128x128xf32>
    %131 = arith.mulf %130, %127 : vector<128x128xf32>
    %132 = arith.select %129, %127, %131 : vector<128x128xi1>, vector<128x128xf32>
    %c0_47 = arith.constant 0 : index
    %c128_48 = arith.constant 128 : index
    %133 = vector.load %arg6[%c0_47, %c128_48] : memref<1x256xf32, #tpu.memory_space<vmem>>, vector<1x128xf32>
    %134 = vector.broadcast %133 : vector<1x128xf32> to vector<128x128xf32>
    %135 = arith.addf %124, %134 : vector<128x128xf32>
    %cst_49 = arith.constant 0.000000e+00 : f32
    %136 = vector.broadcast %cst_49 : f32 to vector<128x128xf32>
    %137 = arith.cmpf ogt, %135, %136 : vector<128x128xf32>
    %cst_50 = arith.constant 0.00999999977 : f32
    %138 = vector.broadcast %cst_50 : f32 to vector<128x128xf32>
    %139 = arith.mulf %138, %135 : vector<128x128xf32>
    %140 = arith.select %137, %135, %139 : vector<128x128xi1>, vector<128x128xf32>
    %141 = tpu.concatenate %66, %132 in 0 : vector<128x128xf32>, vector<128x128xf32> -> vector<256x128xf32>
    %142 = tpu.concatenate %74, %140 in 0 : vector<128x128xf32>, vector<128x128xf32> -> vector<256x128xf32>
    %143 = arith.truncf %141 : vector<256x128xf32> to vector<256x128xbf16>
    %c0_51 = arith.constant 0 : index
    %c0_52 = arith.constant 0 : index
    %144 = vector.load %arg7[%c0_51, %c0_52] : memref<128x128xbf16, #tpu.memory_space<vmem>>, vector<128x128xbf16>
    %cst_53 = arith.constant dense<0.000000e+00> : vector<256x128xf32>
    %145 = tpu.matmul %143, %144, %cst_53 {dimension_numbers = #tpu.dot_dimension_numbers<[1], [0], [0], [1], [0, 0, 1, 1], [], []>} : vector<256x128xbf16>, vector<128x128xbf16>, vector<256x128xf32> -> vector<256x128xf32>
    %146 = arith.truncf %142 : vector<256x128xf32> to vector<256x128xbf16>
    %c0_54 = arith.constant 0 : index
    %c0_55 = arith.constant 0 : index
    %147 = vector.load %arg8[%c0_54, %c0_55] : memref<128x128xbf16, #tpu.memory_space<vmem>>, vector<128x128xbf16>
    %cst_56 = arith.constant dense<0.000000e+00> : vector<256x128xf32>
    %148 = tpu.matmul %146, %147, %cst_56 {dimension_numbers = #tpu.dot_dimension_numbers<[1], [0], [0], [1], [0, 0, 1, 1], [], []>} : vector<256x128xbf16>, vector<128x128xbf16>, vector<256x128xf32> -> vector<256x128xf32>
    %149 = arith.addf %145, %148 : vector<256x128xf32>
    %c0_57 = arith.constant 0 : index
    %c0_58 = arith.constant 0 : index
    %150 = vector.load %arg9[%c0_57, %c0_58] : memref<1x128xf32, #tpu.memory_space<vmem>>, vector<1x128xf32>
    %151 = vector.broadcast %150 : vector<1x128xf32> to vector<256x128xf32>
    %152 = arith.addf %149, %151 : vector<256x128xf32>
    %cst_59 = arith.constant 0.000000e+00 : f32
    %153 = vector.broadcast %cst_59 : f32 to vector<256x128xf32>
    %154 = arith.cmpf ogt, %152, %153 : vector<256x128xf32>
    %cst_60 = arith.constant 0.00999999977 : f32
    %155 = vector.broadcast %cst_60 : f32 to vector<256x128xf32>
    %156 = arith.mulf %155, %152 : vector<256x128xf32>
    %157 = arith.select %154, %152, %156 : vector<256x128xi1>, vector<256x128xf32>
    %158 = arith.truncf %157 : vector<256x128xf32> to vector<256x128xbf16>
    %c0_61 = arith.constant 0 : index
    %c0_62 = arith.constant 0 : index
    %159 = vector.load %arg10[%c0_61, %c0_62] : memref<128x64xbf16, #tpu.memory_space<vmem>>, vector<128x64xbf16>
    %cst_63 = arith.constant dense<0.000000e+00> : vector<256x64xf32>
    %160 = tpu.matmul %158, %159, %cst_63 {dimension_numbers = #tpu.dot_dimension_numbers<[1], [0], [0], [1], [0, 0, 1, 1], [], []>} : vector<256x128xbf16>, vector<128x64xbf16>, vector<256x64xf32> -> vector<256x64xf32>
    %c0_64 = arith.constant 0 : index
    %c0_65 = arith.constant 0 : index
    %161 = vector.load %arg11[%c0_64, %c0_65] : memref<1x64xf32, #tpu.memory_space<vmem>>, vector<1x64xf32>
    %162 = vector.broadcast %161 : vector<1x64xf32> to vector<256x64xf32>
    %163 = arith.addf %160, %162 : vector<256x64xf32>
    %cst_66 = arith.constant 0.000000e+00 : f32
    %164 = vector.broadcast %cst_66 : f32 to vector<256x64xf32>
    %165 = arith.cmpf ogt, %163, %164 : vector<256x64xf32>
    %cst_67 = arith.constant 0.00999999977 : f32
    %166 = vector.broadcast %cst_67 : f32 to vector<256x64xf32>
    %167 = arith.mulf %166, %163 : vector<256x64xf32>
    %168 = arith.select %165, %163, %167 : vector<256x64xi1>, vector<256x64xf32>
    %169 = arith.truncf %168 : vector<256x64xf32> to vector<256x64xbf16>
    %c0_68 = arith.constant 0 : index
    %c0_69 = arith.constant 0 : index
    %170 = vector.load %arg12[%c0_68, %c0_69] : memref<64x32xbf16, #tpu.memory_space<vmem>>, vector<64x32xbf16>
    %cst_70 = arith.constant dense<0.000000e+00> : vector<256x32xf32>
    %171 = tpu.matmul %169, %170, %cst_70 {dimension_numbers = #tpu.dot_dimension_numbers<[1], [0], [0], [1], [0, 0, 1, 1], [], []>} : vector<256x64xbf16>, vector<64x32xbf16>, vector<256x32xf32> -> vector<256x32xf32>
    %c0_71 = arith.constant 0 : index
    %c0_72 = arith.constant 0 : index
    %172 = vector.load %arg13[%c0_71, %c0_72] : memref<1x32xf32, #tpu.memory_space<vmem>>, vector<1x32xf32>
    %173 = vector.broadcast %172 : vector<1x32xf32> to vector<256x32xf32>
    %174 = arith.addf %171, %173 : vector<256x32xf32>
    %cst_73 = arith.constant 0.000000e+00 : f32
    %175 = vector.broadcast %cst_73 : f32 to vector<256x32xf32>
    %176 = arith.cmpf ogt, %174, %175 : vector<256x32xf32>
    %cst_74 = arith.constant 0.00999999977 : f32
    %177 = vector.broadcast %cst_74 : f32 to vector<256x32xf32>
    %178 = arith.mulf %177, %174 : vector<256x32xf32>
    %179 = arith.select %176, %174, %178 : vector<256x32xi1>, vector<256x32xf32>
    %180 = arith.truncf %179 : vector<256x32xf32> to vector<256x32xbf16>
    %c0_75 = arith.constant 0 : index
    %c0_76 = arith.constant 0 : index
    %181 = vector.load %arg14[%c0_75, %c0_76] : memref<32x128xbf16, #tpu.memory_space<vmem>>, vector<32x128xbf16>
    %cst_77 = arith.constant dense<0.000000e+00> : vector<256x128xf32>
    %182 = tpu.matmul %180, %181, %cst_77 {dimension_numbers = #tpu.dot_dimension_numbers<[1], [0], [0], [1], [0, 0, 1, 1], [], []>} : vector<256x32xbf16>, vector<32x128xbf16>, vector<256x128xf32> -> vector<256x128xf32>
    %c0_78 = arith.constant 0 : index
    %c0_79 = arith.constant 0 : index
    %183 = vector.load %arg15[%c0_78, %c0_79] : memref<1x128xf32, #tpu.memory_space<vmem>>, vector<1x128xf32>
    %184 = vector.broadcast %183 : vector<1x128xf32> to vector<256x128xf32>
    %185 = arith.addf %182, %184 : vector<256x128xf32>
    %186 = arith.truncf %185 : vector<256x128xf32> to vector<256x128xbf16>
    %187 = tpu.iota {dimensions = array<i32: 0>} : vector<128x128xi32>
    %188 = tpu.iota {dimensions = array<i32: 1>} : vector<128x128xi32>
    %189 = arith.cmpi eq, %187, %188 : vector<128x128xi32>
    %190 = vector.extract_strided_slice %186 {offsets = [0, 0], sizes = [128, 128], strides = [1, 1]} : vector<256x128xbf16> to vector<128x128xbf16>
    %cst_80 = arith.constant dense<0.000000e+00> : vector<128x128xf32>
    %191 = tpu.matmul %190, %190, %cst_80 {dimension_numbers = #tpu.dot_dimension_numbers<[1], [1], [0], [0], [0, 0, 1, 0], [], []>} : vector<128x128xbf16>, vector<128x128xbf16>, vector<128x128xf32> -> vector<128x128xf32>
    %cst_81 = arith.constant 0.000000e+00 : f32
    %192 = vector.broadcast %cst_81 : f32 to vector<128x128xf32>
    %193 = arith.select %189, %191, %192 : vector<128x128xi1>, vector<128x128xf32>
    %cst_82 = arith.constant dense<0.000000e+00> : vector<128xf32>
    %194 = vector.multi_reduction <add>, %193, %cst_82 [1] : vector<128x128xf32> to vector<128xf32>
    %195 = vector.shape_cast %194 : vector<128xf32> to vector<128x1xf32>
    %cst_83 = arith.constant dense<0.000000e+00> : vector<128xf32>
    %196 = vector.multi_reduction <add>, %193, %cst_83 [0] : vector<128x128xf32> to vector<128xf32>
    %197 = vector.shape_cast %196 : vector<128xf32> to vector<1x128xf32>
    %198 = vector.broadcast %195 : vector<128x1xf32> to vector<128x128xf32>
    %199 = vector.broadcast %197 : vector<1x128xf32> to vector<128x128xf32>
    %200 = arith.addf %198, %199 : vector<128x128xf32>
    %cst_84 = arith.constant 2.000000e+00 : f32
    %201 = vector.broadcast %cst_84 : f32 to vector<128x128xf32>
    %202 = arith.mulf %201, %191 : vector<128x128xf32>
    %203 = arith.subf %200, %202 : vector<128x128xf32>
    %cst_85 = arith.constant 0.000000e+00 : f32
    %204 = vector.broadcast %cst_85 : f32 to vector<128x128xf32>
    %205 = arith.maximumf %203, %204 : vector<128x128xf32>
    %206 = math.sqrt %205 : vector<128x128xf32>
    %c0_86 = arith.constant 0 : index
    %c0_87 = arith.constant 0 : index
    %c0_88 = arith.constant 0 : index
    %207 = vector.load %arg16[%c0_86, %c0_87, %c0_88] : memref<2x128x128xf32, #tpu.memory_space<vmem>>, vector<1x128x128xf32>
    %208 = vector.shape_cast %207 : vector<1x128x128xf32> to vector<128x128xf32>
    %209 = vector.shape_cast %206 : vector<128x128xf32> to vector<1x128x128xf32>
    tpu.vector_store %arg16[%c0_86, %c0_87, %c0_88], %209 {strides = array<i32>} : memref<2x128x128xf32, #tpu.memory_space<vmem>>, vector<1x128x128xf32>,
    %210 = vector.extract_strided_slice %186 {offsets = [128, 0], sizes = [128, 128], strides = [1, 1]} : vector<256x128xbf16> to vector<128x128xbf16>
    %cst_89 = arith.constant dense<0.000000e+00> : vector<128x128xf32>
    %211 = tpu.matmul %210, %210, %cst_89 {dimension_numbers = #tpu.dot_dimension_numbers<[1], [1], [0], [0], [0, 0, 1, 0], [], []>} : vector<128x128xbf16>, vector<128x128xbf16>, vector<128x128xf32> -> vector<128x128xf32>
    %cst_90 = arith.constant 0.000000e+00 : f32
    %212 = vector.broadcast %cst_90 : f32 to vector<128x128xf32>
    %213 = arith.select %189, %211, %212 : vector<128x128xi1>, vector<128x128xf32>
    %cst_91 = arith.constant dense<0.000000e+00> : vector<128xf32>
    %214 = vector.multi_reduction <add>, %213, %cst_91 [1] : vector<128x128xf32> to vector<128xf32>
    %215 = vector.shape_cast %214 : vector<128xf32> to vector<128x1xf32>
    %cst_92 = arith.constant dense<0.000000e+00> : vector<128xf32>
    %216 = vector.multi_reduction <add>, %213, %cst_92 [0] : vector<128x128xf32> to vector<128xf32>
    %217 = vector.shape_cast %216 : vector<128xf32> to vector<1x128xf32>
    %218 = vector.broadcast %215 : vector<128x1xf32> to vector<128x128xf32>
    %219 = vector.broadcast %217 : vector<1x128xf32> to vector<128x128xf32>
    %220 = arith.addf %218, %219 : vector<128x128xf32>
    %cst_93 = arith.constant 2.000000e+00 : f32
    %221 = vector.broadcast %cst_93 : f32 to vector<128x128xf32>
    %222 = arith.mulf %221, %211 : vector<128x128xf32>
    %223 = arith.subf %220, %222 : vector<128x128xf32>
    %cst_94 = arith.constant 0.000000e+00 : f32
    %224 = vector.broadcast %cst_94 : f32 to vector<128x128xf32>
    %225 = arith.maximumf %223, %224 : vector<128x128xf32>
    %226 = math.sqrt %225 : vector<128x128xf32>
    %c1_95 = arith.constant 1 : index
    %c0_96 = arith.constant 0 : index
    %c0_97 = arith.constant 0 : index
    %227 = vector.load %arg16[%c1_95, %c0_96, %c0_97] : memref<2x128x128xf32, #tpu.memory_space<vmem>>, vector<1x128x128xf32>
    %228 = vector.shape_cast %227 : vector<1x128x128xf32> to vector<128x128xf32>
    %229 = vector.shape_cast %226 : vector<128x128xf32> to vector<1x128x128xf32>
    tpu.vector_store %arg16[%c1_95, %c0_96, %c0_97], %229 {strides = array<i32>} : memref<2x128x128xf32, #tpu.memory_space<vmem>>, vector<1x128x128xf32>,
    return
  }
  func.func @transform_0(%arg0: i32) -> (i32, i32) {
    %c0_i32 = arith.constant 0 : i32
    %c0_i32_0 = arith.constant 0 : i32
    return %arg0, %c0_i32 : i32, i32
  }
  func.func @transform_1(%arg0: i32) -> (i32, i32, i32) {
    %c0_i32 = arith.constant 0 : i32
    %c0_i32_0 = arith.constant 0 : i32
    %c0_i32_1 = arith.constant 0 : i32
    return %arg0, %c0_i32, %c0_i32_0 : i32, i32, i32
  }
  func.func @transform_2(%arg0: i32) -> (i32, i32) {
    %c0_i32 = arith.constant 0 : i32
    %c0_i32_0 = arith.constant 0 : i32
    %c0_i32_1 = arith.constant 0 : i32
    return %c0_i32, %c0_i32_0 : i32, i32
  }
  func.func @transform_3(%arg0: i32) -> (i32, i32) {
    %c0_i32 = arith.constant 0 : i32
    %c0_i32_0 = arith.constant 0 : i32
    %c0_i32_1 = arith.constant 0 : i32
    return %c0_i32, %c0_i32_0 : i32, i32
  }
  func.func @transform_4(%arg0: i32) -> (i32, i32) {
    %c0_i32 = arith.constant 0 : i32
    %c0_i32_0 = arith.constant 0 : i32
    %c0_i32_1 = arith.constant 0 : i32
    return %c0_i32, %c0_i32_0 : i32, i32
  }
  func.func @transform_5(%arg0: i32) -> (i32, i32) {
    %c0_i32 = arith.constant 0 : i32
    %c0_i32_0 = arith.constant 0 : i32
    %c0_i32_1 = arith.constant 0 : i32
    return %c0_i32, %c0_i32_0 : i32, i32
  }
  func.func @transform_6(%arg0: i32) -> (i32, i32) {
    %c0_i32 = arith.constant 0 : i32
    %c0_i32_0 = arith.constant 0 : i32
    %c0_i32_1 = arith.constant 0 : i32
    return %c0_i32, %c0_i32_0 : i32, i32
  }
  func.func @transform_7(%arg0: i32) -> (i32, i32) {
    %c0_i32 = arith.constant 0 : i32
    %c0_i32_0 = arith.constant 0 : i32
    %c0_i32_1 = arith.constant 0 : i32
    return %c0_i32, %c0_i32_0 : i32, i32
  }
  func.func @transform_8(%arg0: i32) -> (i32, i32) {
    %c0_i32 = arith.constant 0 : i32
    %c0_i32_0 = arith.constant 0 : i32
    %c0_i32_1 = arith.constant 0 : i32
    return %c0_i32, %c0_i32_0 : i32, i32
  }
  func.func @transform_9(%arg0: i32) -> (i32, i32) {
    %c0_i32 = arith.constant 0 : i32
    %c0_i32_0 = arith.constant 0 : i32
    %c0_i32_1 = arith.constant 0 : i32
    return %c0_i32, %c0_i32_0 : i32, i32
  }
  func.func @transform_10(%arg0: i32) -> (i32, i32) {
    %c0_i32 = arith.constant 0 : i32
    %c0_i32_0 = arith.constant 0 : i32
    %c0_i32_1 = arith.constant 0 : i32
    return %c0_i32, %c0_i32_0 : i32, i32
  }
  func.func @transform_11(%arg0: i32) -> (i32, i32) {
    %c0_i32 = arith.constant 0 : i32
    %c0_i32_0 = arith.constant 0 : i32
    %c0_i32_1 = arith.constant 0 : i32
    return %c0_i32, %c0_i32_0 : i32, i32
  }
  func.func @transform_12(%arg0: i32) -> (i32, i32) {
    %c0_i32 = arith.constant 0 : i32
    %c0_i32_0 = arith.constant 0 : i32
    %c0_i32_1 = arith.constant 0 : i32
    return %c0_i32, %c0_i32_0 : i32, i32
  }
  func.func @transform_13(%arg0: i32) -> (i32, i32) {
    %c0_i32 = arith.constant 0 : i32
    %c0_i32_0 = arith.constant 0 : i32
    %c0_i32_1 = arith.constant 0 : i32
    return %c0_i32, %c0_i32_0 : i32, i32
  }
  func.func @transform_14(%arg0: i32) -> (i32, i32) {
    %c0_i32 = arith.constant 0 : i32
    %c0_i32_0 = arith.constant 0 : i32
    %c0_i32_1 = arith.constant 0 : i32
    return %c0_i32, %c0_i32_0 : i32, i32
  }
  func.func @transform_15(%arg0: i32) -> (i32, i32, i32) {
    %c0_i32 = arith.constant 0 : i32
    %c0_i32_0 = arith.constant 0 : i32
    %c0_i32_1 = arith.constant 0 : i32
    return %arg0, %c0_i32, %c0_i32_0 : i32, i32, i32
  }
}

</mosaic_0001>

<llo_original>
// kernel: tpu_custom_call.1
$region0: #{tpu_custom_call.1}
  #allocation0 [shape = 'u32[]', space=smem, size = 0x4, offset = 0x4, fixed_abs, tag = 'smem constant byte address 0x4 - core index']
  #allocation1 [shape = 'u32[72,128]{1,0:T(1,128)}', space=vmem, size = 0x9000, scoped, tag = 'internal scratch']
  %s0 = inlined_call_operand.hbm [shape: f32[256,512], index: 0, kind: input, shape index: {}]
  %s1 = inlined_call_operand.vmem [shape: s8[2,128,128], index: 1, kind: input, shape index: {}]
  %s2 = inlined_call_operand.hbm [shape: bf16[512,256], index: 2, kind: input, shape index: {}]
  %s3 = inlined_call_operand.vmem [shape: bf16[2,256], index: 3, kind: input, shape index: {}]
  %s4 = inlined_call_operand.vmem [shape: bf16[256,2], index: 4, kind: input, shape index: {}]
  %s5 = inlined_call_operand.vmem [shape: f32[1,256], index: 5, kind: input, shape index: {}]
  %s6 = inlined_call_operand.vmem [shape: bf16[128,128], index: 6, kind: input, shape index: {}]
  %s7 = inlined_call_operand.vmem [shape: bf16[128,128], index: 7, kind: input, shape index: {}]
  %s8 = inlined_call_operand.vmem [shape: f32[1,128], index: 8, kind: input, shape index: {}]
  %s9 = inlined_call_operand.vmem [shape: bf16[128,64], index: 9, kind: input, shape index: {}]
  %s10 = inlined_call_operand.vmem [shape: f32[1,64], index: 10, kind: input, shape index: {}]
  %s11 = inlined_call_operand.vmem [shape: bf16[64,32], index: 11, kind: input, shape index: {}]
  %s12 = inlined_call_operand.vmem [shape: f32[1,32], index: 12, kind: input, shape index: {}]
  %s13 = inlined_call_operand.vmem [shape: bf16[32,128], index: 13, kind: input, shape index: {}]
  %s14 = inlined_call_operand.vmem [shape: f32[1,128], index: 14, kind: input, shape index: {}]
  %s15 = inlined_call_operand.hbm [shape: f32[2,128,128], index: 15, kind: output, shape index: {}]
  %s16 = sld [smem:[#allocation0]]
  $region78: #{tpu_custom_call.1} parent=0
    _
  %s18 = ssub.s32 1, %s16
  %s19 = scalar_select 0, %s18, %s16
  $region1: #{tpu_custom_call.1} parent=0
    #allocation2 [shape = 'u8[524288]{0}', space=vmem, size = 0x80000, scoped, tag = 'input window, operand 0, single buffered']
    #allocation3 [shape = 's32[1]{0}', space=sflag, size = 0x4, scoped, tag = 'scoped memory for tpu_custom_call.1']
    #allocation4 [shape = 's32[1]{0}', space=sflag, size = 0x4, scoped, tag = 'scoped memory for tpu_custom_call.1']
    #allocation5 [shape = 'u8[262144]{0}', space=vmem, size = 0x40000, scoped, tag = 'input window, operand 2, single buffered']
    #allocation6 [shape = 's32[1]{0}', space=sflag, size = 0x4, scoped, tag = 'scoped memory for tpu_custom_call.1']
    #allocation7 [shape = 'u8[131072]{0}', space=vmem, size = 0x20000, scoped, tag = 'output window, operand 0, single buffered']
    %20 = vsyncpa [#allocation3], 0
    %21 = vsyncpa [#allocation6], 0
    %22 = vsyncpa [#allocation4], 0
    // Predicated region
    $region2: #{tpu_custom_call.1} parent=1 // pred_check
      _
    $region3: #{tpu_custom_call.1} parent=1 // pred_check_branch
      %24 = sbr.rel (0) target = $region5
    $region4: #{tpu_custom_call.1} parent=1 // pred_region
      %26 = vsyncadd [#allocation3], 0
      %s27 = sshll.u32 %s0, 4
      %s28 = int_to_ptr.hbm [resolvable:$true] %s27
      %s29 = sshll.u32 [#allocation2], 4
      %s30 = int_to_ptr.vmem [resolvable:$true] %s29
      %35 = dma.hbm_to_vmem [thread:$0]  %s28, 16384, %s30, [#allocation3], 512, 512, 32
    $region5: #{tpu_custom_call.1} parent=1 // pred_fallthru
      _
    // Predicated region
    $region6: #{tpu_custom_call.1} parent=1 // pred_check
      _
    $region7: #{tpu_custom_call.1} parent=1 // pred_check_branch
      %37 = sbr.rel (0) target = $region9
    $region8: #{tpu_custom_call.1} parent=1 // pred_region
      _
    $region9: #{tpu_custom_call.1} parent=1 // pred_fallthru
      _
    // Predicated region
    $region10: #{tpu_custom_call.1} parent=1 // pred_check
      _
    $region11: #{tpu_custom_call.1} parent=1 // pred_check_branch
      %39 = sbr.rel (0) target = $region13
    $region12: #{tpu_custom_call.1} parent=1 // pred_region
      %41 = vsyncadd [#allocation6], 0
      %s42 = sshll.u32 %s2, 4
      %s43 = int_to_ptr.hbm [resolvable:$true] %s42
      %s44 = sshll.u32 [#allocation5], 4
      %s45 = int_to_ptr.vmem [resolvable:$true] %s44
      %50 = dma.hbm_to_vmem [thread:$0]  %s43, 8192, %s45, [#allocation6], 128, 128, 8
    $region13: #{tpu_custom_call.1} parent=1 // pred_fallthru
      _
    // Predicated region
    $region14: #{tpu_custom_call.1} parent=1 // pred_check
      _
    $region15: #{tpu_custom_call.1} parent=1 // pred_check_branch
      %52 = sbr.rel (0) target = $region17
    $region16: #{tpu_custom_call.1} parent=1 // pred_region
      _
    $region17: #{tpu_custom_call.1} parent=1 // pred_fallthru
      _
    // Predicated region
    $region18: #{tpu_custom_call.1} parent=1 // pred_check
      _
    $region19: #{tpu_custom_call.1} parent=1 // pred_check_branch
      %54 = sbr.rel (0) target = $region21
    $region20: #{tpu_custom_call.1} parent=1 // pred_region
      _
    $region21: #{tpu_custom_call.1} parent=1 // pred_fallthru
      _
    // Predicated region
    $region22: #{tpu_custom_call.1} parent=1 // pred_check
      _
    $region23: #{tpu_custom_call.1} parent=1 // pred_check_branch
      %56 = sbr.rel (0) target = $region25
    $region24: #{tpu_custom_call.1} parent=1 // pred_region
      _
    $region25: #{tpu_custom_call.1} parent=1 // pred_fallthru
      _
    // Predicated region
    $region26: #{tpu_custom_call.1} parent=1 // pred_check
      _
    $region27: #{tpu_custom_call.1} parent=1 // pred_check_branch
      %58 = sbr.rel (0) target = $region29
    $region28: #{tpu_custom_call.1} parent=1 // pred_region
      _
    $region29: #{tpu_custom_call.1} parent=1 // pred_fallthru
      _
    // Predicated region
    $region30: #{tpu_custom_call.1} parent=1 // pred_check
      _
    $region31: #{tpu_custom_call.1} parent=1 // pred_check_branch
      %60 = sbr.rel (0) target = $region33
    $region32: #{tpu_custom_call.1} parent=1 // pred_region
      _
    $region33: #{tpu_custom_call.1} parent=1 // pred_fallthru
      _
    // Predicated region
    $region34: #{tpu_custom_call.1} parent=1 // pred_check
      _
    $region35: #{tpu_custom_call.1} parent=1 // pred_check_branch
      %62 = sbr.rel (0) target = $region37
    $region36: #{tpu_custom_call.1} parent=1 // pred_region
      _
    $region37: #{tpu_custom_call.1} parent=1 // pred_fallthru
      _
    // Predicated region
    $region38: #{tpu_custom_call.1} parent=1 // pred_check
      _
    $region39: #{tpu_custom_call.1} parent=1 // pred_check_branch
      %64 = sbr.rel (0) target = $region41
    $region40: #{tpu_custom_call.1} parent=1 // pred_region
      _
    $region41: #{tpu_custom_call.1} parent=1 // pred_fallthru
      _
    // Predicated region
    $region42: #{tpu_custom_call.1} parent=1 // pred_check
      _
    $region43: #{tpu_custom_call.1} parent=1 // pred_check_branch
      %66 = sbr.rel (0) target = $region45
    $region44: #{tpu_custom_call.1} parent=1 // pred_region
      _
    $region45: #{tpu_custom_call.1} parent=1 // pred_fallthru
      _
    // Predicated region
    $region46: #{tpu_custom_call.1} parent=1 // pred_check
      _
    $region47: #{tpu_custom_call.1} parent=1 // pred_check_branch
      %68 = sbr.rel (0) target = $region49
    $region48: #{tpu_custom_call.1} parent=1 // pred_region
      _
    $region49: #{tpu_custom_call.1} parent=1 // pred_fallthru
      _
    // Predicated region
    $region50: #{tpu_custom_call.1} parent=1 // pred_check
      _
    $region51: #{tpu_custom_call.1} parent=1 // pred_check_branch
      %70 = sbr.rel (0) target = $region53
    $region52: #{tpu_custom_call.1} parent=1 // pred_region
      _
    $region53: #{tpu_custom_call.1} parent=1 // pred_fallthru
      _
    // Predicated region
    $region54: #{tpu_custom_call.1} parent=1 // pred_check
      _
    $region55: #{tpu_custom_call.1} parent=1 // pred_check_branch
      %72 = sbr.rel (0) target = $region57
    $region56: #{tpu_custom_call.1} parent=1 // pred_region
      _
    $region57: #{tpu_custom_call.1} parent=1 // pred_fallthru
      _
    // Predicated region
    $region58: #{tpu_custom_call.1} parent=1 // pred_check
      _
    $region59: #{tpu_custom_call.1} parent=1 // pred_check_branch
      %74 = sbr.rel (0) target = $region61
    $region60: #{tpu_custom_call.1} parent=1 // pred_region
      _
    $region61: #{tpu_custom_call.1} parent=1 // pred_fallthru
      _
    // Predicated region
    $region62: #{tpu_custom_call.1} parent=1 // pred_check
      _
    $region63: #{tpu_custom_call.1} parent=1 // pred_check_branch
      %76 = sbr.rel (0) target = $region65
    $region64: #{tpu_custom_call.1} parent=1 // pred_region
      %78 = dma.done [#allocation3], 16384
    $region65: #{tpu_custom_call.1} parent=1 // pred_fallthru
      _
    // Predicated region
    $region66: #{tpu_custom_call.1} parent=1 // pred_check
      _
    $region67: #{tpu_custom_call.1} parent=1 // pred_check_branch
      %80 = sbr.rel (0) target = $region69
    $region68: #{tpu_custom_call.1} parent=1 // pred_region
      %82 = dma.done [#allocation6], 8192
    $region69: #{tpu_custom_call.1} parent=1 // pred_fallthru
      _
    %v84 = vld [vmem:[#allocation2] sm:$0xff]
    %v85 = vld [vmem:[#allocation2 + $0x8] sm:$0xff]
    %v86 = vld [vmem:[#allocation2 + $0x10] sm:$0xff]
    %v87 = vld [vmem:[#allocation2 + $0x18] sm:$0xff]
    %v88 = vld [vmem:[#allocation2 + $0x20] sm:$0xff]
    %v89 = vld [vmem:[#allocation2 + $0x28] sm:$0xff]
    %v90 = vld [vmem:[#allocation2 + $0x30] sm:$0xff]
    %v91 = vld [vmem:[#allocation2 + $0x38] sm:$0xff]
    %v92 = vld [vmem:[#allocation2 + $0x40] sm:$0xff]
    %v93 = vld [vmem:[#allocation2 + $0x48] sm:$0xff]
    %v94 = vld [vmem:[#allocation2 + $0x50] sm:$0xff]
    %v95 = vld [vmem:[#allocation2 + $0x58] sm:$0xff]
    %v96 = vld [vmem:[#allocation2 + $0x60] sm:$0xff]
    %v97 = vld [vmem:[#allocation2 + $0x68] sm:$0xff]
    %v98 = vld [vmem:[#allocation2 + $0x70] sm:$0xff]
    %v99 = vld [vmem:[#allocation2 + $0x78] sm:$0xff]
    %v100 = vld [vmem:[#allocation2 + $0x80] sm:$0xff]
    %v101 = vld [vmem:[#allocation2 + $0x88] sm:$0xff]
    %v102 = vld [vmem:[#allocation2 + $0x90] sm:$0xff]
    %v103 = vld [vmem:[#allocation2 + $0x98] sm:$0xff]
    %v104 = vld [vmem:[#allocation2 + $0xa0] sm:$0xff]
    %v105 = vld [vmem:[#allocation2 + $0xa8] sm:$0xff]
    %v106 = vld [vmem:[#allocation2 + $0xb0] sm:$0xff]
    %v107 = vld [vmem:[#allocation2 + $0xb8] sm:$0xff]
    %v108 = vld [vmem:[#allocation2 + $0xc0] sm:$0xff]
    %v109 = vld [vmem:[#allocation2 + $0xc8] sm:$0xff]
    %v110 = vld [vmem:[#allocation2 + $0xd0] sm:$0xff]
    %v111 = vld [vmem:[#allocation2 + $0xd8] sm:$0xff]
    %v112 = vld [vmem:[#allocation2 + $0xe0] sm:$0xff]
    %v113 = vld [vmem:[#allocation2 + $0xe8] sm:$0xff]
    %v114 = vld [vmem:[#allocation2 + $0xf0] sm:$0xff]
    %v115 = vld [vmem:[#allocation2 + $0xf8] sm:$0xff]
    %v116 = vld [vmem:[#allocation2 + $0x100] sm:$0xff]
    %v117 = vld [vmem:[#allocation2 + $0x108] sm:$0xff]
    %v118 = vld [vmem:[#allocation2 + $0x110] sm:$0xff]
    %v119 = vld [vmem:[#allocation2 + $0x118] sm:$0xff]
    %v120 = vld [vmem:[#allocation2 + $0x120] sm:$0xff]
    %v121 = vld [vmem:[#allocation2 + $0x128] sm:$0xff]
    %v122 = vld [vmem:[#allocation2 + $0x130] sm:$0xff]
    %v123 = vld [vmem:[#allocation2 + $0x138] sm:$0xff]
    %v124 = vld [vmem:[#allocation2 + $0x140] sm:$0xff]
    %v125 = vld [vmem:[#allocation2 + $0x148] sm:$0xff]
    %v126 = vld [vmem:[#allocation2 + $0x150] sm:$0xff]
    %v127 = vld [vmem:[#allocation2 + $0x158] sm:$0xff]
    %v128 = vld [vmem:[#allocation2 + $0x160] sm:$0xff]
    %v129 = vld [vmem:[#allocation2 + $0x168] sm:$0xff]
    %v130 = vld [vmem:[#allocation2 + $0x170] sm:$0xff]
    %v131 = vld [vmem:[#allocation2 + $0x178] sm:$0xff]
    %v132 = vld [vmem:[#allocation2 + $0x180] sm:$0xff]
    %v133 = vld [vmem:[#allocation2 + $0x188] sm:$0xff]
    %v134 = vld [vmem:[#allocation2 + $0x190] sm:$0xff]
    %v135 = vld [vmem:[#allocation2 + $0x198] sm:$0xff]
    %v136 = vld [vmem:[#allocation2 + $0x1a0] sm:$0xff]
    %v137 = vld [vmem:[#allocation2 + $0x1a8] sm:$0xff]
    %v138 = vld [vmem:[#allocation2 + $0x1b0] sm:$0xff]
    %v139 = vld [vmem:[#allocation2 + $0x1b8] sm:$0xff]
    %v140 = vld [vmem:[#allocation2 + $0x1c0] sm:$0xff]
    %v141 = vld [vmem:[#allocation2 + $0x1c8] sm:$0xff]
    %v142 = vld [vmem:[#allocation2 + $0x1d0] sm:$0xff]
    %v143 = vld [vmem:[#allocation2 + $0x1d8] sm:$0xff]
    %v144 = vld [vmem:[#allocation2 + $0x1e0] sm:$0xff]
    %v145 = vld [vmem:[#allocation2 + $0x1e8] sm:$0xff]
    %v146 = vld [vmem:[#allocation2 + $0x1f0] sm:$0xff]
    %v147 = vld [vmem:[#allocation2 + $0x1f8] sm:$0xff]
    %v148 = vld [vmem:[#allocation2 + $0x200] sm:$0xff]
    %v149 = vld [vmem:[#allocation2 + $0x208] sm:$0xff]
    %v150 = vld [vmem:[#allocation2 + $0x210] sm:$0xff]
    %v151 = vld [vmem:[#allocation2 + $0x218] sm:$0xff]
    %v152 = vld [vmem:[#allocation2 + $0x220] sm:$0xff]
    %v153 = vld [vmem:[#allocation2 + $0x228] sm:$0xff]
    %v154 = vld [vmem:[#allocation2 + $0x230] sm:$0xff]
    %v155 = vld [vmem:[#allocation2 + $0x238] sm:$0xff]
    %v156 = vld [vmem:[#allocation2 + $0x240] sm:$0xff]
    %v157 = vld [vmem:[#allocation2 + $0x248] sm:$0xff]
    %v158 = vld [vmem:[#allocation2 + $0x250] sm:$0xff]
    %v159 = vld [vmem:[#allocation2 + $0x258] sm:$0xff]
    %v160 = vld [vmem:[#allocation2 + $0x260] sm:$0xff]
    %v161 = vld [vmem:[#allocation2 + $0x268] sm:$0xff]
    %v162 = vld [vmem:[#allocation2 + $0x270] sm:$0xff]
    %v163 = vld [vmem:[#allocation2 + $0x278] sm:$0xff]
    %v164 = vld [vmem:[#allocation2 + $0x280] sm:$0xff]
    %v165 = vld [vmem:[#allocation2 + $0x288] sm:$0xff]
    %v166 = vld [vmem:[#allocation2 + $0x290] sm:$0xff]
    %v167 = vld [vmem:[#allocation2 + $0x298] sm:$0xff]
    %v168 = vld [vmem:[#allocation2 + $0x2a0] sm:$0xff]
    %v169 = vld [vmem:[#allocation2 + $0x2a8] sm:$0xff]
    %v170 = vld [vmem:[#allocation2 + $0x2b0] sm:$0xff]
    %v171 = vld [vmem:[#allocation2 + $0x2b8] sm:$0xff]
    %v172 = vld [vmem:[#allocation2 + $0x2c0] sm:$0xff]
    %v173 = vld [vmem:[#allocation2 + $0x2c8] sm:$0xff]
    %v174 = vld [vmem:[#allocation2 + $0x2d0] sm:$0xff]
    %v175 = vld [vmem:[#allocation2 + $0x2d8] sm:$0xff]
    %v176 = vld [vmem:[#allocation2 + $0x2e0] sm:$0xff]
    %v177 = vld [vmem:[#allocation2 + $0x2e8] sm:$0xff]
    %v178 = vld [vmem:[#allocation2 + $0x2f0] sm:$0xff]
    %v179 = vld [vmem:[#allocation2 + $0x2f8] sm:$0xff]
    %v180 = vld [vmem:[#allocation2 + $0x300] sm:$0xff]
    %v181 = vld [vmem:[#allocation2 + $0x308] sm:$0xff]
    %v182 = vld [vmem:[#allocation2 + $0x310] sm:$0xff]
    %v183 = vld [vmem:[#allocation2 + $0x318] sm:$0xff]
    %v184 = vld [vmem:[#allocation2 + $0x320] sm:$0xff]
    %v185 = vld [vmem:[#allocation2 + $0x328] sm:$0xff]
    %v186 = vld [vmem:[#allocation2 + $0x330] sm:$0xff]
    %v187 = vld [vmem:[#allocation2 + $0x338] sm:$0xff]
    %v188 = vld [vmem:[#allocation2 + $0x340] sm:$0xff]
    %v189 = vld [vmem:[#allocation2 + $0x348] sm:$0xff]
    %v190 = vld [vmem:[#allocation2 + $0x350] sm:$0xff]
    %v191 = vld [vmem:[#allocation2 + $0x358] sm:$0xff]
    %v192 = vld [vmem:[#allocation2 + $0x360] sm:$0xff]
    %v193 = vld [vmem:[#allocation2 + $0x368] sm:$0xff]
    %v194 = vld [vmem:[#allocation2 + $0x370] sm:$0xff]
    %v195 = vld [vmem:[#allocation2 + $0x378] sm:$0xff]
    %v196 = vld [vmem:[#allocation2 + $0x380] sm:$0xff]
    %v197 = vld [vmem:[#allocation2 + $0x388] sm:$0xff]
    %v198 = vld [vmem:[#allocation2 + $0x390] sm:$0xff]
    %v199 = vld [vmem:[#allocation2 + $0x398] sm:$0xff]
    %v200 = vld [vmem:[#allocation2 + $0x3a0] sm:$0xff]
    %v201 = vld [vmem:[#allocation2 + $0x3a8] sm:$0xff]
    %v202 = vld [vmem:[#allocation2 + $0x3b0] sm:$0xff]
    %v203 = vld [vmem:[#allocation2 + $0x3b8] sm:$0xff]
    %v204 = vld [vmem:[#allocation2 + $0x3c0] sm:$0xff]
    %v205 = vld [vmem:[#allocation2 + $0x3c8] sm:$0xff]
    %v206 = vld [vmem:[#allocation2 + $0x3d0] sm:$0xff]
    %v207 = vld [vmem:[#allocation2 + $0x3d8] sm:$0xff]
    %v208 = vld [vmem:[#allocation2 + $0x3e0] sm:$0xff]
    %v209 = vld [vmem:[#allocation2 + $0x3e8] sm:$0xff]
    %v210 = vld [vmem:[#allocation2 + $0x3f0] sm:$0xff]
    %v211 = vld [vmem:[#allocation2 + $0x3f8] sm:$0xff]
    %v212 = vpack.c.bf16 %v88, %v84
    %v213 = vpack.c.bf16 %v89, %v85
    %v214 = vpack.c.bf16 %v90, %v86
    %v215 = vpack.c.bf16 %v91, %v87
    %v216 = vpack.c.bf16 %v96, %v92
    %v217 = vpack.c.bf16 %v97, %v93
    %v218 = vpack.c.bf16 %v98, %v94
    %v219 = vpack.c.bf16 %v99, %v95
    %v220 = vpack.c.bf16 %v104, %v100
    %v221 = vpack.c.bf16 %v105, %v101
    %v222 = vpack.c.bf16 %v106, %v102
    %v223 = vpack.c.bf16 %v107, %v103
    %v224 = vpack.c.bf16 %v112, %v108
    %v225 = vpack.c.bf16 %v113, %v109
    %v226 = vpack.c.bf16 %v114, %v110
    %v227 = vpack.c.bf16 %v115, %v111
    %v228 = vpack.c.bf16 %v120, %v116
    %v229 = vpack.c.bf16 %v121, %v117
    %v230 = vpack.c.bf16 %v122, %v118
    %v231 = vpack.c.bf16 %v123, %v119
    %v232 = vpack.c.bf16 %v128, %v124
    %v233 = vpack.c.bf16 %v129, %v125
    %v234 = vpack.c.bf16 %v130, %v126
    %v235 = vpack.c.bf16 %v131, %v127
    %v236 = vpack.c.bf16 %v136, %v132
    %v237 = vpack.c.bf16 %v137, %v133
    %v238 = vpack.c.bf16 %v138, %v134
    %v239 = vpack.c.bf16 %v139, %v135
    %v240 = vpack.c.bf16 %v144, %v140
    %v241 = vpack.c.bf16 %v145, %v141
    %v242 = vpack.c.bf16 %v146, %v142
    %v243 = vpack.c.bf16 %v147, %v143
    %v244 = vpack.c.bf16 %v152, %v148
    %v245 = vpack.c.bf16 %v153, %v149
    %v246 = vpack.c.bf16 %v154, %v150
    %v247 = vpack.c.bf16 %v155, %v151
    %v248 = vpack.c.bf16 %v160, %v156
    %v249 = vpack.c.bf16 %v161, %v157
    %v250 = vpack.c.bf16 %v162, %v158
    %v251 = vpack.c.bf16 %v163, %v159
    %v252 = vpack.c.bf16 %v168, %v164
    %v253 = vpack.c.bf16 %v169, %v165
    %v254 = vpack.c.bf16 %v170, %v166
    %v255 = vpack.c.bf16 %v171, %v167
    %v256 = vpack.c.bf16 %v176, %v172
    %v257 = vpack.c.bf16 %v177, %v173
    %v258 = vpack.c.bf16 %v178, %v174
    %v259 = vpack.c.bf16 %v179, %v175
    %v260 = vpack.c.bf16 %v184, %v180
    %v261 = vpack.c.bf16 %v185, %v181
    %v262 = vpack.c.bf16 %v186, %v182
    %v263 = vpack.c.bf16 %v187, %v183
    %v264 = vpack.c.bf16 %v192, %v188
    %v265 = vpack.c.bf16 %v193, %v189
    %v266 = vpack.c.bf16 %v194, %v190
    %v267 = vpack.c.bf16 %v195, %v191
    %v268 = vpack.c.bf16 %v200, %v196
    %v269 = vpack.c.bf16 %v201, %v197
    %v270 = vpack.c.bf16 %v202, %v198
    %v271 = vpack.c.bf16 %v203, %v199
    %v272 = vpack.c.bf16 %v208, %v204
    %v273 = vpack.c.bf16 %v209, %v205
    %v274 = vpack.c.bf16 %v210, %v206
    %v275 = vpack.c.bf16 %v211, %v207
    %v276 = vld [vmem:[#allocation5] sm:$0xff]
    %v277 = vld [vmem:[#allocation5 + $0x8] sm:$0xff]
    %v278 = vld [vmem:[#allocation5 + $0x10] sm:$0xff]
    %v279 = vld [vmem:[#allocation5 + $0x18] sm:$0xff]
    %v280 = vld [vmem:[#allocation5 + $0x20] sm:$0xff]
    %v281 = vld [vmem:[#allocation5 + $0x28] sm:$0xff]
    %v282 = vld [vmem:[#allocation5 + $0x30] sm:$0xff]
    %v283 = vld [vmem:[#allocation5 + $0x38] sm:$0xff]
    %v284 = vld [vmem:[#allocation5 + $0x40] sm:$0xff]
    %v285 = vld [vmem:[#allocation5 + $0x48] sm:$0xff]
    %v286 = vld [vmem:[#allocation5 + $0x50] sm:$0xff]
    %v287 = vld [vmem:[#allocation5 + $0x58] sm:$0xff]
    %v288 = vld [vmem:[#allocation5 + $0x60] sm:$0xff]
    %v289 = vld [vmem:[#allocation5 + $0x68] sm:$0xff]
    %v290 = vld [vmem:[#allocation5 + $0x70] sm:$0xff]
    %v291 = vld [vmem:[#allocation5 + $0x78] sm:$0xff]
    %v292 = vld [vmem:[#allocation5 + $0x80] sm:$0xff]
    %v293 = vld [vmem:[#allocation5 + $0x88] sm:$0xff]
    %v294 = vld [vmem:[#allocation5 + $0x90] sm:$0xff]
    %v295 = vld [vmem:[#allocation5 + $0x98] sm:$0xff]
    %v296 = vld [vmem:[#allocation5 + $0xa0] sm:$0xff]
    %v297 = vld [vmem:[#allocation5 + $0xa8] sm:$0xff]
    %v298 = vld [vmem:[#allocation5 + $0xb0] sm:$0xff]
    %v299 = vld [vmem:[#allocation5 + $0xb8] sm:$0xff]
    %v300 = vld [vmem:[#allocation5 + $0xc0] sm:$0xff]
    %v301 = vld [vmem:[#allocation5 + $0xc8] sm:$0xff]
    %v302 = vld [vmem:[#allocation5 + $0xd0] sm:$0xff]
    %v303 = vld [vmem:[#allocation5 + $0xd8] sm:$0xff]
    %v304 = vld [vmem:[#allocation5 + $0xe0] sm:$0xff]
    %v305 = vld [vmem:[#allocation5 + $0xe8] sm:$0xff]
    %v306 = vld [vmem:[#allocation5 + $0xf0] sm:$0xff]
    %v307 = vld [vmem:[#allocation5 + $0xf8] sm:$0xff]
    %v308 = vld [vmem:[#allocation5 + $0x100] sm:$0xff]
    %v309 = vld [vmem:[#allocation5 + $0x108] sm:$0xff]
    %v310 = vld [vmem:[#allocation5 + $0x110] sm:$0xff]
    %v311 = vld [vmem:[#allocation5 + $0x118] sm:$0xff]
    %v312 = vld [vmem:[#allocation5 + $0x120] sm:$0xff]
    %v313 = vld [vmem:[#allocation5 + $0x128] sm:$0xff]
    %v314 = vld [vmem:[#allocation5 + $0x130] sm:$0xff]
    %v315 = vld [vmem:[#allocation5 + $0x138] sm:$0xff]
    %v316 = vld [vmem:[#allocation5 + $0x140] sm:$0xff]
    %v317 = vld [vmem:[#allocation5 + $0x148] sm:$0xff]
    %v318 = vld [vmem:[#allocation5 + $0x150] sm:$0xff]
    %v319 = vld [vmem:[#allocation5 + $0x158] sm:$0xff]
    %v320 = vld [vmem:[#allocation5 + $0x160] sm:$0xff]
    %v321 = vld [vmem:[#allocation5 + $0x168] sm:$0xff]
    %v322 = vld [vmem:[#allocation5 + $0x170] sm:$0xff]
    %v323 = vld [vmem:[#allocation5 + $0x178] sm:$0xff]
    %v324 = vld [vmem:[#allocation5 + $0x180] sm:$0xff]
    %v325 = vld [vmem:[#allocation5 + $0x188] sm:$0xff]
    %v326 = vld [vmem:[#allocation5 + $0x190] sm:$0xff]
    %v327 = vld [vmem:[#allocation5 + $0x198] sm:$0xff]
    %v328 = vld [vmem:[#allocation5 + $0x1a0] sm:$0xff]
    %v329 = vld [vmem:[#allocation5 + $0x1a8] sm:$0xff]
    %v330 = vld [vmem:[#allocation5 + $0x1b0] sm:$0xff]
    %v331 = vld [vmem:[#allocation5 + $0x1b8] sm:$0xff]
    %v332 = vld [vmem:[#allocation5 + $0x1c0] sm:$0xff]
    %v333 = vld [vmem:[#allocation5 + $0x1c8] sm:$0xff]
    %v334 = vld [vmem:[#allocation5 + $0x1d0] sm:$0xff]
    %v335 = vld [vmem:[#allocation5 + $0x1d8] sm:$0xff]
    %v336 = vld [vmem:[#allocation5 + $0x1e0] sm:$0xff]
    %v337 = vld [vmem:[#allocation5 + $0x1e8] sm:$0xff]
    %v338 = vld [vmem:[#allocation5 + $0x1f0] sm:$0xff]
    %v339 = vld [vmem:[#allocation5 + $0x1f8] sm:$0xff]
    %v404 = vunpack.c.l.b16 %v276
    %v405 = vunpack.c.h.b16 %v276
    %v406 = vunpack.c.l.b16 %v277
    %v407 = vunpack.c.h.b16 %v277
    %v408 = vunpack.c.l.b16 %v278
    %v409 = vunpack.c.h.b16 %v278
    %v410 = vunpack.c.l.b16 %v279
    %v411 = vunpack.c.h.b16 %v279
    %v412 = vunpack.c.l.b16 %v280
    %v413 = vunpack.c.h.b16 %v280
    %v414 = vunpack.c.l.b16 %v281
    %v415 = vunpack.c.h.b16 %v281
    %v416 = vunpack.c.l.b16 %v282
    %v417 = vunpack.c.h.b16 %v282
    %v418 = vunpack.c.l.b16 %v283
    %v419 = vunpack.c.h.b16 %v283
    %v420 = vunpack.c.l.b16 %v284
    %v421 = vunpack.c.h.b16 %v284
    %v422 = vunpack.c.l.b16 %v285
    %v423 = vunpack.c.h.b16 %v285
    %v424 = vunpack.c.l.b16 %v286
    %v425 = vunpack.c.h.b16 %v286
    %v426 = vunpack.c.l.b16 %v287
    %v427 = vunpack.c.h.b16 %v287
    %v428 = vunpack.c.l.b16 %v288
    %v429 = vunpack.c.h.b16 %v288
    %v430 = vunpack.c.l.b16 %v289
    %v431 = vunpack.c.h.b16 %v289
    %v432 = vunpack.c.l.b16 %v290
    %v433 = vunpack.c.h.b16 %v290
    %v434 = vunpack.c.l.b16 %v291
    %v435 = vunpack.c.h.b16 %v291
    %v436 = vunpack.c.l.b16 %v292
    %v437 = vunpack.c.h.b16 %v292
    %v438 = vunpack.c.l.b16 %v293
    %v439 = vunpack.c.h.b16 %v293
    %v440 = vunpack.c.l.b16 %v294
    %v441 = vunpack.c.h.b16 %v294
    %v442 = vunpack.c.l.b16 %v295
    %v443 = vunpack.c.h.b16 %v295
    %v444 = vunpack.c.l.b16 %v296
    %v445 = vunpack.c.h.b16 %v296
    %v446 = vunpack.c.l.b16 %v297
    %v447 = vunpack.c.h.b16 %v297
    %v448 = vunpack.c.l.b16 %v298
    %v449 = vunpack.c.h.b16 %v298
    %v450 = vunpack.c.l.b16 %v299
    %v451 = vunpack.c.h.b16 %v299
    %v452 = vunpack.c.l.b16 %v300
    %v453 = vunpack.c.h.b16 %v300
    %v454 = vunpack.c.l.b16 %v301
    %v455 = vunpack.c.h.b16 %v301
    %v456 = vunpack.c.l.b16 %v302
    %v457 = vunpack.c.h.b16 %v302
    %v458 = vunpack.c.l.b16 %v303
    %v459 = vunpack.c.h.b16 %v303
    %v460 = vunpack.c.l.b16 %v304
    %v461 = vunpack.c.h.b16 %v304
    %v462 = vunpack.c.l.b16 %v305
    %v463 = vunpack.c.h.b16 %v305
    %v464 = vunpack.c.l.b16 %v306
    %v465 = vunpack.c.h.b16 %v306
    %v466 = vunpack.c.l.b16 %v307
    %v467 = vunpack.c.h.b16 %v307
    %v468 = vunpack.c.l.b16 %v308
    %v469 = vunpack.c.h.b16 %v308
    %v470 = vunpack.c.l.b16 %v309
    %v471 = vunpack.c.h.b16 %v309
    %v472 = vunpack.c.l.b16 %v310
    %v473 = vunpack.c.h.b16 %v310
    %v474 = vunpack.c.l.b16 %v311
    %v475 = vunpack.c.h.b16 %v311
    %v476 = vunpack.c.l.b16 %v312
    %v477 = vunpack.c.h.b16 %v312
    %v478 = vunpack.c.l.b16 %v313
    %v479 = vunpack.c.h.b16 %v313
    %v480 = vunpack.c.l.b16 %v314
    %v481 = vunpack.c.h.b16 %v314
    %v482 = vunpack.c.l.b16 %v315
    %v483 = vunpack.c.h.b16 %v315
    %v484 = vunpack.c.l.b16 %v316
    %v485 = vunpack.c.h.b16 %v316
    %v486 = vunpack.c.l.b16 %v317
    %v487 = vunpack.c.h.b16 %v317
    %v488 = vunpack.c.l.b16 %v318
    %v489 = vunpack.c.h.b16 %v318
    %v490 = vunpack.c.l.b16 %v319
    %v491 = vunpack.c.h.b16 %v319
    %v492 = vunpack.c.l.b16 %v320
    %v493 = vunpack.c.h.b16 %v320
    %v494 = vunpack.c.l.b16 %v321
    %v495 = vunpack.c.h.b16 %v321
    %v496 = vunpack.c.l.b16 %v322
    %v497 = vunpack.c.h.b16 %v322
    %v498 = vunpack.c.l.b16 %v323
    %v499 = vunpack.c.h.b16 %v323
    %v500 = vunpack.c.l.b16 %v324
    %v501 = vunpack.c.h.b16 %v324
    %v502 = vunpack.c.l.b16 %v325
    %v503 = vunpack.c.h.b16 %v325
    %v504 = vunpack.c.l.b16 %v326
    %v505 = vunpack.c.h.b16 %v326
    %v506 = vunpack.c.l.b16 %v327
    %v507 = vunpack.c.h.b16 %v327
    %v508 = vunpack.c.l.b16 %v328
    %v509 = vunpack.c.h.b16 %v328
    %v510 = vunpack.c.l.b16 %v329
    %v511 = vunpack.c.h.b16 %v329
    %v512 = vunpack.c.l.b16 %v330
    %v513 = vunpack.c.h.b16 %v330
    %v514 = vunpack.c.l.b16 %v331
    %v515 = vunpack.c.h.b16 %v331
    %v516 = vunpack.c.l.b16 %v332
    %v517 = vunpack.c.h.b16 %v332
    %v518 = vunpack.c.l.b16 %v333
    %v519 = vunpack.c.h.b16 %v333
    %v520 = vunpack.c.l.b16 %v334
    %v521 = vunpack.c.h.b16 %v334
    %v522 = vunpack.c.l.b16 %v335
    %v523 = vunpack.c.h.b16 %v335
    %v524 = vunpack.c.l.b16 %v336
    %v525 = vunpack.c.h.b16 %v336
    %v526 = vunpack.c.l.b16 %v337
    %v527 = vunpack.c.h.b16 %v337
    %v528 = vunpack.c.l.b16 %v338
    %v529 = vunpack.c.h.b16 %v338
    %v530 = vunpack.c.l.b16 %v339
    %v531 = vunpack.c.h.b16 %v339
    %v532 = vpack.c.b16 %v406, %v404
    %v533 = vpack.c.b16 %v407, %v405
    %v534 = vpack.c.b16 %v410, %v408
    %v535 = vpack.c.b16 %v411, %v409
    %v536 = vpack.c.b16 %v414, %v412
    %v537 = vpack.c.b16 %v415, %v413
    %v538 = vpack.c.b16 %v418, %v416
    %v539 = vpack.c.b16 %v419, %v417
    %v540 = vpack.c.b16 %v422, %v420
    %v541 = vpack.c.b16 %v423, %v421
    %v542 = vpack.c.b16 %v426, %v424
    %v543 = vpack.c.b16 %v427, %v425
    %v544 = vpack.c.b16 %v430, %v428
    %v545 = vpack.c.b16 %v431, %v429
    %v546 = vpack.c.b16 %v434, %v432
    %v547 = vpack.c.b16 %v435, %v433
    %v548 = vpack.c.b16 %v438, %v436
    %v549 = vpack.c.b16 %v439, %v437
    %v550 = vpack.c.b16 %v442, %v440
    %v551 = vpack.c.b16 %v443, %v441
    %v552 = vpack.c.b16 %v446, %v444
    %v553 = vpack.c.b16 %v447, %v445
    %v554 = vpack.c.b16 %v450, %v448
    %v555 = vpack.c.b16 %v451, %v449
    %v556 = vpack.c.b16 %v454, %v452
    %v557 = vpack.c.b16 %v455, %v453
    %v558 = vpack.c.b16 %v458, %v456
    %v559 = vpack.c.b16 %v459, %v457
    %v560 = vpack.c.b16 %v462, %v460
    %v561 = vpack.c.b16 %v463, %v461
    %v562 = vpack.c.b16 %v466, %v464
    %v563 = vpack.c.b16 %v467, %v465
    %v564 = vpack.c.b16 %v470, %v468
    %v565 = vpack.c.b16 %v471, %v469
    %v566 = vpack.c.b16 %v474, %v472
    %v567 = vpack.c.b16 %v475, %v473
    %v568 = vpack.c.b16 %v478, %v476
    %v569 = vpack.c.b16 %v479, %v477
    %v570 = vpack.c.b16 %v482, %v480
    %v571 = vpack.c.b16 %v483, %v481
    %v572 = vpack.c.b16 %v486, %v484
    %v573 = vpack.c.b16 %v487, %v485
    %v574 = vpack.c.b16 %v490, %v488
    %v575 = vpack.c.b16 %v491, %v489
    %v576 = vpack.c.b16 %v494, %v492
    %v577 = vpack.c.b16 %v495, %v493
    %v578 = vpack.c.b16 %v498, %v496
    %v579 = vpack.c.b16 %v499, %v497
    %v580 = vpack.c.b16 %v502, %v500
    %v581 = vpack.c.b16 %v503, %v501
    %v582 = vpack.c.b16 %v506, %v504
    %v583 = vpack.c.b16 %v507, %v505
    %v584 = vpack.c.b16 %v510, %v508
    %v585 = vpack.c.b16 %v511, %v509
    %v586 = vpack.c.b16 %v514, %v512
    %v587 = vpack.c.b16 %v515, %v513
    %v588 = vpack.c.b16 %v518, %v516
    %v589 = vpack.c.b16 %v519, %v517
    %v590 = vpack.c.b16 %v522, %v520
    %v591 = vpack.c.b16 %v523, %v521
    %v592 = vpack.c.b16 %v526, %v524
    %v593 = vpack.c.b16 %v527, %v525
    %v594 = vpack.c.b16 %v530, %v528
    %v595 = vpack.c.b16 %v531, %v529
    %660 = vmatpush.bf16.msra.mxu0 %v546
    %661 = vmatpush.bf16.msra.mxu0 %v544
    %662 = vmatpush.bf16.msra.mxu0 %v542
    %663 = vmatpush.bf16.msra.mxu0 %v540
    %664 = vmatpush.bf16.msra.mxu0 %v538
    %665 = vmatpush.bf16.msra.mxu0 %v536
    %666 = vmatpush.bf16.msra.mxu0 %v534
    %667 = vmatpush.bf16.msra.mxu0 %v532
    %668 = vmatmul.bf16.gmra.mxu0 %v212
    %v669 = vpop.f32.mrf.mxu0
    %v670 = vadd.f32 0.0, %v669
    %v671 = vpop.f32.mrf.mxu0
    %v672 = vadd.f32 0.0, %v671
    %673 = vmatmul.bf16.gmra.mxu0 %v216
    %v674 = vpop.f32.mrf.mxu0
    %v675 = vadd.f32 0.0, %v674
    %v676 = vpop.f32.mrf.mxu0
    %v677 = vadd.f32 0.0, %v676
    %678 = vmatmul.bf16.gmra.mxu0 %v220
    %v679 = vpop.f32.mrf.mxu0
    %v680 = vadd.f32 0.0, %v679
    %v681 = vpop.f32.mrf.mxu0
    %v682 = vadd.f32 0.0, %v681
    %683 = vmatmul.bf16.gmra.mxu0 %v224
    %v684 = vpop.f32.mrf.mxu0
    %v685 = vadd.f32 0.0, %v684
    %v686 = vpop.f32.mrf.mxu0
    %v687 = vadd.f32 0.0, %v686
    %688 = vmatmul.bf16.gmra.mxu0 %v228
    %v689 = vpop.f32.mrf.mxu0
    %v690 = vadd.f32 0.0, %v689
    %v691 = vpop.f32.mrf.mxu0
    %v692 = vadd.f32 0.0, %v691
    %693 = vmatmul.bf16.gmra.mxu0 %v232
    %v694 = vpop.f32.mrf.mxu0
    %v695 = vadd.f32 0.0, %v694
    %v696 = vpop.f32.mrf.mxu0
    %v697 = vadd.f32 0.0, %v696
    %698 = vmatmul.bf16.gmra.mxu0 %v236
    %v699 = vpop.f32.mrf.mxu0
    %v700 = vadd.f32 0.0, %v699
    %v701 = vpop.f32.mrf.mxu0
    %v702 = vadd.f32 0.0, %v701
    %703 = vmatmul.bf16.gmra.mxu0 %v240
    %v704 = vpop.f32.mrf.mxu0
    %v705 = vadd.f32 0.0, %v704
    %v706 = vpop.f32.mrf.mxu0
    %v707 = vadd.f32 0.0, %v706
    %708 = vmatmul.bf16.gmra.mxu0 %v244
    %v709 = vpop.f32.mrf.mxu0
    %v710 = vadd.f32 0.0, %v709
    %v711 = vpop.f32.mrf.mxu0
    %v712 = vadd.f32 0.0, %v711
    %713 = vmatmul.bf16.gmra.mxu0 %v248
    %v714 = vpop.f32.mrf.mxu0
    %v715 = vadd.f32 0.0, %v714
    %v716 = vpop.f32.mrf.mxu0
    %v717 = vadd.f32 0.0, %v716
    %718 = vmatmul.bf16.gmra.mxu0 %v252
    %v719 = vpop.f32.mrf.mxu0
    %v720 = vadd.f32 0.0, %v719
    %v721 = vpop.f32.mrf.mxu0
    %v722 = vadd.f32 0.0, %v721
    %723 = vmatmul.bf16.gmra.mxu0 %v256
    %v724 = vpop.f32.mrf.mxu0
    %v725 = vadd.f32 0.0, %v724
    %v726 = vpop.f32.mrf.mxu0
    %v727 = vadd.f32 0.0, %v726
    %728 = vmatmul.bf16.gmra.mxu0 %v260
    %v729 = vpop.f32.mrf.mxu0
    %v730 = vadd.f32 0.0, %v729
    %v731 = vpop.f32.mrf.mxu0
    %v732 = vadd.f32 0.0, %v731
    %733 = vmatmul.bf16.gmra.mxu0 %v264
    %v734 = vpop.f32.mrf.mxu0
    %v735 = vadd.f32 0.0, %v734
    %v736 = vpop.f32.mrf.mxu0
    %v737 = vadd.f32 0.0, %v736
    %738 = vmatmul.bf16.gmra.mxu0 %v268
    %v739 = vpop.f32.mrf.mxu0
    %v740 = vadd.f32 0.0, %v739
    %v741 = vpop.f32.mrf.mxu0
    %v742 = vadd.f32 0.0, %v741
    %743 = vmatmul.bf16.gmra.mxu0 %v272
    %v744 = vpop.f32.mrf.mxu0
    %v745 = vadd.f32 0.0, %v744
    %v746 = vpop.f32.mrf.mxu0
    %v747 = vadd.f32 0.0, %v746
    %748 = vdwg.mxu0
    %749 = vmatpush.bf16.msra.mxu0 %v562
    %750 = vmatpush.bf16.msra.mxu0 %v560
    %751 = vmatpush.bf16.msra.mxu0 %v558
    %752 = vmatpush.bf16.msra.mxu0 %v556
    %753 = vmatpush.bf16.msra.mxu0 %v554
    %754 = vmatpush.bf16.msra.mxu0 %v552
    %755 = vmatpush.bf16.msra.mxu0 %v550
    %756 = vmatpush.bf16.msra.mxu0 %v548
    %757 = vmatmul.bf16.gmra.mxu0 %v213
    %v758 = vpop.f32.mrf.mxu0
    %v759 = vadd.f32 %v670, %v758
    %v760 = vpop.f32.mrf.mxu0
    %v761 = vadd.f32 %v672, %v760
    %762 = vmatmul.bf16.gmra.mxu0 %v217
    %v763 = vpop.f32.mrf.mxu0
    %v764 = vadd.f32 %v675, %v763
    %v765 = vpop.f32.mrf.mxu0
    %v766 = vadd.f32 %v677, %v765
    %767 = vmatmul.bf16.gmra.mxu0 %v221
    %v768 = vpop.f32.mrf.mxu0
    %v769 = vadd.f32 %v680, %v768
    %v770 = vpop.f32.mrf.mxu0
    %v771 = vadd.f32 %v682, %v770
    %772 = vmatmul.bf16.gmra.mxu0 %v225
    %v773 = vpop.f32.mrf.mxu0
    %v774 = vadd.f32 %v685, %v773
    %v775 = vpop.f32.mrf.mxu0
    %v776 = vadd.f32 %v687, %v775
    %777 = vmatmul.bf16.gmra.mxu0 %v229
    %v778 = vpop.f32.mrf.mxu0
    %v779 = vadd.f32 %v690, %v778
    %v780 = vpop.f32.mrf.mxu0
    %v781 = vadd.f32 %v692, %v780
    %782 = vmatmul.bf16.gmra.mxu0 %v233
    %v783 = vpop.f32.mrf.mxu0
    %v784 = vadd.f32 %v695, %v783
    %v785 = vpop.f32.mrf.mxu0
    %v786 = vadd.f32 %v697, %v785
    %787 = vmatmul.bf16.gmra.mxu0 %v237
    %v788 = vpop.f32.mrf.mxu0
    %v789 = vadd.f32 %v700, %v788
    %v790 = vpop.f32.mrf.mxu0
    %v791 = vadd.f32 %v702, %v790
    %792 = vmatmul.bf16.gmra.mxu0 %v241
    %v793 = vpop.f32.mrf.mxu0
    %v794 = vadd.f32 %v705, %v793
    %v795 = vpop.f32.mrf.mxu0
    %v796 = vadd.f32 %v707, %v795
    %797 = vmatmul.bf16.gmra.mxu0 %v245
    %v798 = vpop.f32.mrf.mxu0
    %v799 = vadd.f32 %v710, %v798
    %v800 = vpop.f32.mrf.mxu0
    %v801 = vadd.f32 %v712, %v800
    %802 = vmatmul.bf16.gmra.mxu0 %v249
    %v803 = vpop.f32.mrf.mxu0
    %v804 = vadd.f32 %v715, %v803
    %v805 = vpop.f32.mrf.mxu0
    %v806 = vadd.f32 %v717, %v805
    %807 = vmatmul.bf16.gmra.mxu0 %v253
    %v808 = vpop.f32.mrf.mxu0
    %v809 = vadd.f32 %v720, %v808
    %v810 = vpop.f32.mrf.mxu0
    %v811 = vadd.f32 %v722, %v810
    %812 = vmatmul.bf16.gmra.mxu0 %v257
    %v813 = vpop.f32.mrf.mxu0
    %v814 = vadd.f32 %v725, %v813
    %v815 = vpop.f32.mrf.mxu0
    %v816 = vadd.f32 %v727, %v815
    %817 = vmatmul.bf16.gmra.mxu0 %v261
    %v818 = vpop.f32.mrf.mxu0
    %v819 = vadd.f32 %v730, %v818
    %v820 = vpop.f32.mrf.mxu0
    %v821 = vadd.f32 %v732, %v820
    %822 = vmatmul.bf16.gmra.mxu0 %v265
    %v823 = vpop.f32.mrf.mxu0
    %v824 = vadd.f32 %v735, %v823
    %v825 = vpop.f32.mrf.mxu0
    %v826 = vadd.f32 %v737, %v825
    %827 = vmatmul.bf16.gmra.mxu0 %v269
    %v828 = vpop.f32.mrf.mxu0
    %v829 = vadd.f32 %v740, %v828
    %v830 = vpop.f32.mrf.mxu0
    %v831 = vadd.f32 %v742, %v830
    %832 = vmatmul.bf16.gmra.mxu0 %v273
    %v833 = vpop.f32.mrf.mxu0
    %v834 = vadd.f32 %v745, %v833
    %v835 = vpop.f32.mrf.mxu0
    %v836 = vadd.f32 %v747, %v835
    %837 = vdwg.mxu0
    %838 = vmatpush.bf16.msra.mxu0 %v578
    %839 = vmatpush.bf16.msra.mxu0 %v576
    %840 = vmatpush.bf16.msra.mxu0 %v574
    %841 = vmatpush.bf16.msra.mxu0 %v572
    %842 = vmatpush.bf16.msra.mxu0 %v570
    %843 = vmatpush.bf16.msra.mxu0 %v568
    %844 = vmatpush.bf16.msra.mxu0 %v566
    %845 = vmatpush.bf16.msra.mxu0 %v564
    %846 = vmatmul.bf16.gmra.mxu0 %v214
    %v847 = vpop.f32.mrf.mxu0
    %v848 = vadd.f32 %v759, %v847
    %v849 = vpop.f32.mrf.mxu0
    %v850 = vadd.f32 %v761, %v849
    %851 = vmatmul.bf16.gmra.mxu0 %v218
    %v852 = vpop.f32.mrf.mxu0
    %v853 = vadd.f32 %v764, %v852
    %v854 = vpop.f32.mrf.mxu0
    %v855 = vadd.f32 %v766, %v854
    %856 = vmatmul.bf16.gmra.mxu0 %v222
    %v857 = vpop.f32.mrf.mxu0
    %v858 = vadd.f32 %v769, %v857
    %v859 = vpop.f32.mrf.mxu0
    %v860 = vadd.f32 %v771, %v859
    %861 = vmatmul.bf16.gmra.mxu0 %v226
    %v862 = vpop.f32.mrf.mxu0
    %v863 = vadd.f32 %v774, %v862
    %v864 = vpop.f32.mrf.mxu0
    %v865 = vadd.f32 %v776, %v864
    %866 = vmatmul.bf16.gmra.mxu0 %v230
    %v867 = vpop.f32.mrf.mxu0
    %v868 = vadd.f32 %v779, %v867
    %v869 = vpop.f32.mrf.mxu0
    %v870 = vadd.f32 %v781, %v869
    %871 = vmatmul.bf16.gmra.mxu0 %v234
    %v872 = vpop.f32.mrf.mxu0
    %v873 = vadd.f32 %v784, %v872
    %v874 = vpop.f32.mrf.mxu0
    %v875 = vadd.f32 %v786, %v874
    %876 = vmatmul.bf16.gmra.mxu0 %v238
    %v877 = vpop.f32.mrf.mxu0
    %v878 = vadd.f32 %v789, %v877
    %v879 = vpop.f32.mrf.mxu0
    %v880 = vadd.f32 %v791, %v879
    %881 = vmatmul.bf16.gmra.mxu0 %v242
    %v882 = vpop.f32.mrf.mxu0
    %v883 = vadd.f32 %v794, %v882
    %v884 = vpop.f32.mrf.mxu0
    %v885 = vadd.f32 %v796, %v884
    %886 = vmatmul.bf16.gmra.mxu0 %v246
    %v887 = vpop.f32.mrf.mxu0
    %v888 = vadd.f32 %v799, %v887
    %v889 = vpop.f32.mrf.mxu0
    %v890 = vadd.f32 %v801, %v889
    %891 = vmatmul.bf16.gmra.mxu0 %v250
    %v892 = vpop.f32.mrf.mxu0
    %v893 = vadd.f32 %v804, %v892
    %v894 = vpop.f32.mrf.mxu0
    %v895 = vadd.f32 %v806, %v894
    %896 = vmatmul.bf16.gmra.mxu0 %v254
    %v897 = vpop.f32.mrf.mxu0
    %v898 = vadd.f32 %v809, %v897
    %v899 = vpop.f32.mrf.mxu0
    %v900 = vadd.f32 %v811, %v899
    %901 = vmatmul.bf16.gmra.mxu0 %v258
    %v902 = vpop.f32.mrf.mxu0
    %v903 = vadd.f32 %v814, %v902
    %v904 = vpop.f32.mrf.mxu0
    %v905 = vadd.f32 %v816, %v904
    %906 = vmatmul.bf16.gmra.mxu0 %v262
    %v907 = vpop.f32.mrf.mxu0
    %v908 = vadd.f32 %v819, %v907
    %v909 = vpop.f32.mrf.mxu0
    %v910 = vadd.f32 %v821, %v909
    %911 = vmatmul.bf16.gmra.mxu0 %v266
    %v912 = vpop.f32.mrf.mxu0
    %v913 = vadd.f32 %v824, %v912
    %v914 = vpop.f32.mrf.mxu0
    %v915 = vadd.f32 %v826, %v914
    %916 = vmatmul.bf16.gmra.mxu0 %v270
    %v917 = vpop.f32.mrf.mxu0
    %v918 = vadd.f32 %v829, %v917
    %v919 = vpop.f32.mrf.mxu0
    %v920 = vadd.f32 %v831, %v919
    %921 = vmatmul.bf16.gmra.mxu0 %v274
    %v922 = vpop.f32.mrf.mxu0
    %v923 = vadd.f32 %v834, %v922
    %v924 = vpop.f32.mrf.mxu0
    %v925 = vadd.f32 %v836, %v924
    %926 = vdwg.mxu0
    %927 = vmatpush.bf16.msra.mxu0 %v594
    %928 = vmatpush.bf16.msra.mxu0 %v592
    %929 = vmatpush.bf16.msra.mxu0 %v590
    %930 = vmatpush.bf16.msra.mxu0 %v588
    %931 = vmatpush.bf16.msra.mxu0 %v586
    %932 = vmatpush.bf16.msra.mxu0 %v584
    %933 = vmatpush.bf16.msra.mxu0 %v582
    %934 = vmatpush.bf16.msra.mxu0 %v580
    %935 = vmatmul.bf16.gmra.mxu0 %v215
    %v936 = vpop.f32.mrf.mxu0
    %v937 = vadd.f32 %v848, %v936
    %v938 = vpop.f32.mrf.mxu0
    %v939 = vadd.f32 %v850, %v938
    %940 = vmatmul.bf16.gmra.mxu0 %v219
    %v941 = vpop.f32.mrf.mxu0
    %v942 = vadd.f32 %v853, %v941
    %v943 = vpop.f32.mrf.mxu0
    %v944 = vadd.f32 %v855, %v943
    %945 = vmatmul.bf16.gmra.mxu0 %v223
    %v946 = vpop.f32.mrf.mxu0
    %v947 = vadd.f32 %v858, %v946
    %v948 = vpop.f32.mrf.mxu0
    %v949 = vadd.f32 %v860, %v948
    %950 = vmatmul.bf16.gmra.mxu0 %v227
    %v951 = vpop.f32.mrf.mxu0
    %v952 = vadd.f32 %v863, %v951
    %v953 = vpop.f32.mrf.mxu0
    %v954 = vadd.f32 %v865, %v953
    %955 = vmatmul.bf16.gmra.mxu0 %v231
    %v956 = vpop.f32.mrf.mxu0
    %v957 = vadd.f32 %v868, %v956
    %v958 = vpop.f32.mrf.mxu0
    %v959 = vadd.f32 %v870, %v958
    %960 = vmatmul.bf16.gmra.mxu0 %v235
    %v961 = vpop.f32.mrf.mxu0
    %v962 = vadd.f32 %v873, %v961
    %v963 = vpop.f32.mrf.mxu0
    %v964 = vadd.f32 %v875, %v963
    %965 = vmatmul.bf16.gmra.mxu0 %v239
    %v966 = vpop.f32.mrf.mxu0
    %v967 = vadd.f32 %v878, %v966
    %v968 = vpop.f32.mrf.mxu0
    %v969 = vadd.f32 %v880, %v968
    %970 = vmatmul.bf16.gmra.mxu0 %v243
    %v971 = vpop.f32.mrf.mxu0
    %v972 = vadd.f32 %v883, %v971
    %v973 = vpop.f32.mrf.mxu0
    %v974 = vadd.f32 %v885, %v973
    %975 = vmatmul.bf16.gmra.mxu0 %v247
    %v976 = vpop.f32.mrf.mxu0
    %v977 = vadd.f32 %v888, %v976
    %v978 = vpop.f32.mrf.mxu0
    %v979 = vadd.f32 %v890, %v978
    %980 = vmatmul.bf16.gmra.mxu0 %v251
    %v981 = vpop.f32.mrf.mxu0
    %v982 = vadd.f32 %v893, %v981
    %v983 = vpop.f32.mrf.mxu0
    %v984 = vadd.f32 %v895, %v983
    %985 = vmatmul.bf16.gmra.mxu0 %v255
    %v986 = vpop.f32.mrf.mxu0
    %v987 = vadd.f32 %v898, %v986
    %v988 = vpop.f32.mrf.mxu0
    %v989 = vadd.f32 %v900, %v988
    %990 = vmatmul.bf16.gmra.mxu0 %v259
    %v991 = vpop.f32.mrf.mxu0
    %v992 = vadd.f32 %v903, %v991
    %v993 = vpop.f32.mrf.mxu0
    %v994 = vadd.f32 %v905, %v993
    %995 = vmatmul.bf16.gmra.mxu0 %v263
    %v996 = vpop.f32.mrf.mxu0
    %v997 = vadd.f32 %v908, %v996
    %v998 = vpop.f32.mrf.mxu0
    %v999 = vadd.f32 %v910, %v998
    %1000 = vmatmul.bf16.gmra.mxu0 %v267
    %v1001 = vpop.f32.mrf.mxu0
    %v1002 = vadd.f32 %v913, %v1001
    %v1003 = vpop.f32.mrf.mxu0
    %v1004 = vadd.f32 %v915, %v1003
    %1005 = vmatmul.bf16.gmra.mxu0 %v271
    %v1006 = vpop.f32.mrf.mxu0
    %v1007 = vadd.f32 %v918, %v1006
    %v1008 = vpop.f32.mrf.mxu0
    %v1009 = vadd.f32 %v920, %v1008
    %1010 = vmatmul.bf16.gmra.mxu0 %v275
    %v1011 = vpop.f32.mrf.mxu0
    %v1012 = vadd.f32 %v923, %v1011
    %v1013 = vpop.f32.mrf.mxu0
    %v1014 = vadd.f32 %v925, %v1013
    %1015 = vdwg.mxu0
    %1016 = vmatpush.bf16.msra.mxu0 %v547
    %1017 = vmatpush.bf16.msra.mxu0 %v545
    %1018 = vmatpush.bf16.msra.mxu0 %v543
    %1019 = vmatpush.bf16.msra.mxu0 %v541
    %1020 = vmatpush.bf16.msra.mxu0 %v539
    %1021 = vmatpush.bf16.msra.mxu0 %v537
    %1022 = vmatpush.bf16.msra.mxu0 %v535
    %1023 = vmatpush.bf16.msra.mxu0 %v533
    %1024 = vmatmul.bf16.gmra.mxu0 %v212
    %v1025 = vpop.f32.mrf.mxu0
    %v1026 = vadd.f32 0.0, %v1025
    %v1027 = vpop.f32.mrf.mxu0
    %v1028 = vadd.f32 0.0, %v1027
    %1029 = vmatmul.bf16.gmra.mxu0 %v216
    %v1030 = vpop.f32.mrf.mxu0
    %v1031 = vadd.f32 0.0, %v1030
    %v1032 = vpop.f32.mrf.mxu0
    %v1033 = vadd.f32 0.0, %v1032
    %1034 = vmatmul.bf16.gmra.mxu0 %v220
    %v1035 = vpop.f32.mrf.mxu0
    %v1036 = vadd.f32 0.0, %v1035
    %v1037 = vpop.f32.mrf.mxu0
    %v1038 = vadd.f32 0.0, %v1037
    %1039 = vmatmul.bf16.gmra.mxu0 %v224
    %v1040 = vpop.f32.mrf.mxu0
    %v1041 = vadd.f32 0.0, %v1040
    %v1042 = vpop.f32.mrf.mxu0
    %v1043 = vadd.f32 0.0, %v1042
    %1044 = vmatmul.bf16.gmra.mxu0 %v228
    %v1045 = vpop.f32.mrf.mxu0
    %v1046 = vadd.f32 0.0, %v1045
    %v1047 = vpop.f32.mrf.mxu0
    %v1048 = vadd.f32 0.0, %v1047
    %1049 = vmatmul.bf16.gmra.mxu0 %v232
    %v1050 = vpop.f32.mrf.mxu0
    %v1051 = vadd.f32 0.0, %v1050
    %v1052 = vpop.f32.mrf.mxu0
    %v1053 = vadd.f32 0.0, %v1052
    %1054 = vmatmul.bf16.gmra.mxu0 %v236
    %v1055 = vpop.f32.mrf.mxu0
    %v1056 = vadd.f32 0.0, %v1055
    %v1057 = vpop.f32.mrf.mxu0
    %v1058 = vadd.f32 0.0, %v1057
    %1059 = vmatmul.bf16.gmra.mxu0 %v240
    %v1060 = vpop.f32.mrf.mxu0
    %v1061 = vadd.f32 0.0, %v1060
    %v1062 = vpop.f32.mrf.mxu0
    %v1063 = vadd.f32 0.0, %v1062
    %1064 = vmatmul.bf16.gmra.mxu0 %v244
    %v1065 = vpop.f32.mrf.mxu0
    %v1066 = vadd.f32 0.0, %v1065
    %v1067 = vpop.f32.mrf.mxu0
    %v1068 = vadd.f32 0.0, %v1067
    %1069 = vmatmul.bf16.gmra.mxu0 %v248
    %v1070 = vpop.f32.mrf.mxu0
    %v1071 = vadd.f32 0.0, %v1070
    %v1072 = vpop.f32.mrf.mxu0
    %v1073 = vadd.f32 0.0, %v1072
    %1074 = vmatmul.bf16.gmra.mxu0 %v252
    %v1075 = vpop.f32.mrf.mxu0
    %v1076 = vadd.f32 0.0, %v1075
    %v1077 = vpop.f32.mrf.mxu0
    %v1078 = vadd.f32 0.0, %v1077
    %1079 = vmatmul.bf16.gmra.mxu0 %v256
    %v1080 = vpop.f32.mrf.mxu0
    %v1081 = vadd.f32 0.0, %v1080
    %v1082 = vpop.f32.mrf.mxu0
    %v1083 = vadd.f32 0.0, %v1082
    %1084 = vmatmul.bf16.gmra.mxu0 %v260
    %v1085 = vpop.f32.mrf.mxu0
    %v1086 = vadd.f32 0.0, %v1085
    %v1087 = vpop.f32.mrf.mxu0
    %v1088 = vadd.f32 0.0, %v1087
    %1089 = vmatmul.bf16.gmra.mxu0 %v264
    %v1090 = vpop.f32.mrf.mxu0
    %v1091 = vadd.f32 0.0, %v1090
    %v1092 = vpop.f32.mrf.mxu0
    %v1093 = vadd.f32 0.0, %v1092
    %1094 = vmatmul.bf16.gmra.mxu0 %v268
    %v1095 = vpop.f32.mrf.mxu0
    %v1096 = vadd.f32 0.0, %v1095
    %v1097 = vpop.f32.mrf.mxu0
    %v1098 = vadd.f32 0.0, %v1097
    %1099 = vmatmul.bf16.gmra.mxu0 %v272
    %v1100 = vpop.f32.mrf.mxu0
    %v1101 = vadd.f32 0.0, %v1100
    %v1102 = vpop.f32.mrf.mxu0
    %v1103 = vadd.f32 0.0, %v1102
    %1104 = vdwg.mxu0
    %1105 = vmatpush.bf16.msra.mxu0 %v563
    %1106 = vmatpush.bf16.msra.mxu0 %v561
    %1107 = vmatpush.bf16.msra.mxu0 %v559
    %1108 = vmatpush.bf16.msra.mxu0 %v557
    %1109 = vmatpush.bf16.msra.mxu0 %v555
    %1110 = vmatpush.bf16.msra.mxu0 %v553
    %1111 = vmatpush.bf16.msra.mxu0 %v551
    %1112 = vmatpush.bf16.msra.mxu0 %v549
    %1113 = vmatmul.bf16.gmra.mxu0 %v213
    %v1114 = vpop.f32.mrf.mxu0
    %v1115 = vadd.f32 %v1026, %v1114
    %v1116 = vpop.f32.mrf.mxu0
    %v1117 = vadd.f32 %v1028, %v1116
    %1118 = vmatmul.bf16.gmra.mxu0 %v217
    %v1119 = vpop.f32.mrf.mxu0
    %v1120 = vadd.f32 %v1031, %v1119
    %v1121 = vpop.f32.mrf.mxu0
    %v1122 = vadd.f32 %v1033, %v1121
    %1123 = vmatmul.bf16.gmra.mxu0 %v221
    %v1124 = vpop.f32.mrf.mxu0
    %v1125 = vadd.f32 %v1036, %v1124
    %v1126 = vpop.f32.mrf.mxu0
    %v1127 = vadd.f32 %v1038, %v1126
    %1128 = vmatmul.bf16.gmra.mxu0 %v225
    %v1129 = vpop.f32.mrf.mxu0
    %v1130 = vadd.f32 %v1041, %v1129
    %v1131 = vpop.f32.mrf.mxu0
    %v1132 = vadd.f32 %v1043, %v1131
    %1133 = vmatmul.bf16.gmra.mxu0 %v229
    %v1134 = vpop.f32.mrf.mxu0
    %v1135 = vadd.f32 %v1046, %v1134
    %v1136 = vpop.f32.mrf.mxu0
    %v1137 = vadd.f32 %v1048, %v1136
    %1138 = vmatmul.bf16.gmra.mxu0 %v233
    %v1139 = vpop.f32.mrf.mxu0
    %v1140 = vadd.f32 %v1051, %v1139
    %v1141 = vpop.f32.mrf.mxu0
    %v1142 = vadd.f32 %v1053, %v1141
    %1143 = vmatmul.bf16.gmra.mxu0 %v237
    %v1144 = vpop.f32.mrf.mxu0
    %v1145 = vadd.f32 %v1056, %v1144
    %v1146 = vpop.f32.mrf.mxu0
    %v1147 = vadd.f32 %v1058, %v1146
    %1148 = vmatmul.bf16.gmra.mxu0 %v241
    %v1149 = vpop.f32.mrf.mxu0
    %v1150 = vadd.f32 %v1061, %v1149
    %v1151 = vpop.f32.mrf.mxu0
    %v1152 = vadd.f32 %v1063, %v1151
    %1153 = vmatmul.bf16.gmra.mxu0 %v245
    %v1154 = vpop.f32.mrf.mxu0
    %v1155 = vadd.f32 %v1066, %v1154
    %v1156 = vpop.f32.mrf.mxu0
    %v1157 = vadd.f32 %v1068, %v1156
    %1158 = vmatmul.bf16.gmra.mxu0 %v249
    %v1159 = vpop.f32.mrf.mxu0
    %v1160 = vadd.f32 %v1071, %v1159
    %v1161 = vpop.f32.mrf.mxu0
    %v1162 = vadd.f32 %v1073, %v1161
    %1163 = vmatmul.bf16.gmra.mxu0 %v253
    %v1164 = vpop.f32.mrf.mxu0
    %v1165 = vadd.f32 %v1076, %v1164
    %v1166 = vpop.f32.mrf.mxu0
    %v1167 = vadd.f32 %v1078, %v1166
    %1168 = vmatmul.bf16.gmra.mxu0 %v257
    %v1169 = vpop.f32.mrf.mxu0
    %v1170 = vadd.f32 %v1081, %v1169
    %v1171 = vpop.f32.mrf.mxu0
    %v1172 = vadd.f32 %v1083, %v1171
    %1173 = vmatmul.bf16.gmra.mxu0 %v261
    %v1174 = vpop.f32.mrf.mxu0
    %v1175 = vadd.f32 %v1086, %v1174
    %v1176 = vpop.f32.mrf.mxu0
    %v1177 = vadd.f32 %v1088, %v1176
    %1178 = vmatmul.bf16.gmra.mxu0 %v265
    %v1179 = vpop.f32.mrf.mxu0
    %v1180 = vadd.f32 %v1091, %v1179
    %v1181 = vpop.f32.mrf.mxu0
    %v1182 = vadd.f32 %v1093, %v1181
    %1183 = vmatmul.bf16.gmra.mxu0 %v269
    %v1184 = vpop.f32.mrf.mxu0
    %v1185 = vadd.f32 %v1096, %v1184
    %v1186 = vpop.f32.mrf.mxu0
    %v1187 = vadd.f32 %v1098, %v1186
    %1188 = vmatmul.bf16.gmra.mxu0 %v273
    %v1189 = vpop.f32.mrf.mxu0
    %v1190 = vadd.f32 %v1101, %v1189
    %v1191 = vpop.f32.mrf.mxu0
    %v1192 = vadd.f32 %v1103, %v1191
    %1193 = vdwg.mxu0
    %1194 = vmatpush.bf16.msra.mxu0 %v579
    %1195 = vmatpush.bf16.msra.mxu0 %v577
    %1196 = vmatpush.bf16.msra.mxu0 %v575
    %1197 = vmatpush.bf16.msra.mxu0 %v573
    %1198 = vmatpush.bf16.msra.mxu0 %v571
    %1199 = vmatpush.bf16.msra.mxu0 %v569
    %1200 = vmatpush.bf16.msra.mxu0 %v567
    %1201 = vmatpush.bf16.msra.mxu0 %v565
    %1202 = vmatmul.bf16.gmra.mxu0 %v214
    %v1203 = vpop.f32.mrf.mxu0
    %v1204 = vadd.f32 %v1115, %v1203
    %v1205 = vpop.f32.mrf.mxu0
    %v1206 = vadd.f32 %v1117, %v1205
    %1207 = vmatmul.bf16.gmra.mxu0 %v218
    %v1208 = vpop.f32.mrf.mxu0
    %v1209 = vadd.f32 %v1120, %v1208
    %v1210 = vpop.f32.mrf.mxu0
    %v1211 = vadd.f32 %v1122, %v1210
    %1212 = vmatmul.bf16.gmra.mxu0 %v222
    %v1213 = vpop.f32.mrf.mxu0
    %v1214 = vadd.f32 %v1125, %v1213
    %v1215 = vpop.f32.mrf.mxu0
    %v1216 = vadd.f32 %v1127, %v1215
    %1217 = vmatmul.bf16.gmra.mxu0 %v226
    %v1218 = vpop.f32.mrf.mxu0
    %v1219 = vadd.f32 %v1130, %v1218
    %v1220 = vpop.f32.mrf.mxu0
    %v1221 = vadd.f32 %v1132, %v1220
    %1222 = vmatmul.bf16.gmra.mxu0 %v230
    %v1223 = vpop.f32.mrf.mxu0
    %v1224 = vadd.f32 %v1135, %v1223
    %v1225 = vpop.f32.mrf.mxu0
    %v1226 = vadd.f32 %v1137, %v1225
    %1227 = vmatmul.bf16.gmra.mxu0 %v234
    %v1228 = vpop.f32.mrf.mxu0
    %v1229 = vadd.f32 %v1140, %v1228
    %v1230 = vpop.f32.mrf.mxu0
    %v1231 = vadd.f32 %v1142, %v1230
    %1232 = vmatmul.bf16.gmra.mxu0 %v238
    %v1233 = vpop.f32.mrf.mxu0
    %v1234 = vadd.f32 %v1145, %v1233
    %v1235 = vpop.f32.mrf.mxu0
    %v1236 = vadd.f32 %v1147, %v1235
    %1237 = vmatmul.bf16.gmra.mxu0 %v242
    %v1238 = vpop.f32.mrf.mxu0
    %v1239 = vadd.f32 %v1150, %v1238
    %v1240 = vpop.f32.mrf.mxu0
    %v1241 = vadd.f32 %v1152, %v1240
    %1242 = vmatmul.bf16.gmra.mxu0 %v246
    %v1243 = vpop.f32.mrf.mxu0
    %v1244 = vadd.f32 %v1155, %v1243
    %v1245 = vpop.f32.mrf.mxu0
    %v1246 = vadd.f32 %v1157, %v1245
    %1247 = vmatmul.bf16.gmra.mxu0 %v250
    %v1248 = vpop.f32.mrf.mxu0
    %v1249 = vadd.f32 %v1160, %v1248
    %v1250 = vpop.f32.mrf.mxu0
    %v1251 = vadd.f32 %v1162, %v1250
    %1252 = vmatmul.bf16.gmra.mxu0 %v254
    %v1253 = vpop.f32.mrf.mxu0
    %v1254 = vadd.f32 %v1165, %v1253
    %v1255 = vpop.f32.mrf.mxu0
    %v1256 = vadd.f32 %v1167, %v1255
    %1257 = vmatmul.bf16.gmra.mxu0 %v258
    %v1258 = vpop.f32.mrf.mxu0
    %v1259 = vadd.f32 %v1170, %v1258
    %v1260 = vpop.f32.mrf.mxu0
    %v1261 = vadd.f32 %v1172, %v1260
    %1262 = vmatmul.bf16.gmra.mxu0 %v262
    %v1263 = vpop.f32.mrf.mxu0
    %v1264 = vadd.f32 %v1175, %v1263
    %v1265 = vpop.f32.mrf.mxu0
    %v1266 = vadd.f32 %v1177, %v1265
    %1267 = vmatmul.bf16.gmra.mxu0 %v266
    %v1268 = vpop.f32.mrf.mxu0
    %v1269 = vadd.f32 %v1180, %v1268
    %v1270 = vpop.f32.mrf.mxu0
    %v1271 = vadd.f32 %v1182, %v1270
    %1272 = vmatmul.bf16.gmra.mxu0 %v270
    %v1273 = vpop.f32.mrf.mxu0
    %v1274 = vadd.f32 %v1185, %v1273
    %v1275 = vpop.f32.mrf.mxu0
    %v1276 = vadd.f32 %v1187, %v1275
    %1277 = vmatmul.bf16.gmra.mxu0 %v274
    %v1278 = vpop.f32.mrf.mxu0
    %v1279 = vadd.f32 %v1190, %v1278
    %v1280 = vpop.f32.mrf.mxu0
    %v1281 = vadd.f32 %v1192, %v1280
    %1282 = vdwg.mxu0
    %1283 = vmatpush.bf16.msra.mxu0 %v595
    %1284 = vmatpush.bf16.msra.mxu0 %v593
    %1285 = vmatpush.bf16.msra.mxu0 %v591
    %1286 = vmatpush.bf16.msra.mxu0 %v589
    %1287 = vmatpush.bf16.msra.mxu0 %v587
    %1288 = vmatpush.bf16.msra.mxu0 %v585
    %1289 = vmatpush.bf16.msra.mxu0 %v583
    %1290 = vmatpush.bf16.msra.mxu0 %v581
    %1291 = vmatmul.bf16.gmra.mxu0 %v215
    %v1292 = vpop.f32.mrf.mxu0
    %v1293 = vadd.f32 %v1204, %v1292
    %v1294 = vpop.f32.mrf.mxu0
    %v1295 = vadd.f32 %v1206, %v1294
    %1296 = vmatmul.bf16.gmra.mxu0 %v219
    %v1297 = vpop.f32.mrf.mxu0
    %v1298 = vadd.f32 %v1209, %v1297
    %v1299 = vpop.f32.mrf.mxu0
    %v1300 = vadd.f32 %v1211, %v1299
    %1301 = vmatmul.bf16.gmra.mxu0 %v223
    %v1302 = vpop.f32.mrf.mxu0
    %v1303 = vadd.f32 %v1214, %v1302
    %v1304 = vpop.f32.mrf.mxu0
    %v1305 = vadd.f32 %v1216, %v1304
    %1306 = vmatmul.bf16.gmra.mxu0 %v227
    %v1307 = vpop.f32.mrf.mxu0
    %v1308 = vadd.f32 %v1219, %v1307
    %v1309 = vpop.f32.mrf.mxu0
    %v1310 = vadd.f32 %v1221, %v1309
    %1311 = vmatmul.bf16.gmra.mxu0 %v231
    %v1312 = vpop.f32.mrf.mxu0
    %v1313 = vadd.f32 %v1224, %v1312
    %v1314 = vpop.f32.mrf.mxu0
    %v1315 = vadd.f32 %v1226, %v1314
    %1316 = vmatmul.bf16.gmra.mxu0 %v235
    %v1317 = vpop.f32.mrf.mxu0
    %v1318 = vadd.f32 %v1229, %v1317
    %v1319 = vpop.f32.mrf.mxu0
    %v1320 = vadd.f32 %v1231, %v1319
    %1321 = vmatmul.bf16.gmra.mxu0 %v239
    %v1322 = vpop.f32.mrf.mxu0
    %v1323 = vadd.f32 %v1234, %v1322
    %v1324 = vpop.f32.mrf.mxu0
    %v1325 = vadd.f32 %v1236, %v1324
    %1326 = vmatmul.bf16.gmra.mxu0 %v243
    %v1327 = vpop.f32.mrf.mxu0
    %v1328 = vadd.f32 %v1239, %v1327
    %v1329 = vpop.f32.mrf.mxu0
    %v1330 = vadd.f32 %v1241, %v1329
    %1331 = vmatmul.bf16.gmra.mxu0 %v247
    %v1332 = vpop.f32.mrf.mxu0
    %v1333 = vadd.f32 %v1244, %v1332
    %v1334 = vpop.f32.mrf.mxu0
    %v1335 = vadd.f32 %v1246, %v1334
    %1336 = vmatmul.bf16.gmra.mxu0 %v251
    %v1337 = vpop.f32.mrf.mxu0
    %v1338 = vadd.f32 %v1249, %v1337
    %v1339 = vpop.f32.mrf.mxu0
    %v1340 = vadd.f32 %v1251, %v1339
    %1341 = vmatmul.bf16.gmra.mxu0 %v255
    %v1342 = vpop.f32.mrf.mxu0
    %v1343 = vadd.f32 %v1254, %v1342
    %v1344 = vpop.f32.mrf.mxu0
    %v1345 = vadd.f32 %v1256, %v1344
    %1346 = vmatmul.bf16.gmra.mxu0 %v259
    %v1347 = vpop.f32.mrf.mxu0
    %v1348 = vadd.f32 %v1259, %v1347
    %v1349 = vpop.f32.mrf.mxu0
    %v1350 = vadd.f32 %v1261, %v1349
    %1351 = vmatmul.bf16.gmra.mxu0 %v263
    %v1352 = vpop.f32.mrf.mxu0
    %v1353 = vadd.f32 %v1264, %v1352
    %v1354 = vpop.f32.mrf.mxu0
    %v1355 = vadd.f32 %v1266, %v1354
    %1356 = vmatmul.bf16.gmra.mxu0 %v267
    %v1357 = vpop.f32.mrf.mxu0
    %v1358 = vadd.f32 %v1269, %v1357
    %v1359 = vpop.f32.mrf.mxu0
    %v1360 = vadd.f32 %v1271, %v1359
    %1361 = vmatmul.bf16.gmra.mxu0 %v271
    %v1362 = vpop.f32.mrf.mxu0
    %v1363 = vadd.f32 %v1274, %v1362
    %v1364 = vpop.f32.mrf.mxu0
    %v1365 = vadd.f32 %v1276, %v1364
    %1366 = vmatmul.bf16.gmra.mxu0 %v275
    %v1367 = vpop.f32.mrf.mxu0
    %v1368 = vadd.f32 %v1279, %v1367
    %v1369 = vpop.f32.mrf.mxu0
    %v1370 = vadd.f32 %v1281, %v1369
    %1371 = vdwg.mxu0
    %v1372 = vpack.c.bf16 %v1293, %v937
    %v1373 = vpack.c.bf16 %v1295, %v939
    %v1374 = vpack.c.bf16 %v1298, %v942
    %v1375 = vpack.c.bf16 %v1300, %v944
    %v1376 = vpack.c.bf16 %v1303, %v947
    %v1377 = vpack.c.bf16 %v1305, %v949
    %v1378 = vpack.c.bf16 %v1308, %v952
    %v1379 = vpack.c.bf16 %v1310, %v954
    %v1380 = vpack.c.bf16 %v1313, %v957
    %v1381 = vpack.c.bf16 %v1315, %v959
    %v1382 = vpack.c.bf16 %v1318, %v962
    %v1383 = vpack.c.bf16 %v1320, %v964
    %v1384 = vpack.c.bf16 %v1323, %v967
    %v1385 = vpack.c.bf16 %v1325, %v969
    %v1386 = vpack.c.bf16 %v1328, %v972
    %v1387 = vpack.c.bf16 %v1330, %v974
    %v1388 = vpack.c.bf16 %v1333, %v977
    %v1389 = vpack.c.bf16 %v1335, %v979
    %v1390 = vpack.c.bf16 %v1338, %v982
    %v1391 = vpack.c.bf16 %v1340, %v984
    %v1392 = vpack.c.bf16 %v1343, %v987
    %v1393 = vpack.c.bf16 %v1345, %v989
    %v1394 = vpack.c.bf16 %v1348, %v992
    %v1395 = vpack.c.bf16 %v1350, %v994
    %v1396 = vpack.c.bf16 %v1353, %v997
    %v1397 = vpack.c.bf16 %v1355, %v999
    %v1398 = vpack.c.bf16 %v1358, %v1002
    %v1399 = vpack.c.bf16 %v1360, %v1004
    %v1400 = vpack.c.bf16 %v1363, %v1007
    %v1401 = vpack.c.bf16 %v1365, %v1009
    %v1402 = vpack.c.bf16 %v1368, %v1012
    %v1403 = vpack.c.bf16 %v1370, %v1014
    %v1404 = vld [vmem:[%s3] sm:$0x3]
    %1406 = vst [vmem:[#allocation1] ss:$9 sm:$0xff] %v1404
    %v1407 = vld [vmem:[#allocation1] sm:$0xff]
    %v1408 = vld [vmem:[#allocation1 + $0x9] sm:$0xff]
    %v1443 = vunpack.c.l.b16 %v1372
    %v1444 = vunpack.c.h.b16 %v1372
    %v1445 = vunpack.c.l.b16 %v1373
    %v1446 = vunpack.c.h.b16 %v1373
    %v1447 = vunpack.c.l.b16 %v1374
    %v1448 = vunpack.c.h.b16 %v1374
    %v1449 = vunpack.c.l.b16 %v1375
    %v1450 = vunpack.c.h.b16 %v1375
    %v1451 = vunpack.c.l.b16 %v1376
    %v1452 = vunpack.c.h.b16 %v1376
    %v1453 = vunpack.c.l.b16 %v1377
    %v1454 = vunpack.c.h.b16 %v1377
    %v1455 = vunpack.c.l.b16 %v1378
    %v1456 = vunpack.c.h.b16 %v1378
    %v1457 = vunpack.c.l.b16 %v1379
    %v1458 = vunpack.c.h.b16 %v1379
    %v1459 = vunpack.c.l.b16 %v1380
    %v1460 = vunpack.c.h.b16 %v1380
    %v1461 = vunpack.c.l.b16 %v1381
    %v1462 = vunpack.c.h.b16 %v1381
    %v1463 = vunpack.c.l.b16 %v1382
    %v1464 = vunpack.c.h.b16 %v1382
    %v1465 = vunpack.c.l.b16 %v1383
    %v1466 = vunpack.c.h.b16 %v1383
    %v1467 = vunpack.c.l.b16 %v1384
    %v1468 = vunpack.c.h.b16 %v1384
    %v1469 = vunpack.c.l.b16 %v1385
    %v1470 = vunpack.c.h.b16 %v1385
    %v1471 = vunpack.c.l.b16 %v1386
    %v1472 = vunpack.c.h.b16 %v1386
    %v1473 = vunpack.c.l.b16 %v1387
    %v1474 = vunpack.c.h.b16 %v1387
    %v1475 = vunpack.c.l.b16 %v1388
    %v1476 = vunpack.c.h.b16 %v1388
    %v1477 = vunpack.c.l.b16 %v1389
    %v1478 = vunpack.c.h.b16 %v1389
    %v1479 = vunpack.c.l.b16 %v1390
    %v1480 = vunpack.c.h.b16 %v1390
    %v1481 = vunpack.c.l.b16 %v1391
    %v1482 = vunpack.c.h.b16 %v1391
    %v1483 = vunpack.c.l.b16 %v1392
    %v1484 = vunpack.c.h.b16 %v1392
    %v1485 = vunpack.c.l.b16 %v1393
    %v1486 = vunpack.c.h.b16 %v1393
    %v1487 = vunpack.c.l.b16 %v1394
    %v1488 = vunpack.c.h.b16 %v1394
    %v1489 = vunpack.c.l.b16 %v1395
    %v1490 = vunpack.c.h.b16 %v1395
    %v1491 = vunpack.c.l.b16 %v1396
    %v1492 = vunpack.c.h.b16 %v1396
    %v1493 = vunpack.c.l.b16 %v1397
    %v1494 = vunpack.c.h.b16 %v1397
    %v1495 = vunpack.c.l.b16 %v1398
    %v1496 = vunpack.c.h.b16 %v1398
    %v1497 = vunpack.c.l.b16 %v1399
    %v1498 = vunpack.c.h.b16 %v1399
    %v1499 = vunpack.c.l.b16 %v1400
    %v1500 = vunpack.c.h.b16 %v1400
    %v1501 = vunpack.c.l.b16 %v1401
    %v1502 = vunpack.c.h.b16 %v1401
    %v1503 = vunpack.c.l.b16 %v1402
    %v1504 = vunpack.c.h.b16 %v1402
    %v1505 = vunpack.c.l.b16 %v1403
    %v1506 = vunpack.c.h.b16 %v1403
    %v1507 = vpack.c.b16 %v1445, %v1443
    %v1508 = vpack.c.b16 %v1446, %v1444
    %v1509 = vpack.c.b16 %v1449, %v1447
    %v1510 = vpack.c.b16 %v1450, %v1448
    %v1511 = vpack.c.b16 %v1453, %v1451
    %v1512 = vpack.c.b16 %v1454, %v1452
    %v1513 = vpack.c.b16 %v1457, %v1455
    %v1514 = vpack.c.b16 %v1458, %v1456
    %v1515 = vpack.c.b16 %v1461, %v1459
    %v1516 = vpack.c.b16 %v1462, %v1460
    %v1517 = vpack.c.b16 %v1465, %v1463
    %v1518 = vpack.c.b16 %v1466, %v1464
    %v1519 = vpack.c.b16 %v1469, %v1467
    %v1520 = vpack.c.b16 %v1470, %v1468
    %v1521 = vpack.c.b16 %v1473, %v1471
    %v1522 = vpack.c.b16 %v1474, %v1472
    %v1523 = vpack.c.b16 %v1477, %v1475
    %v1524 = vpack.c.b16 %v1478, %v1476
    %v1525 = vpack.c.b16 %v1481, %v1479
    %v1526 = vpack.c.b16 %v1482, %v1480
    %v1527 = vpack.c.b16 %v1485, %v1483
    %v1528 = vpack.c.b16 %v1486, %v1484
    %v1529 = vpack.c.b16 %v1489, %v1487
    %v1530 = vpack.c.b16 %v1490, %v1488
    %v1531 = vpack.c.b16 %v1493, %v1491
    %v1532 = vpack.c.b16 %v1494, %v1492
    %v1533 = vpack.c.b16 %v1497, %v1495
    %v1534 = vpack.c.b16 %v1498, %v1496
    %v1535 = vpack.c.b16 %v1501, %v1499
    %v1536 = vpack.c.b16 %v1502, %v1500
    %v1537 = vpack.c.b16 %v1505, %v1503
    %v1538 = vpack.c.b16 %v1506, %v1504
    %1571 = vmatpush.bf16.xpose.msra.mxu0 %v1521
    %1572 = vmatpush.bf16.xpose.msra.mxu0 %v1519
    %1573 = vmatpush.bf16.xpose.msra.mxu0 %v1517
    %1574 = vmatpush.bf16.xpose.msra.mxu0 %v1515
    %1575 = vmatpush.bf16.xpose.msra.mxu0 %v1513
    %1576 = vmatpush.bf16.xpose.msra.mxu0 %v1511
    %1577 = vmatpush.bf16.xpose.msra.mxu0 %v1509
    %1578 = vmatpush.bf16.xpose.msra.mxu0 %v1507
    %1579 = vmatmul.bf16.gmra.mxu0 %v1407
    %v1580 = vpop.f32.mrf.mxu0
    %v1581 = vadd.f32 0.0, %v1580
    %v1582 = vpop.f32.mrf.mxu0
    %1583 = vdwg.mxu0
    %1584 = vmatpush.bf16.xpose.msra.mxu0 %v1522
    %1585 = vmatpush.bf16.xpose.msra.mxu0 %v1520
    %1586 = vmatpush.bf16.xpose.msra.mxu0 %v1518
    %1587 = vmatpush.bf16.xpose.msra.mxu0 %v1516
    %1588 = vmatpush.bf16.xpose.msra.mxu0 %v1514
    %1589 = vmatpush.bf16.xpose.msra.mxu0 %v1512
    %1590 = vmatpush.bf16.xpose.msra.mxu0 %v1510
    %1591 = vmatpush.bf16.xpose.msra.mxu0 %v1508
    %1592 = vmatmul.bf16.gmra.mxu0 %v1408
    %v1593 = vpop.f32.mrf.mxu0
    %v1594 = vadd.f32 %v1581, %v1593
    %v1595 = vpop.f32.mrf.mxu0
    %1596 = vdwg.mxu0
    %1597 = vmatpush.bf16.xpose.msra.mxu0 %v1537
    %1598 = vmatpush.bf16.xpose.msra.mxu0 %v1535
    %1599 = vmatpush.bf16.xpose.msra.mxu0 %v1533
    %1600 = vmatpush.bf16.xpose.msra.mxu0 %v1531
    %1601 = vmatpush.bf16.xpose.msra.mxu0 %v1529
    %1602 = vmatpush.bf16.xpose.msra.mxu0 %v1527
    %1603 = vmatpush.bf16.xpose.msra.mxu0 %v1525
    %1604 = vmatpush.bf16.xpose.msra.mxu0 %v1523
    %1605 = vmatmul.bf16.gmra.mxu0 %v1407
    %v1606 = vpop.f32.mrf.mxu0
    %v1607 = vadd.f32 0.0, %v1606
    %v1608 = vpop.f32.mrf.mxu0
    %1609 = vdwg.mxu0
    %1610 = vmatpush.bf16.xpose.msra.mxu0 %v1538
    %1611 = vmatpush.bf16.xpose.msra.mxu0 %v1536
    %1612 = vmatpush.bf16.xpose.msra.mxu0 %v1534
    %1613 = vmatpush.bf16.xpose.msra.mxu0 %v1532
    %1614 = vmatpush.bf16.xpose.msra.mxu0 %v1530
    %1615 = vmatpush.bf16.xpose.msra.mxu0 %v1528
    %1616 = vmatpush.bf16.xpose.msra.mxu0 %v1526
    %1617 = vmatpush.bf16.xpose.msra.mxu0 %v1524
    %1618 = vmatmul.bf16.gmra.mxu0 %v1408
    %v1619 = vpop.f32.mrf.mxu0
    %v1620 = vadd.f32 %v1607, %v1619
    %v1621 = vpop.f32.mrf.mxu0
    %1622 = vdwg.mxu0
    %v1623 = vld [vmem:[%s4] sm:$0xf]
    %v1624 = vld [vmem:[%s4 + $0x4] sm:$0xf]
    %v1625 = vld [vmem:[%s4 + $0x8] sm:$0xf]
    %v1626 = vld [vmem:[%s4 + $0xc] sm:$0xf]
    %v1627 = vld [vmem:[%s4 + $0x10] sm:$0xf]
    %v1628 = vld [vmem:[%s4 + $0x14] sm:$0xf]
    %v1629 = vld [vmem:[%s4 + $0x18] sm:$0xf]
    %v1630 = vld [vmem:[%s4 + $0x1c] sm:$0xf]
    %v1631 = vld [vmem:[%s4 + $0x20] sm:$0xf]
    %v1632 = vld [vmem:[%s4 + $0x24] sm:$0xf]
    %v1633 = vld [vmem:[%s4 + $0x28] sm:$0xf]
    %v1634 = vld [vmem:[%s4 + $0x2c] sm:$0xf]
    %v1635 = vld [vmem:[%s4 + $0x30] sm:$0xf]
    %v1636 = vld [vmem:[%s4 + $0x34] sm:$0xf]
    %v1637 = vld [vmem:[%s4 + $0x38] sm:$0xf]
    %v1638 = vld [vmem:[%s4 + $0x3c] sm:$0xf]
    %v1639 = vld [vmem:[%s4 + $0x40] sm:$0xf]
    %v1640 = vld [vmem:[%s4 + $0x44] sm:$0xf]
    %v1641 = vld [vmem:[%s4 + $0x48] sm:$0xf]
    %v1642 = vld [vmem:[%s4 + $0x4c] sm:$0xf]
    %v1643 = vld [vmem:[%s4 + $0x50] sm:$0xf]
    %v1644 = vld [vmem:[%s4 + $0x54] sm:$0xf]
    %v1645 = vld [vmem:[%s4 + $0x58] sm:$0xf]
    %v1646 = vld [vmem:[%s4 + $0x5c] sm:$0xf]
    %v1647 = vld [vmem:[%s4 + $0x60] sm:$0xf]
    %v1648 = vld [vmem:[%s4 + $0x64] sm:$0xf]
    %v1649 = vld [vmem:[%s4 + $0x68] sm:$0xf]
    %v1650 = vld [vmem:[%s4 + $0x6c] sm:$0xf]
    %v1651 = vld [vmem:[%s4 + $0x70] sm:$0xf]
    %v1652 = vld [vmem:[%s4 + $0x74] sm:$0xf]
    %v1653 = vld [vmem:[%s4 + $0x78] sm:$0xf]
    %v1654 = vld [vmem:[%s4 + $0x7c] sm:$0xf]
    %v1687 = vunpack.c.l.b16 %v1623
    %v1688 = vunpack.c.l.b16 %v1624
    %v1689 = vunpack.c.l.b16 %v1625
    %v1690 = vunpack.c.l.b16 %v1626
    %v1691 = vunpack.c.l.b16 %v1627
    %v1692 = vunpack.c.l.b16 %v1628
    %v1693 = vunpack.c.l.b16 %v1629
    %v1694 = vunpack.c.l.b16 %v1630
    %v1695 = vunpack.c.l.b16 %v1631
    %v1696 = vunpack.c.l.b16 %v1632
    %v1697 = vunpack.c.l.b16 %v1633
    %v1698 = vunpack.c.l.b16 %v1634
    %v1699 = vunpack.c.l.b16 %v1635
    %v1700 = vunpack.c.l.b16 %v1636
    %v1701 = vunpack.c.l.b16 %v1637
    %v1702 = vunpack.c.l.b16 %v1638
    %v1703 = vunpack.c.l.b16 %v1639
    %v1704 = vunpack.c.l.b16 %v1640
    %v1705 = vunpack.c.l.b16 %v1641
    %v1706 = vunpack.c.l.b16 %v1642
    %v1707 = vunpack.c.l.b16 %v1643
    %v1708 = vunpack.c.l.b16 %v1644
    %v1709 = vunpack.c.l.b16 %v1645
    %v1710 = vunpack.c.l.b16 %v1646
    %v1711 = vunpack.c.l.b16 %v1647
    %v1712 = vunpack.c.l.b16 %v1648
    %v1713 = vunpack.c.l.b16 %v1649
    %v1714 = vunpack.c.l.b16 %v1650
    %v1715 = vunpack.c.l.b16 %v1651
    %v1716 = vunpack.c.l.b16 %v1652
    %v1717 = vunpack.c.l.b16 %v1653
    %v1718 = vunpack.c.l.b16 %v1654
    %v1719 = vpack.c.b16 %v1688, %v1687
    %v1720 = vpack.c.b16 %v1690, %v1689
    %v1721 = vpack.c.b16 %v1692, %v1691
    %v1722 = vpack.c.b16 %v1694, %v1693
    %v1723 = vpack.c.b16 %v1696, %v1695
    %v1724 = vpack.c.b16 %v1698, %v1697
    %v1725 = vpack.c.b16 %v1700, %v1699
    %v1726 = vpack.c.b16 %v1702, %v1701
    %v1727 = vpack.c.b16 %v1704, %v1703
    %v1728 = vpack.c.b16 %v1706, %v1705
    %v1729 = vpack.c.b16 %v1708, %v1707
    %v1730 = vpack.c.b16 %v1710, %v1709
    %v1731 = vpack.c.b16 %v1712, %v1711
    %v1732 = vpack.c.b16 %v1714, %v1713
    %v1733 = vpack.c.b16 %v1716, %v1715
    %v1734 = vpack.c.b16 %v1718, %v1717
    %1751 = vmatpush.bf16.msra.mxu0 %v1726
    %1752 = vmatpush.bf16.msra.mxu0 %v1725
    %1753 = vmatpush.bf16.msra.mxu0 %v1724
    %1754 = vmatpush.bf16.msra.mxu0 %v1723
    %1755 = vmatpush.bf16.msra.mxu0 %v1722
    %1756 = vmatpush.bf16.msra.mxu0 %v1721
    %1757 = vmatpush.bf16.msra.mxu0 %v1720
    %1758 = vmatpush.bf16.msra.mxu0 %v1719
    %1759 = vmatmul.bf16.gmra.mxu0 %v1507
    %v1760 = vpop.f32.mrf.mxu0
    %v1761 = vadd.f32 0.0, %v1760
    %v1762 = vpop.f32.mrf.mxu0
    %v1763 = vadd.f32 0.0, %v1762
    %1764 = vmatmul.bf16.gmra.mxu0 %v1509
    %v1765 = vpop.f32.mrf.mxu0
    %v1766 = vadd.f32 0.0, %v1765
    %v1767 = vpop.f32.mrf.mxu0
    %v1768 = vadd.f32 0.0, %v1767
    %1769 = vmatmul.bf16.gmra.mxu0 %v1511
    %v1770 = vpop.f32.mrf.mxu0
    %v1771 = vadd.f32 0.0, %v1770
    %v1772 = vpop.f32.mrf.mxu0
    %v1773 = vadd.f32 0.0, %v1772
    %1774 = vmatmul.bf16.gmra.mxu0 %v1513
    %v1775 = vpop.f32.mrf.mxu0
    %v1776 = vadd.f32 0.0, %v1775
    %v1777 = vpop.f32.mrf.mxu0
    %v1778 = vadd.f32 0.0, %v1777
    %1779 = vmatmul.bf16.gmra.mxu0 %v1515
    %v1780 = vpop.f32.mrf.mxu0
    %v1781 = vadd.f32 0.0, %v1780
    %v1782 = vpop.f32.mrf.mxu0
    %v1783 = vadd.f32 0.0, %v1782
    %1784 = vmatmul.bf16.gmra.mxu0 %v1517
    %v1785 = vpop.f32.mrf.mxu0
    %v1786 = vadd.f32 0.0, %v1785
    %v1787 = vpop.f32.mrf.mxu0
    %v1788 = vadd.f32 0.0, %v1787
    %1789 = vmatmul.bf16.gmra.mxu0 %v1519
    %v1790 = vpop.f32.mrf.mxu0
    %v1791 = vadd.f32 0.0, %v1790
    %v1792 = vpop.f32.mrf.mxu0
    %v1793 = vadd.f32 0.0, %v1792
    %1794 = vmatmul.bf16.gmra.mxu0 %v1521
    %v1795 = vpop.f32.mrf.mxu0
    %v1796 = vadd.f32 0.0, %v1795
    %v1797 = vpop.f32.mrf.mxu0
    %v1798 = vadd.f32 0.0, %v1797
    %1799 = vmatmul.bf16.gmra.mxu0 %v1523
    %v1800 = vpop.f32.mrf.mxu0
    %v1801 = vadd.f32 0.0, %v1800
    %v1802 = vpop.f32.mrf.mxu0
    %v1803 = vadd.f32 0.0, %v1802
    %1804 = vmatmul.bf16.gmra.mxu0 %v1525
    %v1805 = vpop.f32.mrf.mxu0
    %v1806 = vadd.f32 0.0, %v1805
    %v1807 = vpop.f32.mrf.mxu0
    %v1808 = vadd.f32 0.0, %v1807
    %1809 = vmatmul.bf16.gmra.mxu0 %v1527
    %v1810 = vpop.f32.mrf.mxu0
    %v1811 = vadd.f32 0.0, %v1810
    %v1812 = vpop.f32.mrf.mxu0
    %v1813 = vadd.f32 0.0, %v1812
    %1814 = vmatmul.bf16.gmra.mxu0 %v1529
    %v1815 = vpop.f32.mrf.mxu0
    %v1816 = vadd.f32 0.0, %v1815
    %v1817 = vpop.f32.mrf.mxu0
    %v1818 = vadd.f32 0.0, %v1817
    %1819 = vmatmul.bf16.gmra.mxu0 %v1531
    %v1820 = vpop.f32.mrf.mxu0
    %v1821 = vadd.f32 0.0, %v1820
    %v1822 = vpop.f32.mrf.mxu0
    %v1823 = vadd.f32 0.0, %v1822
    %1824 = vmatmul.bf16.gmra.mxu0 %v1533
    %v1825 = vpop.f32.mrf.mxu0
    %v1826 = vadd.f32 0.0, %v1825
    %v1827 = vpop.f32.mrf.mxu0
    %v1828 = vadd.f32 0.0, %v1827
    %1829 = vmatmul.bf16.gmra.mxu0 %v1535
    %v1830 = vpop.f32.mrf.mxu0
    %v1831 = vadd.f32 0.0, %v1830
    %v1832 = vpop.f32.mrf.mxu0
    %v1833 = vadd.f32 0.0, %v1832
    %1834 = vmatmul.bf16.gmra.mxu0 %v1537
    %v1835 = vpop.f32.mrf.mxu0
    %v1836 = vadd.f32 0.0, %v1835
    %v1837 = vpop.f32.mrf.mxu0
    %v1838 = vadd.f32 0.0, %v1837
    %1839 = vdwg.mxu0
    %1840 = vmatpush.bf16.msra.mxu0 %v1734
    %1841 = vmatpush.bf16.msra.mxu0 %v1733
    %1842 = vmatpush.bf16.msra.mxu0 %v1732
    %1843 = vmatpush.bf16.msra.mxu0 %v1731
    %1844 = vmatpush.bf16.msra.mxu0 %v1730
    %1845 = vmatpush.bf16.msra.mxu0 %v1729
    %1846 = vmatpush.bf16.msra.mxu0 %v1728
    %1847 = vmatpush.bf16.msra.mxu0 %v1727
    %1848 = vmatmul.bf16.gmra.mxu0 %v1508
    %v1849 = vpop.f32.mrf.mxu0
    %v1850 = vadd.f32 %v1761, %v1849
    %v1851 = vpop.f32.mrf.mxu0
    %v1852 = vadd.f32 %v1763, %v1851
    %1853 = vmatmul.bf16.gmra.mxu0 %v1510
    %v1854 = vpop.f32.mrf.mxu0
    %v1855 = vadd.f32 %v1766, %v1854
    %v1856 = vpop.f32.mrf.mxu0
    %v1857 = vadd.f32 %v1768, %v1856
    %1858 = vmatmul.bf16.gmra.mxu0 %v1512
    %v1859 = vpop.f32.mrf.mxu0
    %v1860 = vadd.f32 %v1771, %v1859
    %v1861 = vpop.f32.mrf.mxu0
    %v1862 = vadd.f32 %v1773, %v1861
    %1863 = vmatmul.bf16.gmra.mxu0 %v1514
    %v1864 = vpop.f32.mrf.mxu0
    %v1865 = vadd.f32 %v1776, %v1864
    %v1866 = vpop.f32.mrf.mxu0
    %v1867 = vadd.f32 %v1778, %v1866
    %1868 = vmatmul.bf16.gmra.mxu0 %v1516
    %v1869 = vpop.f32.mrf.mxu0
    %v1870 = vadd.f32 %v1781, %v1869
    %v1871 = vpop.f32.mrf.mxu0
    %v1872 = vadd.f32 %v1783, %v1871
    %1873 = vmatmul.bf16.gmra.mxu0 %v1518
    %v1874 = vpop.f32.mrf.mxu0
    %v1875 = vadd.f32 %v1786, %v1874
    %v1876 = vpop.f32.mrf.mxu0
    %v1877 = vadd.f32 %v1788, %v1876
    %1878 = vmatmul.bf16.gmra.mxu0 %v1520
    %v1879 = vpop.f32.mrf.mxu0
    %v1880 = vadd.f32 %v1791, %v1879
    %v1881 = vpop.f32.mrf.mxu0
    %v1882 = vadd.f32 %v1793, %v1881
    %1883 = vmatmul.bf16.gmra.mxu0 %v1522
    %v1884 = vpop.f32.mrf.mxu0
    %v1885 = vadd.f32 %v1796, %v1884
    %v1886 = vpop.f32.mrf.mxu0
    %v1887 = vadd.f32 %v1798, %v1886
    %1888 = vmatmul.bf16.gmra.mxu0 %v1524
    %v1889 = vpop.f32.mrf.mxu0
    %v1890 = vadd.f32 %v1801, %v1889
    %v1891 = vpop.f32.mrf.mxu0
    %v1892 = vadd.f32 %v1803, %v1891
    %1893 = vmatmul.bf16.gmra.mxu0 %v1526
    %v1894 = vpop.f32.mrf.mxu0
    %v1895 = vadd.f32 %v1806, %v1894
    %v1896 = vpop.f32.mrf.mxu0
    %v1897 = vadd.f32 %v1808, %v1896
    %1898 = vmatmul.bf16.gmra.mxu0 %v1528
    %v1899 = vpop.f32.mrf.mxu0
    %v1900 = vadd.f32 %v1811, %v1899
    %v1901 = vpop.f32.mrf.mxu0
    %v1902 = vadd.f32 %v1813, %v1901
    %1903 = vmatmul.bf16.gmra.mxu0 %v1530
    %v1904 = vpop.f32.mrf.mxu0
    %v1905 = vadd.f32 %v1816, %v1904
    %v1906 = vpop.f32.mrf.mxu0
    %v1907 = vadd.f32 %v1818, %v1906
    %1908 = vmatmul.bf16.gmra.mxu0 %v1532
    %v1909 = vpop.f32.mrf.mxu0
    %v1910 = vadd.f32 %v1821, %v1909
    %v1911 = vpop.f32.mrf.mxu0
    %v1912 = vadd.f32 %v1823, %v1911
    %1913 = vmatmul.bf16.gmra.mxu0 %v1534
    %v1914 = vpop.f32.mrf.mxu0
    %v1915 = vadd.f32 %v1826, %v1914
    %v1916 = vpop.f32.mrf.mxu0
    %v1917 = vadd.f32 %v1828, %v1916
    %1918 = vmatmul.bf16.gmra.mxu0 %v1536
    %v1919 = vpop.f32.mrf.mxu0
    %v1920 = vadd.f32 %v1831, %v1919
    %v1921 = vpop.f32.mrf.mxu0
    %v1922 = vadd.f32 %v1833, %v1921
    %1923 = vmatmul.bf16.gmra.mxu0 %v1538
    %v1924 = vpop.f32.mrf.mxu0
    %v1925 = vadd.f32 %v1836, %v1924
    %v1926 = vpop.f32.mrf.mxu0
    %v1927 = vadd.f32 %v1838, %v1926
    %1928 = vdwg.mxu0
    %v1929 = vld [vmem:[%s1] sm:$0xff]
    %v1930 = vld [vmem:[%s1 + $0x8] sm:$0xff]
    %v1931 = vld [vmem:[%s1 + $0x10] sm:$0xff]
    %v1932 = vld [vmem:[%s1 + $0x18] sm:$0xff]
    %v1933 = vunpack.c.0.s8 %v1929
    %v1934 = vunpack.c.1.s8 %v1929
    %v1935 = vunpack.c.2.s8 %v1929
    %v1936 = vunpack.c.3.s8 %v1929
    %v1937 = vunpack.c.0.s8 %v1930
    %v1938 = vunpack.c.1.s8 %v1930
    %v1939 = vunpack.c.2.s8 %v1930
    %v1940 = vunpack.c.3.s8 %v1930
    %v1941 = vunpack.c.0.s8 %v1931
    %v1942 = vunpack.c.1.s8 %v1931
    %v1943 = vunpack.c.2.s8 %v1931
    %v1944 = vunpack.c.3.s8 %v1931
    %v1945 = vunpack.c.0.s8 %v1932
    %v1946 = vunpack.c.1.s8 %v1932
    %v1947 = vunpack.c.2.s8 %v1932
    %v1948 = vunpack.c.3.s8 %v1932
    %v1949 = vcvt.s32.f32 %v1933
    %v1950 = vcvt.s32.f32 %v1934
    %v1951 = vcvt.s32.f32 %v1935
    %v1952 = vcvt.s32.f32 %v1936
    %v1953 = vcvt.s32.f32 %v1937
    %v1954 = vcvt.s32.f32 %v1938
    %v1955 = vcvt.s32.f32 %v1939
    %v1956 = vcvt.s32.f32 %v1940
    %v1957 = vcvt.s32.f32 %v1941
    %v1958 = vcvt.s32.f32 %v1942
    %v1959 = vcvt.s32.f32 %v1943
    %v1960 = vcvt.s32.f32 %v1944
    %v1961 = vcvt.s32.f32 %v1945
    %v1962 = vcvt.s32.f32 %v1946
    %v1963 = vcvt.s32.f32 %v1947
    %v1964 = vcvt.s32.f32 %v1948
    %vm1965 = vcmp.gt.f32.partialorder %v1949, 0.0
    %vm1966 = vcmp.gt.f32.partialorder %v1950, 0.0
    %vm1967 = vcmp.gt.f32.partialorder %v1951, 0.0
    %vm1968 = vcmp.gt.f32.partialorder %v1952, 0.0
    %vm1969 = vcmp.gt.f32.partialorder %v1953, 0.0
    %vm1970 = vcmp.gt.f32.partialorder %v1954, 0.0
    %vm1971 = vcmp.gt.f32.partialorder %v1955, 0.0
    %vm1972 = vcmp.gt.f32.partialorder %v1956, 0.0
    %vm1973 = vcmp.gt.f32.partialorder %v1957, 0.0
    %vm1974 = vcmp.gt.f32.partialorder %v1958, 0.0
    %vm1975 = vcmp.gt.f32.partialorder %v1959, 0.0
    %vm1976 = vcmp.gt.f32.partialorder %v1960, 0.0
    %vm1977 = vcmp.gt.f32.partialorder %v1961, 0.0
    %vm1978 = vcmp.gt.f32.partialorder %v1962, 0.0
    %vm1979 = vcmp.gt.f32.partialorder %v1963, 0.0
    %vm1980 = vcmp.gt.f32.partialorder %v1964, 0.0
    %1982 = vset.pattern.permute.xlu0 0
    %1983 = vperm.xlu0 %1982, %v1850
    %v1984 = vpop.permute.xlu0 %1983
    %1987 = vset.pattern.permute.xlu0 0
    %1988 = vperm.xlu0 %1987, %v1852
    %v1989 = vpop.permute.xlu0 %1988
    %1992 = vset.pattern.permute.xlu0 0
    %1993 = vperm.xlu0 %1992, %v1855
    %v1994 = vpop.permute.xlu0 %1993
    %1997 = vset.pattern.permute.xlu0 0
    %1998 = vperm.xlu0 %1997, %v1857
    %v1999 = vpop.permute.xlu0 %1998
    %2002 = vset.pattern.permute.xlu0 0
    %2003 = vperm.xlu0 %2002, %v1860
    %v2004 = vpop.permute.xlu0 %2003
    %2007 = vset.pattern.permute.xlu0 0
    %2008 = vperm.xlu0 %2007, %v1862
    %v2009 = vpop.permute.xlu0 %2008
    %2012 = vset.pattern.permute.xlu0 0
    %2013 = vperm.xlu0 %2012, %v1865
    %v2014 = vpop.permute.xlu0 %2013
    %2017 = vset.pattern.permute.xlu0 0
    %2018 = vperm.xlu0 %2017, %v1867
    %v2019 = vpop.permute.xlu0 %2018
    %2022 = vset.pattern.permute.xlu0 0
    %2023 = vperm.xlu0 %2022, %v1870
    %v2024 = vpop.permute.xlu0 %2023
    %2027 = vset.pattern.permute.xlu0 0
    %2028 = vperm.xlu0 %2027, %v1872
    %v2029 = vpop.permute.xlu0 %2028
    %2032 = vset.pattern.permute.xlu0 0
    %2033 = vperm.xlu0 %2032, %v1875
    %v2034 = vpop.permute.xlu0 %2033
    %2037 = vset.pattern.permute.xlu0 0
    %2038 = vperm.xlu0 %2037, %v1877
    %v2039 = vpop.permute.xlu0 %2038
    %2042 = vset.pattern.permute.xlu0 0
    %2043 = vperm.xlu0 %2042, %v1880
    %v2044 = vpop.permute.xlu0 %2043
    %2047 = vset.pattern.permute.xlu0 0
    %2048 = vperm.xlu0 %2047, %v1882
    %v2049 = vpop.permute.xlu0 %2048
    %2052 = vset.pattern.permute.xlu0 0
    %2053 = vperm.xlu0 %2052, %v1885
    %v2054 = vpop.permute.xlu0 %2053
    %2057 = vset.pattern.permute.xlu0 0
    %2058 = vperm.xlu0 %2057, %v1887
    %v2059 = vpop.permute.xlu0 %2058
    %v2061 = vperm.slane %v1594, 0
    %v2062 = vadd.f32 %v1984, %v2061
    %v2063 = vadd.f32 %v1989, %v2061
    %v2064 = vadd.f32 %v1994, %v2061
    %v2065 = vadd.f32 %v1999, %v2061
    %v2066 = vadd.f32 %v2004, %v2061
    %v2067 = vadd.f32 %v2009, %v2061
    %v2068 = vadd.f32 %v2014, %v2061
    %v2069 = vadd.f32 %v2019, %v2061
    %v2070 = vadd.f32 %v2024, %v2061
    %v2071 = vadd.f32 %v2029, %v2061
    %v2072 = vadd.f32 %v2034, %v2061
    %v2073 = vadd.f32 %v2039, %v2061
    %v2074 = vadd.f32 %v2044, %v2061
    %v2075 = vadd.f32 %v2049, %v2061
    %v2076 = vadd.f32 %v2054, %v2061
    %v2077 = vadd.f32 %v2059, %v2061
    %vm2078 = vcmp.gt.f32.partialorder %v2062, 0.0
    %vm2079 = vcmp.gt.f32.partialorder %v2063, 0.0
    %vm2080 = vcmp.gt.f32.partialorder %v2064, 0.0
    %vm2081 = vcmp.gt.f32.partialorder %v2065, 0.0
    %vm2082 = vcmp.gt.f32.partialorder %v2066, 0.0
    %vm2083 = vcmp.gt.f32.partialorder %v2067, 0.0
    %vm2084 = vcmp.gt.f32.partialorder %v2068, 0.0
    %vm2085 = vcmp.gt.f32.partialorder %v2069, 0.0
    %vm2086 = vcmp.gt.f32.partialorder %v2070, 0.0
    %vm2087 = vcmp.gt.f32.partialorder %v2071, 0.0
    %vm2088 = vcmp.gt.f32.partialorder %v2072, 0.0
    %vm2089 = vcmp.gt.f32.partialorder %v2073, 0.0
    %vm2090 = vcmp.gt.f32.partialorder %v2074, 0.0
    %vm2091 = vcmp.gt.f32.partialorder %v2075, 0.0
    %vm2092 = vcmp.gt.f32.partialorder %v2076, 0.0
    %vm2093 = vcmp.gt.f32.partialorder %v2077, 0.0
    %v2094 = vmul.f32 %v2062, 0.2
    %v2095 = vmul.f32 %v2063, 0.2
    %v2096 = vmul.f32 %v2064, 0.2
    %v2097 = vmul.f32 %v2065, 0.2
    %v2098 = vmul.f32 %v2066, 0.2
    %v2099 = vmul.f32 %v2067, 0.2
    %v2100 = vmul.f32 %v2068, 0.2
    %v2101 = vmul.f32 %v2069, 0.2
    %v2102 = vmul.f32 %v2070, 0.2
    %v2103 = vmul.f32 %v2071, 0.2
    %v2104 = vmul.f32 %v2072, 0.2
    %v2105 = vmul.f32 %v2073, 0.2
    %v2106 = vmul.f32 %v2074, 0.2
    %v2107 = vmul.f32 %v2075, 0.2
    %v2108 = vmul.f32 %v2076, 0.2
    %v2109 = vmul.f32 %v2077, 0.2
    %v2110 = vsel %vm2078, %v2062, %v2094
    %v2111 = vsel %vm2079, %v2063, %v2095
    %v2112 = vsel %vm2080, %v2064, %v2096
    %v2113 = vsel %vm2081, %v2065, %v2097
    %v2114 = vsel %vm2082, %v2066, %v2098
    %v2115 = vsel %vm2083, %v2067, %v2099
    %v2116 = vsel %vm2084, %v2068, %v2100
    %v2117 = vsel %vm2085, %v2069, %v2101
    %v2118 = vsel %vm2086, %v2070, %v2102
    %v2119 = vsel %vm2087, %v2071, %v2103
    %v2120 = vsel %vm2088, %v2072, %v2104
    %v2121 = vsel %vm2089, %v2073, %v2105
    %v2122 = vsel %vm2090, %v2074, %v2106
    %v2123 = vsel %vm2091, %v2075, %v2107
    %v2124 = vsel %vm2092, %v2076, %v2108
    %v2125 = vsel %vm2093, %v2077, %v2109
    %v2126 = vsel %vm1965, %v2110, -1e+30
    %v2127 = vsel %vm1966, %v2111, -1e+30
    %v2128 = vsel %vm1967, %v2112, -1e+30
    %v2129 = vsel %vm1968, %v2113, -1e+30
    %v2130 = vsel %vm1969, %v2114, -1e+30
    %v2131 = vsel %vm1970, %v2115, -1e+30
    %v2132 = vsel %vm1971, %v2116, -1e+30
    %v2133 = vsel %vm1972, %v2117, -1e+30
    %v2134 = vsel %vm1973, %v2118, -1e+30
    %v2135 = vsel %vm1974, %v2119, -1e+30
    %v2136 = vsel %vm1975, %v2120, -1e+30
    %v2137 = vsel %vm1976, %v2121, -1e+30
    %v2138 = vsel %vm1977, %v2122, -1e+30
    %v2139 = vsel %vm1978, %v2123, -1e+30
    %v2140 = vsel %vm1979, %v2124, -1e+30
    %v2141 = vsel %vm1980, %v2125, -1e+30
    %2142 = vset.pattern.permute.xlu0 1
    %2143 = vperm.xlu0 %2142, %v1850
    %v2144 = vpop.permute.xlu0 %2143
    %2146 = vset.pattern.permute.xlu0 1
    %2147 = vperm.xlu0 %2146, %v1852
    %v2148 = vpop.permute.xlu0 %2147
    %2150 = vset.pattern.permute.xlu0 1
    %2151 = vperm.xlu0 %2150, %v1855
    %v2152 = vpop.permute.xlu0 %2151
    %2154 = vset.pattern.permute.xlu0 1
    %2155 = vperm.xlu0 %2154, %v1857
    %v2156 = vpop.permute.xlu0 %2155
    %2158 = vset.pattern.permute.xlu0 1
    %2159 = vperm.xlu0 %2158, %v1860
    %v2160 = vpop.permute.xlu0 %2159
    %2162 = vset.pattern.permute.xlu0 1
    %2163 = vperm.xlu0 %2162, %v1862
    %v2164 = vpop.permute.xlu0 %2163
    %2166 = vset.pattern.permute.xlu0 1
    %2167 = vperm.xlu0 %2166, %v1865
    %v2168 = vpop.permute.xlu0 %2167
    %2170 = vset.pattern.permute.xlu0 1
    %2171 = vperm.xlu0 %2170, %v1867
    %v2172 = vpop.permute.xlu0 %2171
    %2174 = vset.pattern.permute.xlu0 1
    %2175 = vperm.xlu0 %2174, %v1870
    %v2176 = vpop.permute.xlu0 %2175
    %2178 = vset.pattern.permute.xlu0 1
    %2179 = vperm.xlu0 %2178, %v1872
    %v2180 = vpop.permute.xlu0 %2179
    %2182 = vset.pattern.permute.xlu0 1
    %2183 = vperm.xlu0 %2182, %v1875
    %v2184 = vpop.permute.xlu0 %2183
    %2186 = vset.pattern.permute.xlu0 1
    %2187 = vperm.xlu0 %2186, %v1877
    %v2188 = vpop.permute.xlu0 %2187
    %2190 = vset.pattern.permute.xlu0 1
    %2191 = vperm.xlu0 %2190, %v1880
    %v2192 = vpop.permute.xlu0 %2191
    %2194 = vset.pattern.permute.xlu0 1
    %2195 = vperm.xlu0 %2194, %v1882
    %v2196 = vpop.permute.xlu0 %2195
    %2198 = vset.pattern.permute.xlu0 1
    %2199 = vperm.xlu0 %2198, %v1885
    %v2200 = vpop.permute.xlu0 %2199
    %2202 = vset.pattern.permute.xlu0 1
    %2203 = vperm.xlu0 %2202, %v1887
    %v2204 = vpop.permute.xlu0 %2203
    %v2206 = vperm.slane %v1594, 1
    %v2207 = vadd.f32 %v2144, %v2206
    %v2208 = vadd.f32 %v2148, %v2206
    %v2209 = vadd.f32 %v2152, %v2206
    %v2210 = vadd.f32 %v2156, %v2206
    %v2211 = vadd.f32 %v2160, %v2206
    %v2212 = vadd.f32 %v2164, %v2206
    %v2213 = vadd.f32 %v2168, %v2206
    %v2214 = vadd.f32 %v2172, %v2206
    %v2215 = vadd.f32 %v2176, %v2206
    %v2216 = vadd.f32 %v2180, %v2206
    %v2217 = vadd.f32 %v2184, %v2206
    %v2218 = vadd.f32 %v2188, %v2206
    %v2219 = vadd.f32 %v2192, %v2206
    %v2220 = vadd.f32 %v2196, %v2206
    %v2221 = vadd.f32 %v2200, %v2206
    %v2222 = vadd.f32 %v2204, %v2206
    %vm2223 = vcmp.gt.f32.partialorder %v2207, 0.0
    %vm2224 = vcmp.gt.f32.partialorder %v2208, 0.0
    %vm2225 = vcmp.gt.f32.partialorder %v2209, 0.0
    %vm2226 = vcmp.gt.f32.partialorder %v2210, 0.0
    %vm2227 = vcmp.gt.f32.partialorder %v2211, 0.0
    %vm2228 = vcmp.gt.f32.partialorder %v2212, 0.0
    %vm2229 = vcmp.gt.f32.partialorder %v2213, 0.0
    %vm2230 = vcmp.gt.f32.partialorder %v2214, 0.0
    %vm2231 = vcmp.gt.f32.partialorder %v2215, 0.0
    %vm2232 = vcmp.gt.f32.partialorder %v2216, 0.0
    %vm2233 = vcmp.gt.f32.partialorder %v2217, 0.0
    %vm2234 = vcmp.gt.f32.partialorder %v2218, 0.0
    %vm2235 = vcmp.gt.f32.partialorder %v2219, 0.0
    %vm2236 = vcmp.gt.f32.partialorder %v2220, 0.0
    %vm2237 = vcmp.gt.f32.partialorder %v2221, 0.0
    %vm2238 = vcmp.gt.f32.partialorder %v2222, 0.0
    %v2239 = vmul.f32 %v2207, 0.2
    %v2240 = vmul.f32 %v2208, 0.2
    %v2241 = vmul.f32 %v2209, 0.2
    %v2242 = vmul.f32 %v2210, 0.2
    %v2243 = vmul.f32 %v2211, 0.2
    %v2244 = vmul.f32 %v2212, 0.2
    %v2245 = vmul.f32 %v2213, 0.2
    %v2246 = vmul.f32 %v2214, 0.2
    %v2247 = vmul.f32 %v2215, 0.2
    %v2248 = vmul.f32 %v2216, 0.2
    %v2249 = vmul.f32 %v2217, 0.2
    %v2250 = vmul.f32 %v2218, 0.2
    %v2251 = vmul.f32 %v2219, 0.2
    %v2252 = vmul.f32 %v2220, 0.2
    %v2253 = vmul.f32 %v2221, 0.2
    %v2254 = vmul.f32 %v2222, 0.2
    %v2255 = vsel %vm2223, %v2207, %v2239
    %v2256 = vsel %vm2224, %v2208, %v2240
    %v2257 = vsel %vm2225, %v2209, %v2241
    %v2258 = vsel %vm2226, %v2210, %v2242
    %v2259 = vsel %vm2227, %v2211, %v2243
    %v2260 = vsel %vm2228, %v2212, %v2244
    %v2261 = vsel %vm2229, %v2213, %v2245
    %v2262 = vsel %vm2230, %v2214, %v2246
    %v2263 = vsel %vm2231, %v2215, %v2247
    %v2264 = vsel %vm2232, %v2216, %v2248
    %v2265 = vsel %vm2233, %v2217, %v2249
    %v2266 = vsel %vm2234, %v2218, %v2250
    %v2267 = vsel %vm2235, %v2219, %v2251
    %v2268 = vsel %vm2236, %v2220, %v2252
    %v2269 = vsel %vm2237, %v2221, %v2253
    %v2270 = vsel %vm2238, %v2222, %v2254
    %v2271 = vsel %vm1965, %v2255, -1e+30
    %v2272 = vsel %vm1966, %v2256, -1e+30
    %v2273 = vsel %vm1967, %v2257, -1e+30
    %v2274 = vsel %vm1968, %v2258, -1e+30
    %v2275 = vsel %vm1969, %v2259, -1e+30
    %v2276 = vsel %vm1970, %v2260, -1e+30
    %v2277 = vsel %vm1971, %v2261, -1e+30
    %v2278 = vsel %vm1972, %v2262, -1e+30
    %v2279 = vsel %vm1973, %v2263, -1e+30
    %v2280 = vsel %vm1974, %v2264, -1e+30
    %v2281 = vsel %vm1975, %v2265, -1e+30
    %v2282 = vsel %vm1976, %v2266, -1e+30
    %v2283 = vsel %vm1977, %v2267, -1e+30
    %v2284 = vsel %vm1978, %v2268, -1e+30
    %v2285 = vsel %vm1979, %v2269, -1e+30
    %v2286 = vsel %vm1980, %v2270, -1e+30
    %2287 = vmax.xlane.f32.xlu0 %v2126
    %v2288 = vpop.xlane.xlu0 %2287
    %2289 = vmax.xlane.f32.xlu0 %v2127
    %v2290 = vpop.xlane.xlu0 %2289
    %2291 = vmax.xlane.f32.xlu0 %v2128
    %v2292 = vpop.xlane.xlu0 %2291
    %2293 = vmax.xlane.f32.xlu0 %v2129
    %v2294 = vpop.xlane.xlu0 %2293
    %2295 = vmax.xlane.f32.xlu0 %v2130
    %v2296 = vpop.xlane.xlu0 %2295
    %2297 = vmax.xlane.f32.xlu0 %v2131
    %v2298 = vpop.xlane.xlu0 %2297
    %2299 = vmax.xlane.f32.xlu0 %v2132
    %v2300 = vpop.xlane.xlu0 %2299
    %2301 = vmax.xlane.f32.xlu0 %v2133
    %v2302 = vpop.xlane.xlu0 %2301
    %2303 = vmax.xlane.f32.xlu0 %v2134
    %v2304 = vpop.xlane.xlu0 %2303
    %2305 = vmax.xlane.f32.xlu0 %v2135
    %v2306 = vpop.xlane.xlu0 %2305
    %2307 = vmax.xlane.f32.xlu0 %v2136
    %v2308 = vpop.xlane.xlu0 %2307
    %2309 = vmax.xlane.f32.xlu0 %v2137
    %v2310 = vpop.xlane.xlu0 %2309
    %2311 = vmax.xlane.f32.xlu0 %v2138
    %v2312 = vpop.xlane.xlu0 %2311
    %2313 = vmax.xlane.f32.xlu0 %v2139
    %v2314 = vpop.xlane.xlu0 %2313
    %2315 = vmax.xlane.f32.xlu0 %v2140
    %v2316 = vpop.xlane.xlu0 %2315
    %2317 = vmax.xlane.f32.xlu0 %v2141
    %v2318 = vpop.xlane.xlu0 %2317
    %2319 = vmax.xlane.f32.xlu0 %v2271
    %v2320 = vpop.xlane.xlu0 %2319
    %2321 = vmax.xlane.f32.xlu0 %v2272
    %v2322 = vpop.xlane.xlu0 %2321
    %2323 = vmax.xlane.f32.xlu0 %v2273
    %v2324 = vpop.xlane.xlu0 %2323
    %2325 = vmax.xlane.f32.xlu0 %v2274
    %v2326 = vpop.xlane.xlu0 %2325
    %2327 = vmax.xlane.f32.xlu0 %v2275
    %v2328 = vpop.xlane.xlu0 %2327
    %2329 = vmax.xlane.f32.xlu0 %v2276
    %v2330 = vpop.xlane.xlu0 %2329
    %2331 = vmax.xlane.f32.xlu0 %v2277
    %v2332 = vpop.xlane.xlu0 %2331
    %2333 = vmax.xlane.f32.xlu0 %v2278
    %v2334 = vpop.xlane.xlu0 %2333
    %2335 = vmax.xlane.f32.xlu0 %v2279
    %v2336 = vpop.xlane.xlu0 %2335
    %2337 = vmax.xlane.f32.xlu0 %v2280
    %v2338 = vpop.xlane.xlu0 %2337
    %2339 = vmax.xlane.f32.xlu0 %v2281
    %v2340 = vpop.xlane.xlu0 %2339
    %2341 = vmax.xlane.f32.xlu0 %v2282
    %v2342 = vpop.xlane.xlu0 %2341
    %2343 = vmax.xlane.f32.xlu0 %v2283
    %v2344 = vpop.xlane.xlu0 %2343
    %2345 = vmax.xlane.f32.xlu0 %v2284
    %v2346 = vpop.xlane.xlu0 %2345
    %2347 = vmax.xlane.f32.xlu0 %v2285
    %v2348 = vpop.xlane.xlu0 %2347
    %2349 = vmax.xlane.f32.xlu0 %v2286
    %v2350 = vpop.xlane.xlu0 %2349
    %v2351 = vsub.f32 %v2126, %v2288
    %v2352 = vsub.f32 %v2127, %v2290
    %v2353 = vsub.f32 %v2128, %v2292
    %v2354 = vsub.f32 %v2129, %v2294
    %v2355 = vsub.f32 %v2130, %v2296
    %v2356 = vsub.f32 %v2131, %v2298
    %v2357 = vsub.f32 %v2132, %v2300
    %v2358 = vsub.f32 %v2133, %v2302
    %v2359 = vsub.f32 %v2134, %v2304
    %v2360 = vsub.f32 %v2135, %v2306
    %v2361 = vsub.f32 %v2136, %v2308
    %v2362 = vsub.f32 %v2137, %v2310
    %v2363 = vsub.f32 %v2138, %v2312
    %v2364 = vsub.f32 %v2139, %v2314
    %v2365 = vsub.f32 %v2140, %v2316
    %v2366 = vsub.f32 %v2141, %v2318
    %v2367 = vsub.f32 %v2271, %v2320
    %v2368 = vsub.f32 %v2272, %v2322
    %v2369 = vsub.f32 %v2273, %v2324
    %v2370 = vsub.f32 %v2274, %v2326
    %v2371 = vsub.f32 %v2275, %v2328
    %v2372 = vsub.f32 %v2276, %v2330
    %v2373 = vsub.f32 %v2277, %v2332
    %v2374 = vsub.f32 %v2278, %v2334
    %v2375 = vsub.f32 %v2279, %v2336
    %v2376 = vsub.f32 %v2280, %v2338
    %v2377 = vsub.f32 %v2281, %v2340
    %v2378 = vsub.f32 %v2282, %v2342
    %v2379 = vsub.f32 %v2283, %v2344
    %v2380 = vsub.f32 %v2284, %v2346
    %v2381 = vsub.f32 %v2285, %v2348
    %v2382 = vsub.f32 %v2286, %v2350
    %v2383 = vmul.f32 %v2351, 1.442695
    %v2384 = vpow.pop %v2383
    %v2385 = vmul.f32 %v2352, 1.442695
    %v2386 = vpow.pop %v2385
    %v2387 = vmul.f32 %v2353, 1.442695
    %v2388 = vpow.pop %v2387
    %v2389 = vmul.f32 %v2354, 1.442695
    %v2390 = vpow.pop %v2389
    %v2391 = vmul.f32 %v2355, 1.442695
    %v2392 = vpow.pop %v2391
    %v2393 = vmul.f32 %v2356, 1.442695
    %v2394 = vpow.pop %v2393
    %v2395 = vmul.f32 %v2357, 1.442695
    %v2396 = vpow.pop %v2395
    %v2397 = vmul.f32 %v2358, 1.442695
    %v2398 = vpow.pop %v2397
    %v2399 = vmul.f32 %v2359, 1.442695
    %v2400 = vpow.pop %v2399
    %v2401 = vmul.f32 %v2360, 1.442695
    %v2402 = vpow.pop %v2401
    %v2403 = vmul.f32 %v2361, 1.442695
    %v2404 = vpow.pop %v2403
    %v2405 = vmul.f32 %v2362, 1.442695
    %v2406 = vpow.pop %v2405
    %v2407 = vmul.f32 %v2363, 1.442695
    %v2408 = vpow.pop %v2407
    %v2409 = vmul.f32 %v2364, 1.442695
    %v2410 = vpow.pop %v2409
    %v2411 = vmul.f32 %v2365, 1.442695
    %v2412 = vpow.pop %v2411
    %v2413 = vmul.f32 %v2366, 1.442695
    %v2414 = vpow.pop %v2413
    %v2415 = vmul.f32 %v2367, 1.442695
    %v2416 = vpow.pop %v2415
    %v2417 = vmul.f32 %v2368, 1.442695
    %v2418 = vpow.pop %v2417
    %v2419 = vmul.f32 %v2369, 1.442695
    %v2420 = vpow.pop %v2419
    %v2421 = vmul.f32 %v2370, 1.442695
    %v2422 = vpow.pop %v2421
    %v2423 = vmul.f32 %v2371, 1.442695
    %v2424 = vpow.pop %v2423
    %v2425 = vmul.f32 %v2372, 1.442695
    %v2426 = vpow.pop %v2425
    %v2427 = vmul.f32 %v2373, 1.442695
    %v2428 = vpow.pop %v2427
    %v2429 = vmul.f32 %v2374, 1.442695
    %v2430 = vpow.pop %v2429
    %v2431 = vmul.f32 %v2375, 1.442695
    %v2432 = vpow.pop %v2431
    %v2433 = vmul.f32 %v2376, 1.442695
    %v2434 = vpow.pop %v2433
    %v2435 = vmul.f32 %v2377, 1.442695
    %v2436 = vpow.pop %v2435
    %v2437 = vmul.f32 %v2378, 1.442695
    %v2438 = vpow.pop %v2437
    %v2439 = vmul.f32 %v2379, 1.442695
    %v2440 = vpow.pop %v2439
    %v2441 = vmul.f32 %v2380, 1.442695
    %v2442 = vpow.pop %v2441
    %v2443 = vmul.f32 %v2381, 1.442695
    %v2444 = vpow.pop %v2443
    %v2445 = vmul.f32 %v2382, 1.442695
    %v2446 = vpow.pop %v2445
    %2447 = vadd.xlane.f32.xlu0 %v2384
    %v2448 = vpop.xlane.xlu0 %2447
    %2449 = vadd.xlane.f32.xlu0 %v2386
    %v2450 = vpop.xlane.xlu0 %2449
    %2451 = vadd.xlane.f32.xlu0 %v2388
    %v2452 = vpop.xlane.xlu0 %2451
    %2453 = vadd.xlane.f32.xlu0 %v2390
    %v2454 = vpop.xlane.xlu0 %2453
    %2455 = vadd.xlane.f32.xlu0 %v2392
    %v2456 = vpop.xlane.xlu0 %2455
    %2457 = vadd.xlane.f32.xlu0 %v2394
    %v2458 = vpop.xlane.xlu0 %2457
    %2459 = vadd.xlane.f32.xlu0 %v2396
    %v2460 = vpop.xlane.xlu0 %2459
    %2461 = vadd.xlane.f32.xlu0 %v2398
    %v2462 = vpop.xlane.xlu0 %2461
    %2463 = vadd.xlane.f32.xlu0 %v2400
    %v2464 = vpop.xlane.xlu0 %2463
    %2465 = vadd.xlane.f32.xlu0 %v2402
    %v2466 = vpop.xlane.xlu0 %2465
    %2467 = vadd.xlane.f32.xlu0 %v2404
    %v2468 = vpop.xlane.xlu0 %2467
    %2469 = vadd.xlane.f32.xlu0 %v2406
    %v2470 = vpop.xlane.xlu0 %2469
    %2471 = vadd.xlane.f32.xlu0 %v2408
    %v2472 = vpop.xlane.xlu0 %2471
    %2473 = vadd.xlane.f32.xlu0 %v2410
    %v2474 = vpop.xlane.xlu0 %2473
    %2475 = vadd.xlane.f32.xlu0 %v2412
    %v2476 = vpop.xlane.xlu0 %2475
    %2477 = vadd.xlane.f32.xlu0 %v2414
    %v2478 = vpop.xlane.xlu0 %2477
    %2479 = vadd.xlane.f32.xlu0 %v2416
    %v2480 = vpop.xlane.xlu0 %2479
    %2481 = vadd.xlane.f32.xlu0 %v2418
    %v2482 = vpop.xlane.xlu0 %2481
    %2483 = vadd.xlane.f32.xlu0 %v2420
    %v2484 = vpop.xlane.xlu0 %2483
    %2485 = vadd.xlane.f32.xlu0 %v2422
    %v2486 = vpop.xlane.xlu0 %2485
    %2487 = vadd.xlane.f32.xlu0 %v2424
    %v2488 = vpop.xlane.xlu0 %2487
    %2489 = vadd.xlane.f32.xlu0 %v2426
    %v2490 = vpop.xlane.xlu0 %2489
    %2491 = vadd.xlane.f32.xlu0 %v2428
    %v2492 = vpop.xlane.xlu0 %2491
    %2493 = vadd.xlane.f32.xlu0 %v2430
    %v2494 = vpop.xlane.xlu0 %2493
    %2495 = vadd.xlane.f32.xlu0 %v2432
    %v2496 = vpop.xlane.xlu0 %2495
    %2497 = vadd.xlane.f32.xlu0 %v2434
    %v2498 = vpop.xlane.xlu0 %2497
    %2499 = vadd.xlane.f32.xlu0 %v2436
    %v2500 = vpop.xlane.xlu0 %2499
    %2501 = vadd.xlane.f32.xlu0 %v2438
    %v2502 = vpop.xlane.xlu0 %2501
    %2503 = vadd.xlane.f32.xlu0 %v2440
    %v2504 = vpop.xlane.xlu0 %2503
    %2505 = vadd.xlane.f32.xlu0 %v2442
    %v2506 = vpop.xlane.xlu0 %2505
    %2507 = vadd.xlane.f32.xlu0 %v2444
    %v2508 = vpop.xlane.xlu0 %2507
    %2509 = vadd.xlane.f32.xlu0 %v2446
    %v2510 = vpop.xlane.xlu0 %2509
    %v2511 = vrcp.pop %v2448
    %v2512 = vrcp.pop %v2450
    %v2513 = vrcp.pop %v2452
    %v2514 = vrcp.pop %v2454
    %v2515 = vrcp.pop %v2456
    %v2516 = vrcp.pop %v2458
    %v2517 = vrcp.pop %v2460
    %v2518 = vrcp.pop %v2462
    %v2519 = vrcp.pop %v2464
    %v2520 = vrcp.pop %v2466
    %v2521 = vrcp.pop %v2468
    %v2522 = vrcp.pop %v2470
    %v2523 = vrcp.pop %v2472
    %v2524 = vrcp.pop %v2474
    %v2525 = vrcp.pop %v2476
    %v2526 = vrcp.pop %v2478
    %v2527 = vrcp.pop %v2480
    %v2528 = vrcp.pop %v2482
    %v2529 = vrcp.pop %v2484
    %v2530 = vrcp.pop %v2486
    %v2531 = vrcp.pop %v2488
    %v2532 = vrcp.pop %v2490
    %v2533 = vrcp.pop %v2492
    %v2534 = vrcp.pop %v2494
    %v2535 = vrcp.pop %v2496
    %v2536 = vrcp.pop %v2498
    %v2537 = vrcp.pop %v2500
    %v2538 = vrcp.pop %v2502
    %v2539 = vrcp.pop %v2504
    %v2540 = vrcp.pop %v2506
    %v2541 = vrcp.pop %v2508
    %v2542 = vrcp.pop %v2510
    %v2543 = vmul.f32 %v2384, %v2511
    %v2544 = vmul.f32 %v2386, %v2512
    %v2545 = vmul.f32 %v2388, %v2513
    %v2546 = vmul.f32 %v2390, %v2514
    %v2547 = vmul.f32 %v2392, %v2515
    %v2548 = vmul.f32 %v2394, %v2516
    %v2549 = vmul.f32 %v2396, %v2517
    %v2550 = vmul.f32 %v2398, %v2518
    %v2551 = vmul.f32 %v2400, %v2519
    %v2552 = vmul.f32 %v2402, %v2520
    %v2553 = vmul.f32 %v2404, %v2521
    %v2554 = vmul.f32 %v2406, %v2522
    %v2555 = vmul.f32 %v2408, %v2523
    %v2556 = vmul.f32 %v2410, %v2524
    %v2557 = vmul.f32 %v2412, %v2525
    %v2558 = vmul.f32 %v2414, %v2526
    %v2559 = vmul.f32 %v2416, %v2527
    %v2560 = vmul.f32 %v2418, %v2528
    %v2561 = vmul.f32 %v2420, %v2529
    %v2562 = vmul.f32 %v2422, %v2530
    %v2563 = vmul.f32 %v2424, %v2531
    %v2564 = vmul.f32 %v2426, %v2532
    %v2565 = vmul.f32 %v2428, %v2533
    %v2566 = vmul.f32 %v2430, %v2534
    %v2567 = vmul.f32 %v2432, %v2535
    %v2568 = vmul.f32 %v2434, %v2536
    %v2569 = vmul.f32 %v2436, %v2537
    %v2570 = vmul.f32 %v2438, %v2538
    %v2571 = vmul.f32 %v2440, %v2539
    %v2572 = vmul.f32 %v2442, %v2540
    %v2573 = vmul.f32 %v2444, %v2541
    %v2574 = vmul.f32 %v2446, %v2542
    %v2575 = vpack.c.bf16 %v2543, %v2543
    %v2576 = vpack.c.bf16 %v2544, %v2544
    %v2577 = vpack.c.bf16 %v2545, %v2545
    %v2578 = vpack.c.bf16 %v2546, %v2546
    %v2579 = vpack.c.bf16 %v2547, %v2547
    %v2580 = vpack.c.bf16 %v2548, %v2548
    %v2581 = vpack.c.bf16 %v2549, %v2549
    %v2582 = vpack.c.bf16 %v2550, %v2550
    %v2583 = vpack.c.bf16 %v2551, %v2551
    %v2584 = vpack.c.bf16 %v2552, %v2552
    %v2585 = vpack.c.bf16 %v2553, %v2553
    %v2586 = vpack.c.bf16 %v2554, %v2554
    %v2587 = vpack.c.bf16 %v2555, %v2555
    %v2588 = vpack.c.bf16 %v2556, %v2556
    %v2589 = vpack.c.bf16 %v2557, %v2557
    %v2590 = vpack.c.bf16 %v2558, %v2558
    %v2591 = vpack.c.bf16 %v2559, %v2559
    %v2592 = vpack.c.bf16 %v2560, %v2560
    %v2593 = vpack.c.bf16 %v2561, %v2561
    %v2594 = vpack.c.bf16 %v2562, %v2562
    %v2595 = vpack.c.bf16 %v2563, %v2563
    %v2596 = vpack.c.bf16 %v2564, %v2564
    %v2597 = vpack.c.bf16 %v2565, %v2565
    %v2598 = vpack.c.bf16 %v2566, %v2566
    %v2599 = vpack.c.bf16 %v2567, %v2567
    %v2600 = vpack.c.bf16 %v2568, %v2568
    %v2601 = vpack.c.bf16 %v2569, %v2569
    %v2602 = vpack.c.bf16 %v2570, %v2570
    %v2603 = vpack.c.bf16 %v2571, %v2571
    %v2604 = vpack.c.bf16 %v2572, %v2572
    %v2605 = vpack.c.bf16 %v2573, %v2573
    %v2606 = vpack.c.bf16 %v2574, %v2574
    %v2607 = vld [vmem:[%s5] sm:$0x1]
    %v2609 = vperm.slane %v2607, 0
    %v2627 = vunpack.c.l.b16 %v2575
    %v2628 = vunpack.c.l.b16 %v2576
    %v2629 = vunpack.c.l.b16 %v2577
    %v2630 = vunpack.c.l.b16 %v2578
    %v2631 = vunpack.c.l.b16 %v2579
    %v2632 = vunpack.c.l.b16 %v2580
    %v2633 = vunpack.c.l.b16 %v2581
    %v2634 = vunpack.c.l.b16 %v2582
    %v2635 = vunpack.c.l.b16 %v2583
    %v2636 = vunpack.c.l.b16 %v2584
    %v2637 = vunpack.c.l.b16 %v2585
    %v2638 = vunpack.c.l.b16 %v2586
    %v2639 = vunpack.c.l.b16 %v2587
    %v2640 = vunpack.c.l.b16 %v2588
    %v2641 = vunpack.c.l.b16 %v2589
    %v2642 = vunpack.c.l.b16 %v2590
    %v2643 = vpack.c.b16 %v2628, %v2627
    %v2644 = vpack.c.b16 %v2630, %v2629
    %v2645 = vpack.c.b16 %v2632, %v2631
    %v2646 = vpack.c.b16 %v2634, %v2633
    %v2647 = vpack.c.b16 %v2636, %v2635
    %v2648 = vpack.c.b16 %v2638, %v2637
    %v2649 = vpack.c.b16 %v2640, %v2639
    %v2650 = vpack.c.b16 %v2642, %v2641
    %2659 = vmatpush.bf16.msra.mxu0 %v1521
    %2660 = vmatpush.bf16.msra.mxu0 %v1519
    %2661 = vmatpush.bf16.msra.mxu0 %v1517
    %2662 = vmatpush.bf16.msra.mxu0 %v1515
    %2663 = vmatpush.bf16.msra.mxu0 %v1513
    %2664 = vmatpush.bf16.msra.mxu0 %v1511
    %2665 = vmatpush.bf16.msra.mxu0 %v1509
    %2666 = vmatpush.bf16.msra.mxu0 %v1507
    %2667 = vmatmul.bf16.gmra.mxu0 %v2643
    %v2668 = vpop.f32.mrf.mxu0
    %v2669 = vadd.f32 %v2609, %v2668
    %v2670 = vpop.f32.mrf.mxu0
    %v2671 = vadd.f32 %v2609, %v2670
    %2672 = vmatmul.bf16.gmra.mxu0 %v2644
    %v2673 = vpop.f32.mrf.mxu0
    %v2674 = vadd.f32 %v2609, %v2673
    %v2675 = vpop.f32.mrf.mxu0
    %v2676 = vadd.f32 %v2609, %v2675
    %2677 = vmatmul.bf16.gmra.mxu0 %v2645
    %v2678 = vpop.f32.mrf.mxu0
    %v2679 = vadd.f32 %v2609, %v2678
    %v2680 = vpop.f32.mrf.mxu0
    %v2681 = vadd.f32 %v2609, %v2680
    %2682 = vmatmul.bf16.gmra.mxu0 %v2646
    %v2683 = vpop.f32.mrf.mxu0
    %v2684 = vadd.f32 %v2609, %v2683
    %v2685 = vpop.f32.mrf.mxu0
    %v2686 = vadd.f32 %v2609, %v2685
    %2687 = vmatmul.bf16.gmra.mxu0 %v2647
    %v2688 = vpop.f32.mrf.mxu0
    %v2689 = vadd.f32 %v2609, %v2688
    %v2690 = vpop.f32.mrf.mxu0
    %v2691 = vadd.f32 %v2609, %v2690
    %2692 = vmatmul.bf16.gmra.mxu0 %v2648
    %v2693 = vpop.f32.mrf.mxu0
    %v2694 = vadd.f32 %v2609, %v2693
    %v2695 = vpop.f32.mrf.mxu0
    %v2696 = vadd.f32 %v2609, %v2695
    %2697 = vmatmul.bf16.gmra.mxu0 %v2649
    %v2698 = vpop.f32.mrf.mxu0
    %v2699 = vadd.f32 %v2609, %v2698
    %v2700 = vpop.f32.mrf.mxu0
    %v2701 = vadd.f32 %v2609, %v2700
    %2702 = vmatmul.bf16.gmra.mxu0 %v2650
    %v2703 = vpop.f32.mrf.mxu0
    %v2704 = vadd.f32 %v2609, %v2703
    %v2705 = vpop.f32.mrf.mxu0
    %v2706 = vadd.f32 %v2609, %v2705
    %2707 = vdwg.mxu0
    %vm2708 = vcmp.gt.f32.partialorder %v2669, 0.0
    %vm2709 = vcmp.gt.f32.partialorder %v2671, 0.0
    %vm2710 = vcmp.gt.f32.partialorder %v2674, 0.0
    %vm2711 = vcmp.gt.f32.partialorder %v2676, 0.0
    %vm2712 = vcmp.gt.f32.partialorder %v2679, 0.0
    %vm2713 = vcmp.gt.f32.partialorder %v2681, 0.0
    %vm2714 = vcmp.gt.f32.partialorder %v2684, 0.0
    %vm2715 = vcmp.gt.f32.partialorder %v2686, 0.0
    %vm2716 = vcmp.gt.f32.partialorder %v2689, 0.0
    %vm2717 = vcmp.gt.f32.partialorder %v2691, 0.0
    %vm2718 = vcmp.gt.f32.partialorder %v2694, 0.0
    %vm2719 = vcmp.gt.f32.partialorder %v2696, 0.0
    %vm2720 = vcmp.gt.f32.partialorder %v2699, 0.0
    %vm2721 = vcmp.gt.f32.partialorder %v2701, 0.0
    %vm2722 = vcmp.gt.f32.partialorder %v2704, 0.0
    %vm2723 = vcmp.gt.f32.partialorder %v2706, 0.0
    %v2724 = vmul.f32 %v2669, 0.01
    %v2725 = vmul.f32 %v2671, 0.01
    %v2726 = vmul.f32 %v2674, 0.01
    %v2727 = vmul.f32 %v2676, 0.01
    %v2728 = vmul.f32 %v2679, 0.01
    %v2729 = vmul.f32 %v2681, 0.01
    %v2730 = vmul.f32 %v2684, 0.01
    %v2731 = vmul.f32 %v2686, 0.01
    %v2732 = vmul.f32 %v2689, 0.01
    %v2733 = vmul.f32 %v2691, 0.01
    %v2734 = vmul.f32 %v2694, 0.01
    %v2735 = vmul.f32 %v2696, 0.01
    %v2736 = vmul.f32 %v2699, 0.01
    %v2737 = vmul.f32 %v2701, 0.01
    %v2738 = vmul.f32 %v2704, 0.01
    %v2739 = vmul.f32 %v2706, 0.01
    %v2740 = vsel %vm2708, %v2669, %v2724
    %v2741 = vsel %vm2709, %v2671, %v2725
    %v2742 = vsel %vm2710, %v2674, %v2726
    %v2743 = vsel %vm2711, %v2676, %v2727
    %v2744 = vsel %vm2712, %v2679, %v2728
    %v2745 = vsel %vm2713, %v2681, %v2729
    %v2746 = vsel %vm2714, %v2684, %v2730
    %v2747 = vsel %vm2715, %v2686, %v2731
    %v2748 = vsel %vm2716, %v2689, %v2732
    %v2749 = vsel %vm2717, %v2691, %v2733
    %v2750 = vsel %vm2718, %v2694, %v2734
    %v2751 = vsel %vm2719, %v2696, %v2735
    %v2752 = vsel %vm2720, %v2699, %v2736
    %v2753 = vsel %vm2721, %v2701, %v2737
    %v2754 = vsel %vm2722, %v2704, %v2738
    %v2755 = vsel %vm2723, %v2706, %v2739
    %v2756 = vld [vmem:[%s5 + $0x1] sm:$0x1]
    %v2758 = vperm.slane %v2756, 0
    %v2776 = vunpack.c.l.b16 %v2591
    %v2777 = vunpack.c.l.b16 %v2592
    %v2778 = vunpack.c.l.b16 %v2593
    %v2779 = vunpack.c.l.b16 %v2594
    %v2780 = vunpack.c.l.b16 %v2595
    %v2781 = vunpack.c.l.b16 %v2596
    %v2782 = vunpack.c.l.b16 %v2597
    %v2783 = vunpack.c.l.b16 %v2598
    %v2784 = vunpack.c.l.b16 %v2599
    %v2785 = vunpack.c.l.b16 %v2600
    %v2786 = vunpack.c.l.b16 %v2601
    %v2787 = vunpack.c.l.b16 %v2602
    %v2788 = vunpack.c.l.b16 %v2603
    %v2789 = vunpack.c.l.b16 %v2604
    %v2790 = vunpack.c.l.b16 %v2605
    %v2791 = vunpack.c.l.b16 %v2606
    %v2792 = vpack.c.b16 %v2777, %v2776
    %v2793 = vpack.c.b16 %v2779, %v2778
    %v2794 = vpack.c.b16 %v2781, %v2780
    %v2795 = vpack.c.b16 %v2783, %v2782
    %v2796 = vpack.c.b16 %v2785, %v2784
    %v2797 = vpack.c.b16 %v2787, %v2786
    %v2798 = vpack.c.b16 %v2789, %v2788
    %v2799 = vpack.c.b16 %v2791, %v2790
    %2808 = vmatpush.bf16.msra.mxu0 %v1522
    %2809 = vmatpush.bf16.msra.mxu0 %v1520
    %2810 = vmatpush.bf16.msra.mxu0 %v1518
    %2811 = vmatpush.bf16.msra.mxu0 %v1516
    %2812 = vmatpush.bf16.msra.mxu0 %v1514
    %2813 = vmatpush.bf16.msra.mxu0 %v1512
    %2814 = vmatpush.bf16.msra.mxu0 %v1510
    %2815 = vmatpush.bf16.msra.mxu0 %v1508
    %2816 = vmatmul.bf16.gmra.mxu0 %v2792
    %v2817 = vpop.f32.mrf.mxu0
    %v2818 = vadd.f32 %v2758, %v2817
    %v2819 = vpop.f32.mrf.mxu0
    %v2820 = vadd.f32 %v2758, %v2819
    %2821 = vmatmul.bf16.gmra.mxu0 %v2793
    %v2822 = vpop.f32.mrf.mxu0
    %v2823 = vadd.f32 %v2758, %v2822
    %v2824 = vpop.f32.mrf.mxu0
    %v2825 = vadd.f32 %v2758, %v2824
    %2826 = vmatmul.bf16.gmra.mxu0 %v2794
    %v2827 = vpop.f32.mrf.mxu0
    %v2828 = vadd.f32 %v2758, %v2827
    %v2829 = vpop.f32.mrf.mxu0
    %v2830 = vadd.f32 %v2758, %v2829
    %2831 = vmatmul.bf16.gmra.mxu0 %v2795
    %v2832 = vpop.f32.mrf.mxu0
    %v2833 = vadd.f32 %v2758, %v2832
    %v2834 = vpop.f32.mrf.mxu0
    %v2835 = vadd.f32 %v2758, %v2834
    %2836 = vmatmul.bf16.gmra.mxu0 %v2796
    %v2837 = vpop.f32.mrf.mxu0
    %v2838 = vadd.f32 %v2758, %v2837
    %v2839 = vpop.f32.mrf.mxu0
    %v2840 = vadd.f32 %v2758, %v2839
    %2841 = vmatmul.bf16.gmra.mxu0 %v2797
    %v2842 = vpop.f32.mrf.mxu0
    %v2843 = vadd.f32 %v2758, %v2842
    %v2844 = vpop.f32.mrf.mxu0
    %v2845 = vadd.f32 %v2758, %v2844
    %2846 = vmatmul.bf16.gmra.mxu0 %v2798
    %v2847 = vpop.f32.mrf.mxu0
    %v2848 = vadd.f32 %v2758, %v2847
    %v2849 = vpop.f32.mrf.mxu0
    %v2850 = vadd.f32 %v2758, %v2849
    %2851 = vmatmul.bf16.gmra.mxu0 %v2799
    %v2852 = vpop.f32.mrf.mxu0
    %v2853 = vadd.f32 %v2758, %v2852
    %v2854 = vpop.f32.mrf.mxu0
    %v2855 = vadd.f32 %v2758, %v2854
    %2856 = vdwg.mxu0
    %vm2857 = vcmp.gt.f32.partialorder %v2818, 0.0
    %vm2858 = vcmp.gt.f32.partialorder %v2820, 0.0
    %vm2859 = vcmp.gt.f32.partialorder %v2823, 0.0
    %vm2860 = vcmp.gt.f32.partialorder %v2825, 0.0
    %vm2861 = vcmp.gt.f32.partialorder %v2828, 0.0
    %vm2862 = vcmp.gt.f32.partialorder %v2830, 0.0
    %vm2863 = vcmp.gt.f32.partialorder %v2833, 0.0
    %vm2864 = vcmp.gt.f32.partialorder %v2835, 0.0
    %vm2865 = vcmp.gt.f32.partialorder %v2838, 0.0
    %vm2866 = vcmp.gt.f32.partialorder %v2840, 0.0
    %vm2867 = vcmp.gt.f32.partialorder %v2843, 0.0
    %vm2868 = vcmp.gt.f32.partialorder %v2845, 0.0
    %vm2869 = vcmp.gt.f32.partialorder %v2848, 0.0
    %vm2870 = vcmp.gt.f32.partialorder %v2850, 0.0
    %vm2871 = vcmp.gt.f32.partialorder %v2853, 0.0
    %vm2872 = vcmp.gt.f32.partialorder %v2855, 0.0
    %v2873 = vmul.f32 %v2818, 0.01
    %v2874 = vmul.f32 %v2820, 0.01
    %v2875 = vmul.f32 %v2823, 0.01
    %v2876 = vmul.f32 %v2825, 0.01
    %v2877 = vmul.f32 %v2828, 0.01
    %v2878 = vmul.f32 %v2830, 0.01
    %v2879 = vmul.f32 %v2833, 0.01
    %v2880 = vmul.f32 %v2835, 0.01
    %v2881 = vmul.f32 %v2838, 0.01
    %v2882 = vmul.f32 %v2840, 0.01
    %v2883 = vmul.f32 %v2843, 0.01
    %v2884 = vmul.f32 %v2845, 0.01
    %v2885 = vmul.f32 %v2848, 0.01
    %v2886 = vmul.f32 %v2850, 0.01
    %v2887 = vmul.f32 %v2853, 0.01
    %v2888 = vmul.f32 %v2855, 0.01
    %v2889 = vsel %vm2857, %v2818, %v2873
    %v2890 = vsel %vm2858, %v2820, %v2874
    %v2891 = vsel %vm2859, %v2823, %v2875
    %v2892 = vsel %vm2860, %v2825, %v2876
    %v2893 = vsel %vm2861, %v2828, %v2877
    %v2894 = vsel %vm2862, %v2830, %v2878
    %v2895 = vsel %vm2863, %v2833, %v2879
    %v2896 = vsel %vm2864, %v2835, %v2880
    %v2897 = vsel %vm2865, %v2838, %v2881
    %v2898 = vsel %vm2866, %v2840, %v2882
    %v2899 = vsel %vm2867, %v2843, %v2883
    %v2900 = vsel %vm2868, %v2845, %v2884
    %v2901 = vsel %vm2869, %v2848, %v2885
    %v2902 = vsel %vm2870, %v2850, %v2886
    %v2903 = vsel %vm2871, %v2853, %v2887
    %v2904 = vsel %vm2872, %v2855, %v2888
    %s2905 = scalar_lea.vmem %s1, 32
    %v2906 = vld [vmem:[%s2905] sm:$0xff]
    %v2907 = vld [vmem:[%s2905 + $0x8] sm:$0xff]
    %v2908 = vld [vmem:[%s2905 + $0x10] sm:$0xff]
    %v2909 = vld [vmem:[%s2905 + $0x18] sm:$0xff]
    %v2910 = vunpack.c.0.s8 %v2906
    %v2911 = vunpack.c.1.s8 %v2906
    %v2912 = vunpack.c.2.s8 %v2906
    %v2913 = vunpack.c.3.s8 %v2906
    %v2914 = vunpack.c.0.s8 %v2907
    %v2915 = vunpack.c.1.s8 %v2907
    %v2916 = vunpack.c.2.s8 %v2907
    %v2917 = vunpack.c.3.s8 %v2907
    %v2918 = vunpack.c.0.s8 %v2908
    %v2919 = vunpack.c.1.s8 %v2908
    %v2920 = vunpack.c.2.s8 %v2908
    %v2921 = vunpack.c.3.s8 %v2908
    %v2922 = vunpack.c.0.s8 %v2909
    %v2923 = vunpack.c.1.s8 %v2909
    %v2924 = vunpack.c.2.s8 %v2909
    %v2925 = vunpack.c.3.s8 %v2909
    %v2926 = vcvt.s32.f32 %v2910
    %v2927 = vcvt.s32.f32 %v2911
    %v2928 = vcvt.s32.f32 %v2912
    %v2929 = vcvt.s32.f32 %v2913
    %v2930 = vcvt.s32.f32 %v2914
    %v2931 = vcvt.s32.f32 %v2915
    %v2932 = vcvt.s32.f32 %v2916
    %v2933 = vcvt.s32.f32 %v2917
    %v2934 = vcvt.s32.f32 %v2918
    %v2935 = vcvt.s32.f32 %v2919
    %v2936 = vcvt.s32.f32 %v2920
    %v2937 = vcvt.s32.f32 %v2921
    %v2938 = vcvt.s32.f32 %v2922
    %v2939 = vcvt.s32.f32 %v2923
    %v2940 = vcvt.s32.f32 %v2924
    %v2941 = vcvt.s32.f32 %v2925
    %vm2942 = vcmp.gt.f32.partialorder %v2926, 0.0
    %vm2943 = vcmp.gt.f32.partialorder %v2927, 0.0
    %vm2944 = vcmp.gt.f32.partialorder %v2928, 0.0
    %vm2945 = vcmp.gt.f32.partialorder %v2929, 0.0
    %vm2946 = vcmp.gt.f32.partialorder %v2930, 0.0
    %vm2947 = vcmp.gt.f32.partialorder %v2931, 0.0
    %vm2948 = vcmp.gt.f32.partialorder %v2932, 0.0
    %vm2949 = vcmp.gt.f32.partialorder %v2933, 0.0
    %vm2950 = vcmp.gt.f32.partialorder %v2934, 0.0
    %vm2951 = vcmp.gt.f32.partialorder %v2935, 0.0
    %vm2952 = vcmp.gt.f32.partialorder %v2936, 0.0
    %vm2953 = vcmp.gt.f32.partialorder %v2937, 0.0
    %vm2954 = vcmp.gt.f32.partialorder %v2938, 0.0
    %vm2955 = vcmp.gt.f32.partialorder %v2939, 0.0
    %vm2956 = vcmp.gt.f32.partialorder %v2940, 0.0
    %vm2957 = vcmp.gt.f32.partialorder %v2941, 0.0
    %2959 = vset.pattern.permute.xlu0 0
    %2960 = vperm.xlu0 %2959, %v1890
    %v2961 = vpop.permute.xlu0 %2960
    %2964 = vset.pattern.permute.xlu0 0
    %2965 = vperm.xlu0 %2964, %v1892
    %v2966 = vpop.permute.xlu0 %2965
    %2969 = vset.pattern.permute.xlu0 0
    %2970 = vperm.xlu0 %2969, %v1895
    %v2971 = vpop.permute.xlu0 %2970
    %2974 = vset.pattern.permute.xlu0 0
    %2975 = vperm.xlu0 %2974, %v1897
    %v2976 = vpop.permute.xlu0 %2975
    %2979 = vset.pattern.permute.xlu0 0
    %2980 = vperm.xlu0 %2979, %v1900
    %v2981 = vpop.permute.xlu0 %2980
    %2984 = vset.pattern.permute.xlu0 0
    %2985 = vperm.xlu0 %2984, %v1902
    %v2986 = vpop.permute.xlu0 %2985
    %2989 = vset.pattern.permute.xlu0 0
    %2990 = vperm.xlu0 %2989, %v1905
    %v2991 = vpop.permute.xlu0 %2990
    %2994 = vset.pattern.permute.xlu0 0
    %2995 = vperm.xlu0 %2994, %v1907
    %v2996 = vpop.permute.xlu0 %2995
    %2999 = vset.pattern.permute.xlu0 0
    %3000 = vperm.xlu0 %2999, %v1910
    %v3001 = vpop.permute.xlu0 %3000
    %3004 = vset.pattern.permute.xlu0 0
    %3005 = vperm.xlu0 %3004, %v1912
    %v3006 = vpop.permute.xlu0 %3005
    %3009 = vset.pattern.permute.xlu0 0
    %3010 = vperm.xlu0 %3009, %v1915
    %v3011 = vpop.permute.xlu0 %3010
    %3014 = vset.pattern.permute.xlu0 0
    %3015 = vperm.xlu0 %3014, %v1917
    %v3016 = vpop.permute.xlu0 %3015
    %3019 = vset.pattern.permute.xlu0 0
    %3020 = vperm.xlu0 %3019, %v1920
    %v3021 = vpop.permute.xlu0 %3020
    %3024 = vset.pattern.permute.xlu0 0
    %3025 = vperm.xlu0 %3024, %v1922
    %v3026 = vpop.permute.xlu0 %3025
    %3029 = vset.pattern.permute.xlu0 0
    %3030 = vperm.xlu0 %3029, %v1925
    %v3031 = vpop.permute.xlu0 %3030
    %3034 = vset.pattern.permute.xlu0 0
    %3035 = vperm.xlu0 %3034, %v1927
    %v3036 = vpop.permute.xlu0 %3035
    %v3038 = vperm.slane %v1620, 0
    %v3039 = vadd.f32 %v2961, %v3038
    %v3040 = vadd.f32 %v2966, %v3038
    %v3041 = vadd.f32 %v2971, %v3038
    %v3042 = vadd.f32 %v2976, %v3038
    %v3043 = vadd.f32 %v2981, %v3038
    %v3044 = vadd.f32 %v2986, %v3038
    %v3045 = vadd.f32 %v2991, %v3038
    %v3046 = vadd.f32 %v2996, %v3038
    %v3047 = vadd.f32 %v3001, %v3038
    %v3048 = vadd.f32 %v3006, %v3038
    %v3049 = vadd.f32 %v3011, %v3038
    %v3050 = vadd.f32 %v3016, %v3038
    %v3051 = vadd.f32 %v3021, %v3038
    %v3052 = vadd.f32 %v3026, %v3038
    %v3053 = vadd.f32 %v3031, %v3038
    %v3054 = vadd.f32 %v3036, %v3038
    %vm3055 = vcmp.gt.f32.partialorder %v3039, 0.0
    %vm3056 = vcmp.gt.f32.partialorder %v3040, 0.0
    %vm3057 = vcmp.gt.f32.partialorder %v3041, 0.0
    %vm3058 = vcmp.gt.f32.partialorder %v3042, 0.0
    %vm3059 = vcmp.gt.f32.partialorder %v3043, 0.0
    %vm3060 = vcmp.gt.f32.partialorder %v3044, 0.0
    %vm3061 = vcmp.gt.f32.partialorder %v3045, 0.0
    %vm3062 = vcmp.gt.f32.partialorder %v3046, 0.0
    %vm3063 = vcmp.gt.f32.partialorder %v3047, 0.0
    %vm3064 = vcmp.gt.f32.partialorder %v3048, 0.0
    %vm3065 = vcmp.gt.f32.partialorder %v3049, 0.0
    %vm3066 = vcmp.gt.f32.partialorder %v3050, 0.0
    %vm3067 = vcmp.gt.f32.partialorder %v3051, 0.0
    %vm3068 = vcmp.gt.f32.partialorder %v3052, 0.0
    %vm3069 = vcmp.gt.f32.partialorder %v3053, 0.0
    %vm3070 = vcmp.gt.f32.partialorder %v3054, 0.0
    %v3071 = vmul.f32 %v3039, 0.2
    %v3072 = vmul.f32 %v3040, 0.2
    %v3073 = vmul.f32 %v3041, 0.2
    %v3074 = vmul.f32 %v3042, 0.2
    %v3075 = vmul.f32 %v3043, 0.2
    %v3076 = vmul.f32 %v3044, 0.2
    %v3077 = vmul.f32 %v3045, 0.2
    %v3078 = vmul.f32 %v3046, 0.2
    %v3079 = vmul.f32 %v3047, 0.2
    %v3080 = vmul.f32 %v3048, 0.2
    %v3081 = vmul.f32 %v3049, 0.2
    %v3082 = vmul.f32 %v3050, 0.2
    %v3083 = vmul.f32 %v3051, 0.2
    %v3084 = vmul.f32 %v3052, 0.2
    %v3085 = vmul.f32 %v3053, 0.2
    %v3086 = vmul.f32 %v3054, 0.2
    %v3087 = vsel %vm3055, %v3039, %v3071
    %v3088 = vsel %vm3056, %v3040, %v3072
    %v3089 = vsel %vm3057, %v3041, %v3073
    %v3090 = vsel %vm3058, %v3042, %v3074
    %v3091 = vsel %vm3059, %v3043, %v3075
    %v3092 = vsel %vm3060, %v3044, %v3076
    %v3093 = vsel %vm3061, %v3045, %v3077
    %v3094 = vsel %vm3062, %v3046, %v3078
    %v3095 = vsel %vm3063, %v3047, %v3079
    %v3096 = vsel %vm3064, %v3048, %v3080
    %v3097 = vsel %vm3065, %v3049, %v3081
    %v3098 = vsel %vm3066, %v3050, %v3082
    %v3099 = vsel %vm3067, %v3051, %v3083
    %v3100 = vsel %vm3068, %v3052, %v3084
    %v3101 = vsel %vm3069, %v3053, %v3085
    %v3102 = vsel %vm3070, %v3054, %v3086
    %v3103 = vsel %vm2942, %v3087, -1e+30
    %v3104 = vsel %vm2943, %v3088, -1e+30
    %v3105 = vsel %vm2944, %v3089, -1e+30
    %v3106 = vsel %vm2945, %v3090, -1e+30
    %v3107 = vsel %vm2946, %v3091, -1e+30
    %v3108 = vsel %vm2947, %v3092, -1e+30
    %v3109 = vsel %vm2948, %v3093, -1e+30
    %v3110 = vsel %vm2949, %v3094, -1e+30
    %v3111 = vsel %vm2950, %v3095, -1e+30
    %v3112 = vsel %vm2951, %v3096, -1e+30
    %v3113 = vsel %vm2952, %v3097, -1e+30
    %v3114 = vsel %vm2953, %v3098, -1e+30
    %v3115 = vsel %vm2954, %v3099, -1e+30
    %v3116 = vsel %vm2955, %v3100, -1e+30
    %v3117 = vsel %vm2956, %v3101, -1e+30
    %v3118 = vsel %vm2957, %v3102, -1e+30
    %3119 = vset.pattern.permute.xlu0 1
    %3120 = vperm.xlu0 %3119, %v1890
    %v3121 = vpop.permute.xlu0 %3120
    %3123 = vset.pattern.permute.xlu0 1
    %3124 = vperm.xlu0 %3123, %v1892
    %v3125 = vpop.permute.xlu0 %3124
    %3127 = vset.pattern.permute.xlu0 1
    %3128 = vperm.xlu0 %3127, %v1895
    %v3129 = vpop.permute.xlu0 %3128
    %3131 = vset.pattern.permute.xlu0 1
    %3132 = vperm.xlu0 %3131, %v1897
    %v3133 = vpop.permute.xlu0 %3132
    %3135 = vset.pattern.permute.xlu0 1
    %3136 = vperm.xlu0 %3135, %v1900
    %v3137 = vpop.permute.xlu0 %3136
    %3139 = vset.pattern.permute.xlu0 1
    %3140 = vperm.xlu0 %3139, %v1902
    %v3141 = vpop.permute.xlu0 %3140
    %3143 = vset.pattern.permute.xlu0 1
    %3144 = vperm.xlu0 %3143, %v1905
    %v3145 = vpop.permute.xlu0 %3144
    %3147 = vset.pattern.permute.xlu0 1
    %3148 = vperm.xlu0 %3147, %v1907
    %v3149 = vpop.permute.xlu0 %3148
    %3151 = vset.pattern.permute.xlu0 1
    %3152 = vperm.xlu0 %3151, %v1910
    %v3153 = vpop.permute.xlu0 %3152
    %3155 = vset.pattern.permute.xlu0 1
    %3156 = vperm.xlu0 %3155, %v1912
    %v3157 = vpop.permute.xlu0 %3156
    %3159 = vset.pattern.permute.xlu0 1
    %3160 = vperm.xlu0 %3159, %v1915
    %v3161 = vpop.permute.xlu0 %3160
    %3163 = vset.pattern.permute.xlu0 1
    %3164 = vperm.xlu0 %3163, %v1917
    %v3165 = vpop.permute.xlu0 %3164
    %3167 = vset.pattern.permute.xlu0 1
    %3168 = vperm.xlu0 %3167, %v1920
    %v3169 = vpop.permute.xlu0 %3168
    %3171 = vset.pattern.permute.xlu0 1
    %3172 = vperm.xlu0 %3171, %v1922
    %v3173 = vpop.permute.xlu0 %3172
    %3175 = vset.pattern.permute.xlu0 1
    %3176 = vperm.xlu0 %3175, %v1925
    %v3177 = vpop.permute.xlu0 %3176
    %3179 = vset.pattern.permute.xlu0 1
    %3180 = vperm.xlu0 %3179, %v1927
    %v3181 = vpop.permute.xlu0 %3180
    %v3183 = vperm.slane %v1620, 1
    %v3184 = vadd.f32 %v3121, %v3183
    %v3185 = vadd.f32 %v3125, %v3183
    %v3186 = vadd.f32 %v3129, %v3183
    %v3187 = vadd.f32 %v3133, %v3183
    %v3188 = vadd.f32 %v3137, %v3183
    %v3189 = vadd.f32 %v3141, %v3183
    %v3190 = vadd.f32 %v3145, %v3183
    %v3191 = vadd.f32 %v3149, %v3183
    %v3192 = vadd.f32 %v3153, %v3183
    %v3193 = vadd.f32 %v3157, %v3183
    %v3194 = vadd.f32 %v3161, %v3183
    %v3195 = vadd.f32 %v3165, %v3183
    %v3196 = vadd.f32 %v3169, %v3183
    %v3197 = vadd.f32 %v3173, %v3183
    %v3198 = vadd.f32 %v3177, %v3183
    %v3199 = vadd.f32 %v3181, %v3183
    %vm3200 = vcmp.gt.f32.partialorder %v3184, 0.0
    %vm3201 = vcmp.gt.f32.partialorder %v3185, 0.0
    %vm3202 = vcmp.gt.f32.partialorder %v3186, 0.0
    %vm3203 = vcmp.gt.f32.partialorder %v3187, 0.0
    %vm3204 = vcmp.gt.f32.partialorder %v3188, 0.0
    %vm3205 = vcmp.gt.f32.partialorder %v3189, 0.0
    %vm3206 = vcmp.gt.f32.partialorder %v3190, 0.0
    %vm3207 = vcmp.gt.f32.partialorder %v3191, 0.0
    %vm3208 = vcmp.gt.f32.partialorder %v3192, 0.0
    %vm3209 = vcmp.gt.f32.partialorder %v3193, 0.0
    %vm3210 = vcmp.gt.f32.partialorder %v3194, 0.0
    %vm3211 = vcmp.gt.f32.partialorder %v3195, 0.0
    %vm3212 = vcmp.gt.f32.partialorder %v3196, 0.0
    %vm3213 = vcmp.gt.f32.partialorder %v3197, 0.0
    %vm3214 = vcmp.gt.f32.partialorder %v3198, 0.0
    %vm3215 = vcmp.gt.f32.partialorder %v3199, 0.0
    %v3216 = vmul.f32 %v3184, 0.2
    %v3217 = vmul.f32 %v3185, 0.2
    %v3218 = vmul.f32 %v3186, 0.2
    %v3219 = vmul.f32 %v3187, 0.2
    %v3220 = vmul.f32 %v3188, 0.2
    %v3221 = vmul.f32 %v3189, 0.2
    %v3222 = vmul.f32 %v3190, 0.2
    %v3223 = vmul.f32 %v3191, 0.2
    %v3224 = vmul.f32 %v3192, 0.2
    %v3225 = vmul.f32 %v3193, 0.2
    %v3226 = vmul.f32 %v3194, 0.2
    %v3227 = vmul.f32 %v3195, 0.2
    %v3228 = vmul.f32 %v3196, 0.2
    %v3229 = vmul.f32 %v3197, 0.2
    %v3230 = vmul.f32 %v3198, 0.2
    %v3231 = vmul.f32 %v3199, 0.2
    %v3232 = vsel %vm3200, %v3184, %v3216
    %v3233 = vsel %vm3201, %v3185, %v3217
    %v3234 = vsel %vm3202, %v3186, %v3218
    %v3235 = vsel %vm3203, %v3187, %v3219
    %v3236 = vsel %vm3204, %v3188, %v3220
    %v3237 = vsel %vm3205, %v3189, %v3221
    %v3238 = vsel %vm3206, %v3190, %v3222
    %v3239 = vsel %vm3207, %v3191, %v3223
    %v3240 = vsel %vm3208, %v3192, %v3224
    %v3241 = vsel %vm3209, %v3193, %v3225
    %v3242 = vsel %vm3210, %v3194, %v3226
    %v3243 = vsel %vm3211, %v3195, %v3227
    %v3244 = vsel %vm3212, %v3196, %v3228
    %v3245 = vsel %vm3213, %v3197, %v3229
    %v3246 = vsel %vm3214, %v3198, %v3230
    %v3247 = vsel %vm3215, %v3199, %v3231
    %v3248 = vsel %vm2942, %v3232, -1e+30
    %v3249 = vsel %vm2943, %v3233, -1e+30
    %v3250 = vsel %vm2944, %v3234, -1e+30
    %v3251 = vsel %vm2945, %v3235, -1e+30
    %v3252 = vsel %vm2946, %v3236, -1e+30
    %v3253 = vsel %vm2947, %v3237, -1e+30
    %v3254 = vsel %vm2948, %v3238, -1e+30
    %v3255 = vsel %vm2949, %v3239, -1e+30
    %v3256 = vsel %vm2950, %v3240, -1e+30
    %v3257 = vsel %vm2951, %v3241, -1e+30
    %v3258 = vsel %vm2952, %v3242, -1e+30
    %v3259 = vsel %vm2953, %v3243, -1e+30
    %v3260 = vsel %vm2954, %v3244, -1e+30
    %v3261 = vsel %vm2955, %v3245, -1e+30
    %v3262 = vsel %vm2956, %v3246, -1e+30
    %v3263 = vsel %vm2957, %v3247, -1e+30
    %3264 = vmax.xlane.f32.xlu0 %v3103
    %v3265 = vpop.xlane.xlu0 %3264
    %3266 = vmax.xlane.f32.xlu0 %v3104
    %v3267 = vpop.xlane.xlu0 %3266
    %3268 = vmax.xlane.f32.xlu0 %v3105
    %v3269 = vpop.xlane.xlu0 %3268
    %3270 = vmax.xlane.f32.xlu0 %v3106
    %v3271 = vpop.xlane.xlu0 %3270
    %3272 = vmax.xlane.f32.xlu0 %v3107
    %v3273 = vpop.xlane.xlu0 %3272
    %3274 = vmax.xlane.f32.xlu0 %v3108
    %v3275 = vpop.xlane.xlu0 %3274
    %3276 = vmax.xlane.f32.xlu0 %v3109
    %v3277 = vpop.xlane.xlu0 %3276
    %3278 = vmax.xlane.f32.xlu0 %v3110
    %v3279 = vpop.xlane.xlu0 %3278
    %3280 = vmax.xlane.f32.xlu0 %v3111
    %v3281 = vpop.xlane.xlu0 %3280
    %3282 = vmax.xlane.f32.xlu0 %v3112
    %v3283 = vpop.xlane.xlu0 %3282
    %3284 = vmax.xlane.f32.xlu0 %v3113
    %v3285 = vpop.xlane.xlu0 %3284
    %3286 = vmax.xlane.f32.xlu0 %v3114
    %v3287 = vpop.xlane.xlu0 %3286
    %3288 = vmax.xlane.f32.xlu0 %v3115
    %v3289 = vpop.xlane.xlu0 %3288
    %3290 = vmax.xlane.f32.xlu0 %v3116
    %v3291 = vpop.xlane.xlu0 %3290
    %3292 = vmax.xlane.f32.xlu0 %v3117
    %v3293 = vpop.xlane.xlu0 %3292
    %3294 = vmax.xlane.f32.xlu0 %v3118
    %v3295 = vpop.xlane.xlu0 %3294
    %3296 = vmax.xlane.f32.xlu0 %v3248
    %v3297 = vpop.xlane.xlu0 %3296
    %3298 = vmax.xlane.f32.xlu0 %v3249
    %v3299 = vpop.xlane.xlu0 %3298
    %3300 = vmax.xlane.f32.xlu0 %v3250
    %v3301 = vpop.xlane.xlu0 %3300
    %3302 = vmax.xlane.f32.xlu0 %v3251
    %v3303 = vpop.xlane.xlu0 %3302
    %3304 = vmax.xlane.f32.xlu0 %v3252
    %v3305 = vpop.xlane.xlu0 %3304
    %3306 = vmax.xlane.f32.xlu0 %v3253
    %v3307 = vpop.xlane.xlu0 %3306
    %3308 = vmax.xlane.f32.xlu0 %v3254
    %v3309 = vpop.xlane.xlu0 %3308
    %3310 = vmax.xlane.f32.xlu0 %v3255
    %v3311 = vpop.xlane.xlu0 %3310
    %3312 = vmax.xlane.f32.xlu0 %v3256
    %v3313 = vpop.xlane.xlu0 %3312
    %3314 = vmax.xlane.f32.xlu0 %v3257
    %v3315 = vpop.xlane.xlu0 %3314
    %3316 = vmax.xlane.f32.xlu0 %v3258
    %v3317 = vpop.xlane.xlu0 %3316
    %3318 = vmax.xlane.f32.xlu0 %v3259
    %v3319 = vpop.xlane.xlu0 %3318
    %3320 = vmax.xlane.f32.xlu0 %v3260
    %v3321 = vpop.xlane.xlu0 %3320
    %3322 = vmax.xlane.f32.xlu0 %v3261
    %v3323 = vpop.xlane.xlu0 %3322
    %3324 = vmax.xlane.f32.xlu0 %v3262
    %v3325 = vpop.xlane.xlu0 %3324
    %3326 = vmax.xlane.f32.xlu0 %v3263
    %v3327 = vpop.xlane.xlu0 %3326
    %v3328 = vsub.f32 %v3103, %v3265
    %v3329 = vsub.f32 %v3104, %v3267
    %v3330 = vsub.f32 %v3105, %v3269
    %v3331 = vsub.f32 %v3106, %v3271
    %v3332 = vsub.f32 %v3107, %v3273
    %v3333 = vsub.f32 %v3108, %v3275
    %v3334 = vsub.f32 %v3109, %v3277
    %v3335 = vsub.f32 %v3110, %v3279
    %v3336 = vsub.f32 %v3111, %v3281
    %v3337 = vsub.f32 %v3112, %v3283
    %v3338 = vsub.f32 %v3113, %v3285
    %v3339 = vsub.f32 %v3114, %v3287
    %v3340 = vsub.f32 %v3115, %v3289
    %v3341 = vsub.f32 %v3116, %v3291
    %v3342 = vsub.f32 %v3117, %v3293
    %v3343 = vsub.f32 %v3118, %v3295
    %v3344 = vsub.f32 %v3248, %v3297
    %v3345 = vsub.f32 %v3249, %v3299
    %v3346 = vsub.f32 %v3250, %v3301
    %v3347 = vsub.f32 %v3251, %v3303
    %v3348 = vsub.f32 %v3252, %v3305
    %v3349 = vsub.f32 %v3253, %v3307
    %v3350 = vsub.f32 %v3254, %v3309
    %v3351 = vsub.f32 %v3255, %v3311
    %v3352 = vsub.f32 %v3256, %v3313
    %v3353 = vsub.f32 %v3257, %v3315
    %v3354 = vsub.f32 %v3258, %v3317
    %v3355 = vsub.f32 %v3259, %v3319
    %v3356 = vsub.f32 %v3260, %v3321
    %v3357 = vsub.f32 %v3261, %v3323
    %v3358 = vsub.f32 %v3262, %v3325
    %v3359 = vsub.f32 %v3263, %v3327
    %v3360 = vmul.f32 %v3328, 1.442695
    %v3361 = vpow.pop %v3360
    %v3362 = vmul.f32 %v3329, 1.442695
    %v3363 = vpow.pop %v3362
    %v3364 = vmul.f32 %v3330, 1.442695
    %v3365 = vpow.pop %v3364
    %v3366 = vmul.f32 %v3331, 1.442695
    %v3367 = vpow.pop %v3366
    %v3368 = vmul.f32 %v3332, 1.442695
    %v3369 = vpow.pop %v3368
    %v3370 = vmul.f32 %v3333, 1.442695
    %v3371 = vpow.pop %v3370
    %v3372 = vmul.f32 %v3334, 1.442695
    %v3373 = vpow.pop %v3372
    %v3374 = vmul.f32 %v3335, 1.442695
    %v3375 = vpow.pop %v3374
    %v3376 = vmul.f32 %v3336, 1.442695
    %v3377 = vpow.pop %v3376
    %v3378 = vmul.f32 %v3337, 1.442695
    %v3379 = vpow.pop %v3378
    %v3380 = vmul.f32 %v3338, 1.442695
    %v3381 = vpow.pop %v3380
    %v3382 = vmul.f32 %v3339, 1.442695
    %v3383 = vpow.pop %v3382
    %v3384 = vmul.f32 %v3340, 1.442695
    %v3385 = vpow.pop %v3384
    %v3386 = vmul.f32 %v3341, 1.442695
    %v3387 = vpow.pop %v3386
    %v3388 = vmul.f32 %v3342, 1.442695
    %v3389 = vpow.pop %v3388
    %v3390 = vmul.f32 %v3343, 1.442695
    %v3391 = vpow.pop %v3390
    %v3392 = vmul.f32 %v3344, 1.442695
    %v3393 = vpow.pop %v3392
    %v3394 = vmul.f32 %v3345, 1.442695
    %v3395 = vpow.pop %v3394
    %v3396 = vmul.f32 %v3346, 1.442695
    %v3397 = vpow.pop %v3396
    %v3398 = vmul.f32 %v3347, 1.442695
    %v3399 = vpow.pop %v3398
    %v3400 = vmul.f32 %v3348, 1.442695
    %v3401 = vpow.pop %v3400
    %v3402 = vmul.f32 %v3349, 1.442695
    %v3403 = vpow.pop %v3402
    %v3404 = vmul.f32 %v3350, 1.442695
    %v3405 = vpow.pop %v3404
    %v3406 = vmul.f32 %v3351, 1.442695
    %v3407 = vpow.pop %v3406
    %v3408 = vmul.f32 %v3352, 1.442695
    %v3409 = vpow.pop %v3408
    %v3410 = vmul.f32 %v3353, 1.442695
    %v3411 = vpow.pop %v3410
    %v3412 = vmul.f32 %v3354, 1.442695
    %v3413 = vpow.pop %v3412
    %v3414 = vmul.f32 %v3355, 1.442695
    %v3415 = vpow.pop %v3414
    %v3416 = vmul.f32 %v3356, 1.442695
    %v3417 = vpow.pop %v3416
    %v3418 = vmul.f32 %v3357, 1.442695
    %v3419 = vpow.pop %v3418
    %v3420 = vmul.f32 %v3358, 1.442695
    %v3421 = vpow.pop %v3420
    %v3422 = vmul.f32 %v3359, 1.442695
    %v3423 = vpow.pop %v3422
    %3424 = vadd.xlane.f32.xlu0 %v3361
    %v3425 = vpop.xlane.xlu0 %3424
    %3426 = vadd.xlane.f32.xlu0 %v3363
    %v3427 = vpop.xlane.xlu0 %3426
    %3428 = vadd.xlane.f32.xlu0 %v3365
    %v3429 = vpop.xlane.xlu0 %3428
    %3430 = vadd.xlane.f32.xlu0 %v3367
    %v3431 = vpop.xlane.xlu0 %3430
    %3432 = vadd.xlane.f32.xlu0 %v3369
    %v3433 = vpop.xlane.xlu0 %3432
    %3434 = vadd.xlane.f32.xlu0 %v3371
    %v3435 = vpop.xlane.xlu0 %3434
    %3436 = vadd.xlane.f32.xlu0 %v3373
    %v3437 = vpop.xlane.xlu0 %3436
    %3438 = vadd.xlane.f32.xlu0 %v3375
    %v3439 = vpop.xlane.xlu0 %3438
    %3440 = vadd.xlane.f32.xlu0 %v3377
    %v3441 = vpop.xlane.xlu0 %3440
    %3442 = vadd.xlane.f32.xlu0 %v3379
    %v3443 = vpop.xlane.xlu0 %3442
    %3444 = vadd.xlane.f32.xlu0 %v3381
    %v3445 = vpop.xlane.xlu0 %3444
    %3446 = vadd.xlane.f32.xlu0 %v3383
    %v3447 = vpop.xlane.xlu0 %3446
    %3448 = vadd.xlane.f32.xlu0 %v3385
    %v3449 = vpop.xlane.xlu0 %3448
    %3450 = vadd.xlane.f32.xlu0 %v3387
    %v3451 = vpop.xlane.xlu0 %3450
    %3452 = vadd.xlane.f32.xlu0 %v3389
    %v3453 = vpop.xlane.xlu0 %3452
    %3454 = vadd.xlane.f32.xlu0 %v3391
    %v3455 = vpop.xlane.xlu0 %3454
    %3456 = vadd.xlane.f32.xlu0 %v3393
    %v3457 = vpop.xlane.xlu0 %3456
    %3458 = vadd.xlane.f32.xlu0 %v3395
    %v3459 = vpop.xlane.xlu0 %3458
    %3460 = vadd.xlane.f32.xlu0 %v3397
    %v3461 = vpop.xlane.xlu0 %3460
    %3462 = vadd.xlane.f32.xlu0 %v3399
    %v3463 = vpop.xlane.xlu0 %3462
    %3464 = vadd.xlane.f32.xlu0 %v3401
    %v3465 = vpop.xlane.xlu0 %3464
    %3466 = vadd.xlane.f32.xlu0 %v3403
    %v3467 = vpop.xlane.xlu0 %3466
    %3468 = vadd.xlane.f32.xlu0 %v3405
    %v3469 = vpop.xlane.xlu0 %3468
    %3470 = vadd.xlane.f32.xlu0 %v3407
    %v3471 = vpop.xlane.xlu0 %3470
    %3472 = vadd.xlane.f32.xlu0 %v3409
    %v3473 = vpop.xlane.xlu0 %3472
    %3474 = vadd.xlane.f32.xlu0 %v3411
    %v3475 = vpop.xlane.xlu0 %3474
    %3476 = vadd.xlane.f32.xlu0 %v3413
    %v3477 = vpop.xlane.xlu0 %3476
    %3478 = vadd.xlane.f32.xlu0 %v3415
    %v3479 = vpop.xlane.xlu0 %3478
    %3480 = vadd.xlane.f32.xlu0 %v3417
    %v3481 = vpop.xlane.xlu0 %3480
    %3482 = vadd.xlane.f32.xlu0 %v3419
    %v3483 = vpop.xlane.xlu0 %3482
    %3484 = vadd.xlane.f32.xlu0 %v3421
    %v3485 = vpop.xlane.xlu0 %3484
    %3486 = vadd.xlane.f32.xlu0 %v3423
    %v3487 = vpop.xlane.xlu0 %3486
    %v3488 = vrcp.pop %v3425
    %v3489 = vrcp.pop %v3427
    %v3490 = vrcp.pop %v3429
    %v3491 = vrcp.pop %v3431
    %v3492 = vrcp.pop %v3433
    %v3493 = vrcp.pop %v3435
    %v3494 = vrcp.pop %v3437
    %v3495 = vrcp.pop %v3439
    %v3496 = vrcp.pop %v3441
    %v3497 = vrcp.pop %v3443
    %v3498 = vrcp.pop %v3445
    %v3499 = vrcp.pop %v3447
    %v3500 = vrcp.pop %v3449
    %v3501 = vrcp.pop %v3451
    %v3502 = vrcp.pop %v3453
    %v3503 = vrcp.pop %v3455
    %v3504 = vrcp.pop %v3457
    %v3505 = vrcp.pop %v3459
    %v3506 = vrcp.pop %v3461
    %v3507 = vrcp.pop %v3463
    %v3508 = vrcp.pop %v3465
    %v3509 = vrcp.pop %v3467
    %v3510 = vrcp.pop %v3469
    %v3511 = vrcp.pop %v3471
    %v3512 = vrcp.pop %v3473
    %v3513 = vrcp.pop %v3475
    %v3514 = vrcp.pop %v3477
    %v3515 = vrcp.pop %v3479
    %v3516 = vrcp.pop %v3481
    %v3517 = vrcp.pop %v3483
    %v3518 = vrcp.pop %v3485
    %v3519 = vrcp.pop %v3487
    %v3520 = vmul.f32 %v3361, %v3488
    %v3521 = vmul.f32 %v3363, %v3489
    %v3522 = vmul.f32 %v3365, %v3490
    %v3523 = vmul.f32 %v3367, %v3491
    %v3524 = vmul.f32 %v3369, %v3492
    %v3525 = vmul.f32 %v3371, %v3493
    %v3526 = vmul.f32 %v3373, %v3494
    %v3527 = vmul.f32 %v3375, %v3495
    %v3528 = vmul.f32 %v3377, %v3496
    %v3529 = vmul.f32 %v3379, %v3497
    %v3530 = vmul.f32 %v3381, %v3498
    %v3531 = vmul.f32 %v3383, %v3499
    %v3532 = vmul.f32 %v3385, %v3500
    %v3533 = vmul.f32 %v3387, %v3501
    %v3534 = vmul.f32 %v3389, %v3502
    %v3535 = vmul.f32 %v3391, %v3503
    %v3536 = vmul.f32 %v3393, %v3504
    %v3537 = vmul.f32 %v3395, %v3505
    %v3538 = vmul.f32 %v3397, %v3506
    %v3539 = vmul.f32 %v3399, %v3507
    %v3540 = vmul.f32 %v3401, %v3508
    %v3541 = vmul.f32 %v3403, %v3509
    %v3542 = vmul.f32 %v3405, %v3510
    %v3543 = vmul.f32 %v3407, %v3511
    %v3544 = vmul.f32 %v3409, %v3512
    %v3545 = vmul.f32 %v3411, %v3513
    %v3546 = vmul.f32 %v3413, %v3514
    %v3547 = vmul.f32 %v3415, %v3515
    %v3548 = vmul.f32 %v3417, %v3516
    %v3549 = vmul.f32 %v3419, %v3517
    %v3550 = vmul.f32 %v3421, %v3518
    %v3551 = vmul.f32 %v3423, %v3519
    %v3552 = vpack.c.bf16 %v3520, %v3520
    %v3553 = vpack.c.bf16 %v3521, %v3521
    %v3554 = vpack.c.bf16 %v3522, %v3522
    %v3555 = vpack.c.bf16 %v3523, %v3523
    %v3556 = vpack.c.bf16 %v3524, %v3524
    %v3557 = vpack.c.bf16 %v3525, %v3525
    %v3558 = vpack.c.bf16 %v3526, %v3526
    %v3559 = vpack.c.bf16 %v3527, %v3527
    %v3560 = vpack.c.bf16 %v3528, %v3528
    %v3561 = vpack.c.bf16 %v3529, %v3529
    %v3562 = vpack.c.bf16 %v3530, %v3530
    %v3563 = vpack.c.bf16 %v3531, %v3531
    %v3564 = vpack.c.bf16 %v3532, %v3532
    %v3565 = vpack.c.bf16 %v3533, %v3533
    %v3566 = vpack.c.bf16 %v3534, %v3534
    %v3567 = vpack.c.bf16 %v3535, %v3535
    %v3568 = vpack.c.bf16 %v3536, %v3536
    %v3569 = vpack.c.bf16 %v3537, %v3537
    %v3570 = vpack.c.bf16 %v3538, %v3538
    %v3571 = vpack.c.bf16 %v3539, %v3539
    %v3572 = vpack.c.bf16 %v3540, %v3540
    %v3573 = vpack.c.bf16 %v3541, %v3541
    %v3574 = vpack.c.bf16 %v3542, %v3542
    %v3575 = vpack.c.bf16 %v3543, %v3543
    %v3576 = vpack.c.bf16 %v3544, %v3544
    %v3577 = vpack.c.bf16 %v3545, %v3545
    %v3578 = vpack.c.bf16 %v3546, %v3546
    %v3579 = vpack.c.bf16 %v3547, %v3547
    %v3580 = vpack.c.bf16 %v3548, %v3548
    %v3581 = vpack.c.bf16 %v3549, %v3549
    %v3582 = vpack.c.bf16 %v3550, %v3550
    %v3583 = vpack.c.bf16 %v3551, %v3551
    %v3600 = vunpack.c.l.b16 %v3552
    %v3601 = vunpack.c.l.b16 %v3553
    %v3602 = vunpack.c.l.b16 %v3554
    %v3603 = vunpack.c.l.b16 %v3555
    %v3604 = vunpack.c.l.b16 %v3556
    %v3605 = vunpack.c.l.b16 %v3557
    %v3606 = vunpack.c.l.b16 %v3558
    %v3607 = vunpack.c.l.b16 %v3559
    %v3608 = vunpack.c.l.b16 %v3560
    %v3609 = vunpack.c.l.b16 %v3561
    %v3610 = vunpack.c.l.b16 %v3562
    %v3611 = vunpack.c.l.b16 %v3563
    %v3612 = vunpack.c.l.b16 %v3564
    %v3613 = vunpack.c.l.b16 %v3565
    %v3614 = vunpack.c.l.b16 %v3566
    %v3615 = vunpack.c.l.b16 %v3567
    %v3616 = vpack.c.b16 %v3601, %v3600
    %v3617 = vpack.c.b16 %v3603, %v3602
    %v3618 = vpack.c.b16 %v3605, %v3604
    %v3619 = vpack.c.b16 %v3607, %v3606
    %v3620 = vpack.c.b16 %v3609, %v3608
    %v3621 = vpack.c.b16 %v3611, %v3610
    %v3622 = vpack.c.b16 %v3613, %v3612
    %v3623 = vpack.c.b16 %v3615, %v3614
    %3632 = vmatpush.bf16.msra.mxu0 %v1537
    %3633 = vmatpush.bf16.msra.mxu0 %v1535
    %3634 = vmatpush.bf16.msra.mxu0 %v1533
    %3635 = vmatpush.bf16.msra.mxu0 %v1531
    %3636 = vmatpush.bf16.msra.mxu0 %v1529
    %3637 = vmatpush.bf16.msra.mxu0 %v1527
    %3638 = vmatpush.bf16.msra.mxu0 %v1525
    %3639 = vmatpush.bf16.msra.mxu0 %v1523
    %3640 = vmatmul.bf16.gmra.mxu0 %v3616
    %v3641 = vpop.f32.mrf.mxu0
    %v3642 = vadd.f32 %v2609, %v3641
    %v3643 = vpop.f32.mrf.mxu0
    %v3644 = vadd.f32 %v2609, %v3643
    %3645 = vmatmul.bf16.gmra.mxu0 %v3617
    %v3646 = vpop.f32.mrf.mxu0
    %v3647 = vadd.f32 %v2609, %v3646
    %v3648 = vpop.f32.mrf.mxu0
    %v3649 = vadd.f32 %v2609, %v3648
    %3650 = vmatmul.bf16.gmra.mxu0 %v3618
    %v3651 = vpop.f32.mrf.mxu0
    %v3652 = vadd.f32 %v2609, %v3651
    %v3653 = vpop.f32.mrf.mxu0
    %v3654 = vadd.f32 %v2609, %v3653
    %3655 = vmatmul.bf16.gmra.mxu0 %v3619
    %v3656 = vpop.f32.mrf.mxu0
    %v3657 = vadd.f32 %v2609, %v3656
    %v3658 = vpop.f32.mrf.mxu0
    %v3659 = vadd.f32 %v2609, %v3658
    %3660 = vmatmul.bf16.gmra.mxu0 %v3620
    %v3661 = vpop.f32.mrf.mxu0
    %v3662 = vadd.f32 %v2609, %v3661
    %v3663 = vpop.f32.mrf.mxu0
    %v3664 = vadd.f32 %v2609, %v3663
    %3665 = vmatmul.bf16.gmra.mxu0 %v3621
    %v3666 = vpop.f32.mrf.mxu0
    %v3667 = vadd.f32 %v2609, %v3666
    %v3668 = vpop.f32.mrf.mxu0
    %v3669 = vadd.f32 %v2609, %v3668
    %3670 = vmatmul.bf16.gmra.mxu0 %v3622
    %v3671 = vpop.f32.mrf.mxu0
    %v3672 = vadd.f32 %v2609, %v3671
    %v3673 = vpop.f32.mrf.mxu0
    %v3674 = vadd.f32 %v2609, %v3673
    %3675 = vmatmul.bf16.gmra.mxu0 %v3623
    %v3676 = vpop.f32.mrf.mxu0
    %v3677 = vadd.f32 %v2609, %v3676
    %v3678 = vpop.f32.mrf.mxu0
    %v3679 = vadd.f32 %v2609, %v3678
    %3680 = vdwg.mxu0
    %vm3681 = vcmp.gt.f32.partialorder %v3642, 0.0
    %vm3682 = vcmp.gt.f32.partialorder %v3644, 0.0
    %vm3683 = vcmp.gt.f32.partialorder %v3647, 0.0
    %vm3684 = vcmp.gt.f32.partialorder %v3649, 0.0
    %vm3685 = vcmp.gt.f32.partialorder %v3652, 0.0
    %vm3686 = vcmp.gt.f32.partialorder %v3654, 0.0
    %vm3687 = vcmp.gt.f32.partialorder %v3657, 0.0
    %vm3688 = vcmp.gt.f32.partialorder %v3659, 0.0
    %vm3689 = vcmp.gt.f32.partialorder %v3662, 0.0
    %vm3690 = vcmp.gt.f32.partialorder %v3664, 0.0
    %vm3691 = vcmp.gt.f32.partialorder %v3667, 0.0
    %vm3692 = vcmp.gt.f32.partialorder %v3669, 0.0
    %vm3693 = vcmp.gt.f32.partialorder %v3672, 0.0
    %vm3694 = vcmp.gt.f32.partialorder %v3674, 0.0
    %vm3695 = vcmp.gt.f32.partialorder %v3677, 0.0
    %vm3696 = vcmp.gt.f32.partialorder %v3679, 0.0
    %v3697 = vmul.f32 %v3642, 0.01
    %v3698 = vmul.f32 %v3644, 0.01
    %v3699 = vmul.f32 %v3647, 0.01
    %v3700 = vmul.f32 %v3649, 0.01
    %v3701 = vmul.f32 %v3652, 0.01
    %v3702 = vmul.f32 %v3654, 0.01
    %v3703 = vmul.f32 %v3657, 0.01
    %v3704 = vmul.f32 %v3659, 0.01
    %v3705 = vmul.f32 %v3662, 0.01
    %v3706 = vmul.f32 %v3664, 0.01
    %v3707 = vmul.f32 %v3667, 0.01
    %v3708 = vmul.f32 %v3669, 0.01
    %v3709 = vmul.f32 %v3672, 0.01
    %v3710 = vmul.f32 %v3674, 0.01
    %v3711 = vmul.f32 %v3677, 0.01
    %v3712 = vmul.f32 %v3679, 0.01
    %v3713 = vsel %vm3681, %v3642, %v3697
    %v3714 = vsel %vm3682, %v3644, %v3698
    %v3715 = vsel %vm3683, %v3647, %v3699
    %v3716 = vsel %vm3684, %v3649, %v3700
    %v3717 = vsel %vm3685, %v3652, %v3701
    %v3718 = vsel %vm3686, %v3654, %v3702
    %v3719 = vsel %vm3687, %v3657, %v3703
    %v3720 = vsel %vm3688, %v3659, %v3704
    %v3721 = vsel %vm3689, %v3662, %v3705
    %v3722 = vsel %vm3690, %v3664, %v3706
    %v3723 = vsel %vm3691, %v3667, %v3707
    %v3724 = vsel %vm3692, %v3669, %v3708
    %v3725 = vsel %vm3693, %v3672, %v3709
    %v3726 = vsel %vm3694, %v3674, %v3710
    %v3727 = vsel %vm3695, %v3677, %v3711
    %v3728 = vsel %vm3696, %v3679, %v3712
    %v3745 = vunpack.c.l.b16 %v3568
    %v3746 = vunpack.c.l.b16 %v3569
    %v3747 = vunpack.c.l.b16 %v3570
    %v3748 = vunpack.c.l.b16 %v3571
    %v3749 = vunpack.c.l.b16 %v3572
    %v3750 = vunpack.c.l.b16 %v3573
    %v3751 = vunpack.c.l.b16 %v3574
    %v3752 = vunpack.c.l.b16 %v3575
    %v3753 = vunpack.c.l.b16 %v3576
    %v3754 = vunpack.c.l.b16 %v3577
    %v3755 = vunpack.c.l.b16 %v3578
    %v3756 = vunpack.c.l.b16 %v3579
    %v3757 = vunpack.c.l.b16 %v3580
    %v3758 = vunpack.c.l.b16 %v3581
    %v3759 = vunpack.c.l.b16 %v3582
    %v3760 = vunpack.c.l.b16 %v3583
    %v3761 = vpack.c.b16 %v3746, %v3745
    %v3762 = vpack.c.b16 %v3748, %v3747
    %v3763 = vpack.c.b16 %v3750, %v3749
    %v3764 = vpack.c.b16 %v3752, %v3751
    %v3765 = vpack.c.b16 %v3754, %v3753
    %v3766 = vpack.c.b16 %v3756, %v3755
    %v3767 = vpack.c.b16 %v3758, %v3757
    %v3768 = vpack.c.b16 %v3760, %v3759
    %3777 = vmatpush.bf16.msra.mxu0 %v1538
    %3778 = vmatpush.bf16.msra.mxu0 %v1536
    %3779 = vmatpush.bf16.msra.mxu0 %v1534
    %3780 = vmatpush.bf16.msra.mxu0 %v1532
    %3781 = vmatpush.bf16.msra.mxu0 %v1530
    %3782 = vmatpush.bf16.msra.mxu0 %v1528
    %3783 = vmatpush.bf16.msra.mxu0 %v1526
    %3784 = vmatpush.bf16.msra.mxu0 %v1524
    %3785 = vmatmul.bf16.gmra.mxu0 %v3761
    %v3786 = vpop.f32.mrf.mxu0
    %v3787 = vadd.f32 %v2758, %v3786
    %v3788 = vpop.f32.mrf.mxu0
    %v3789 = vadd.f32 %v2758, %v3788
    %3790 = vmatmul.bf16.gmra.mxu0 %v3762
    %v3791 = vpop.f32.mrf.mxu0
    %v3792 = vadd.f32 %v2758, %v3791
    %v3793 = vpop.f32.mrf.mxu0
    %v3794 = vadd.f32 %v2758, %v3793
    %3795 = vmatmul.bf16.gmra.mxu0 %v3763
    %v3796 = vpop.f32.mrf.mxu0
    %v3797 = vadd.f32 %v2758, %v3796
    %v3798 = vpop.f32.mrf.mxu0
    %v3799 = vadd.f32 %v2758, %v3798
    %3800 = vmatmul.bf16.gmra.mxu0 %v3764
    %v3801 = vpop.f32.mrf.mxu0
    %v3802 = vadd.f32 %v2758, %v3801
    %v3803 = vpop.f32.mrf.mxu0
    %v3804 = vadd.f32 %v2758, %v3803
    %3805 = vmatmul.bf16.gmra.mxu0 %v3765
    %v3806 = vpop.f32.mrf.mxu0
    %v3807 = vadd.f32 %v2758, %v3806
    %v3808 = vpop.f32.mrf.mxu0
    %v3809 = vadd.f32 %v2758, %v3808
    %3810 = vmatmul.bf16.gmra.mxu0 %v3766
    %v3811 = vpop.f32.mrf.mxu0
    %v3812 = vadd.f32 %v2758, %v3811
    %v3813 = vpop.f32.mrf.mxu0
    %v3814 = vadd.f32 %v2758, %v3813
    %3815 = vmatmul.bf16.gmra.mxu0 %v3767
    %v3816 = vpop.f32.mrf.mxu0
    %v3817 = vadd.f32 %v2758, %v3816
    %v3818 = vpop.f32.mrf.mxu0
    %v3819 = vadd.f32 %v2758, %v3818
    %3820 = vmatmul.bf16.gmra.mxu0 %v3768
    %v3821 = vpop.f32.mrf.mxu0
    %v3822 = vadd.f32 %v2758, %v3821
    %v3823 = vpop.f32.mrf.mxu0
    %v3824 = vadd.f32 %v2758, %v3823
    %3825 = vdwg.mxu0
    %vm3826 = vcmp.gt.f32.partialorder %v3787, 0.0
    %vm3827 = vcmp.gt.f32.partialorder %v3789, 0.0
    %vm3828 = vcmp.gt.f32.partialorder %v3792, 0.0
    %vm3829 = vcmp.gt.f32.partialorder %v3794, 0.0
    %vm3830 = vcmp.gt.f32.partialorder %v3797, 0.0
    %vm3831 = vcmp.gt.f32.partialorder %v3799, 0.0
    %vm3832 = vcmp.gt.f32.partialorder %v3802, 0.0
    %vm3833 = vcmp.gt.f32.partialorder %v3804, 0.0
    %vm3834 = vcmp.gt.f32.partialorder %v3807, 0.0
    %vm3835 = vcmp.gt.f32.partialorder %v3809, 0.0
    %vm3836 = vcmp.gt.f32.partialorder %v3812, 0.0
    %vm3837 = vcmp.gt.f32.partialorder %v3814, 0.0
    %vm3838 = vcmp.gt.f32.partialorder %v3817, 0.0
    %vm3839 = vcmp.gt.f32.partialorder %v3819, 0.0
    %vm3840 = vcmp.gt.f32.partialorder %v3822, 0.0
    %vm3841 = vcmp.gt.f32.partialorder %v3824, 0.0
    %v3842 = vmul.f32 %v3787, 0.01
    %v3843 = vmul.f32 %v3789, 0.01
    %v3844 = vmul.f32 %v3792, 0.01
    %v3845 = vmul.f32 %v3794, 0.01
    %v3846 = vmul.f32 %v3797, 0.01
    %v3847 = vmul.f32 %v3799, 0.01
    %v3848 = vmul.f32 %v3802, 0.01
    %v3849 = vmul.f32 %v3804, 0.01
    %v3850 = vmul.f32 %v3807, 0.01
    %v3851 = vmul.f32 %v3809, 0.01
    %v3852 = vmul.f32 %v3812, 0.01
    %v3853 = vmul.f32 %v3814, 0.01
    %v3854 = vmul.f32 %v3817, 0.01
    %v3855 = vmul.f32 %v3819, 0.01
    %v3856 = vmul.f32 %v3822, 0.01
    %v3857 = vmul.f32 %v3824, 0.01
    %v3858 = vsel %vm3826, %v3787, %v3842
    %v3859 = vsel %vm3827, %v3789, %v3843
    %v3860 = vsel %vm3828, %v3792, %v3844
    %v3861 = vsel %vm3829, %v3794, %v3845
    %v3862 = vsel %vm3830, %v3797, %v3846
    %v3863 = vsel %vm3831, %v3799, %v3847
    %v3864 = vsel %vm3832, %v3802, %v3848
    %v3865 = vsel %vm3833, %v3804, %v3849
    %v3866 = vsel %vm3834, %v3807, %v3850
    %v3867 = vsel %vm3835, %v3809, %v3851
    %v3868 = vsel %vm3836, %v3812, %v3852
    %v3869 = vsel %vm3837, %v3814, %v3853
    %v3870 = vsel %vm3838, %v3817, %v3854
    %v3871 = vsel %vm3839, %v3819, %v3855
    %v3872 = vsel %vm3840, %v3822, %v3856
    %v3873 = vsel %vm3841, %v3824, %v3857
    %v3874 = vpack.c.bf16 %v2741, %v2740
    %v3875 = vpack.c.bf16 %v2743, %v2742
    %v3876 = vpack.c.bf16 %v2745, %v2744
    %v3877 = vpack.c.bf16 %v2747, %v2746
    %v3878 = vpack.c.bf16 %v2749, %v2748
    %v3879 = vpack.c.bf16 %v2751, %v2750
    %v3880 = vpack.c.bf16 %v2753, %v2752
    %v3881 = vpack.c.bf16 %v2755, %v2754
    %v3882 = vpack.c.bf16 %v3714, %v3713
    %v3883 = vpack.c.bf16 %v3716, %v3715
    %v3884 = vpack.c.bf16 %v3718, %v3717
    %v3885 = vpack.c.bf16 %v3720, %v3719
    %v3886 = vpack.c.bf16 %v3722, %v3721
    %v3887 = vpack.c.bf16 %v3724, %v3723
    %v3888 = vpack.c.bf16 %v3726, %v3725
    %v3889 = vpack.c.bf16 %v3728, %v3727
    %v3890 = vld [vmem:[%s6] sm:$0xf]
    %v3891 = vld [vmem:[%s6 + $0x4] sm:$0xf]
    %v3892 = vld [vmem:[%s6 + $0x8] sm:$0xf]
    %v3893 = vld [vmem:[%s6 + $0xc] sm:$0xf]
    %v3894 = vld [vmem:[%s6 + $0x10] sm:$0xf]
    %v3895 = vld [vmem:[%s6 + $0x14] sm:$0xf]
    %v3896 = vld [vmem:[%s6 + $0x18] sm:$0xf]
    %v3897 = vld [vmem:[%s6 + $0x1c] sm:$0xf]
    %v3898 = vld [vmem:[%s6 + $0x20] sm:$0xf]
    %v3899 = vld [vmem:[%s6 + $0x24] sm:$0xf]
    %v3900 = vld [vmem:[%s6 + $0x28] sm:$0xf]
    %v3901 = vld [vmem:[%s6 + $0x2c] sm:$0xf]
    %v3902 = vld [vmem:[%s6 + $0x30] sm:$0xf]
    %v3903 = vld [vmem:[%s6 + $0x34] sm:$0xf]
    %v3904 = vld [vmem:[%s6 + $0x38] sm:$0xf]
    %v3905 = vld [vmem:[%s6 + $0x3c] sm:$0xf]
    %v3906 = vpack.c.bf16 %v2890, %v2889
    %v3907 = vpack.c.bf16 %v2892, %v2891
    %v3908 = vpack.c.bf16 %v2894, %v2893
    %v3909 = vpack.c.bf16 %v2896, %v2895
    %v3910 = vpack.c.bf16 %v2898, %v2897
    %v3911 = vpack.c.bf16 %v2900, %v2899
    %v3912 = vpack.c.bf16 %v2902, %v2901
    %v3913 = vpack.c.bf16 %v2904, %v2903
    %v3914 = vpack.c.bf16 %v3859, %v3858
    %v3915 = vpack.c.bf16 %v3861, %v3860
    %v3916 = vpack.c.bf16 %v3863, %v3862
    %v3917 = vpack.c.bf16 %v3865, %v3864
    %v3918 = vpack.c.bf16 %v3867, %v3866
    %v3919 = vpack.c.bf16 %v3869, %v3868
    %v3920 = vpack.c.bf16 %v3871, %v3870
    %v3921 = vpack.c.bf16 %v3873, %v3872
    %v3922 = vld [vmem:[%s7] sm:$0xf]
    %v3923 = vld [vmem:[%s7 + $0x4] sm:$0xf]
    %v3924 = vld [vmem:[%s7 + $0x8] sm:$0xf]
    %v3925 = vld [vmem:[%s7 + $0xc] sm:$0xf]
    %v3926 = vld [vmem:[%s7 + $0x10] sm:$0xf]
    %v3927 = vld [vmem:[%s7 + $0x14] sm:$0xf]
    %v3928 = vld [vmem:[%s7 + $0x18] sm:$0xf]
    %v3929 = vld [vmem:[%s7 + $0x1c] sm:$0xf]
    %v3930 = vld [vmem:[%s7 + $0x20] sm:$0xf]
    %v3931 = vld [vmem:[%s7 + $0x24] sm:$0xf]
    %v3932 = vld [vmem:[%s7 + $0x28] sm:$0xf]
    %v3933 = vld [vmem:[%s7 + $0x2c] sm:$0xf]
    %v3934 = vld [vmem:[%s7 + $0x30] sm:$0xf]
    %v3935 = vld [vmem:[%s7 + $0x34] sm:$0xf]
    %v3936 = vld [vmem:[%s7 + $0x38] sm:$0xf]
    %v3937 = vld [vmem:[%s7 + $0x3c] sm:$0xf]
    %v3954 = vunpack.c.l.b16 %v3922
    %v3955 = vunpack.c.l.b16 %v3923
    %v3956 = vunpack.c.l.b16 %v3924
    %v3957 = vunpack.c.l.b16 %v3925
    %v3958 = vunpack.c.l.b16 %v3926
    %v3959 = vunpack.c.l.b16 %v3927
    %v3960 = vunpack.c.l.b16 %v3928
    %v3961 = vunpack.c.l.b16 %v3929
    %v3962 = vunpack.c.l.b16 %v3930
    %v3963 = vunpack.c.l.b16 %v3931
    %v3964 = vunpack.c.l.b16 %v3932
    %v3965 = vunpack.c.l.b16 %v3933
    %v3966 = vunpack.c.l.b16 %v3934
    %v3967 = vunpack.c.l.b16 %v3935
    %v3968 = vunpack.c.l.b16 %v3936
    %v3969 = vunpack.c.l.b16 %v3937
    %v3970 = vpack.c.b16 %v3955, %v3954
    %v3971 = vpack.c.b16 %v3957, %v3956
    %v3972 = vpack.c.b16 %v3959, %v3958
    %v3973 = vpack.c.b16 %v3961, %v3960
    %v3974 = vpack.c.b16 %v3963, %v3962
    %v3975 = vpack.c.b16 %v3965, %v3964
    %v3976 = vpack.c.b16 %v3967, %v3966
    %v3977 = vpack.c.b16 %v3969, %v3968
    %3986 = vmatpush.bf16.msra.mxu0 %v3977
    %3987 = vmatpush.bf16.msra.mxu0 %v3976
    %3988 = vmatpush.bf16.msra.mxu0 %v3975
    %3989 = vmatpush.bf16.msra.mxu0 %v3974
    %3990 = vmatpush.bf16.msra.mxu0 %v3973
    %3991 = vmatpush.bf16.msra.mxu0 %v3972
    %3992 = vmatpush.bf16.msra.mxu0 %v3971
    %3993 = vmatpush.bf16.msra.mxu0 %v3970
    %3994 = vmatmul.bf16.gmra.mxu0 %v3906
    %v3995 = vpop.f32.mrf.mxu0
    %v3996 = vadd.f32 0.0, %v3995
    %v3997 = vpop.f32.mrf.mxu0
    %v3998 = vadd.f32 0.0, %v3997
    %3999 = vmatmul.bf16.gmra.mxu0 %v3907
    %v4000 = vpop.f32.mrf.mxu0
    %v4001 = vadd.f32 0.0, %v4000
    %v4002 = vpop.f32.mrf.mxu0
    %v4003 = vadd.f32 0.0, %v4002
    %4004 = vmatmul.bf16.gmra.mxu0 %v3908
    %v4005 = vpop.f32.mrf.mxu0
    %v4006 = vadd.f32 0.0, %v4005
    %v4007 = vpop.f32.mrf.mxu0
    %v4008 = vadd.f32 0.0, %v4007
    %4009 = vmatmul.bf16.gmra.mxu0 %v3909
    %v4010 = vpop.f32.mrf.mxu0
    %v4011 = vadd.f32 0.0, %v4010
    %v4012 = vpop.f32.mrf.mxu0
    %v4013 = vadd.f32 0.0, %v4012
    %4014 = vmatmul.bf16.gmra.mxu0 %v3910
    %v4015 = vpop.f32.mrf.mxu0
    %v4016 = vadd.f32 0.0, %v4015
    %v4017 = vpop.f32.mrf.mxu0
    %v4018 = vadd.f32 0.0, %v4017
    %4019 = vmatmul.bf16.gmra.mxu0 %v3911
    %v4020 = vpop.f32.mrf.mxu0
    %v4021 = vadd.f32 0.0, %v4020
    %v4022 = vpop.f32.mrf.mxu0
    %v4023 = vadd.f32 0.0, %v4022
    %4024 = vmatmul.bf16.gmra.mxu0 %v3912
    %v4025 = vpop.f32.mrf.mxu0
    %v4026 = vadd.f32 0.0, %v4025
    %v4027 = vpop.f32.mrf.mxu0
    %v4028 = vadd.f32 0.0, %v4027
    %4029 = vmatmul.bf16.gmra.mxu0 %v3913
    %v4030 = vpop.f32.mrf.mxu0
    %v4031 = vadd.f32 0.0, %v4030
    %v4032 = vpop.f32.mrf.mxu0
    %v4033 = vadd.f32 0.0, %v4032
    %4034 = vmatmul.bf16.gmra.mxu0 %v3914
    %v4035 = vpop.f32.mrf.mxu0
    %v4036 = vadd.f32 0.0, %v4035
    %v4037 = vpop.f32.mrf.mxu0
    %v4038 = vadd.f32 0.0, %v4037
    %4039 = vmatmul.bf16.gmra.mxu0 %v3915
    %v4040 = vpop.f32.mrf.mxu0
    %v4041 = vadd.f32 0.0, %v4040
    %v4042 = vpop.f32.mrf.mxu0
    %v4043 = vadd.f32 0.0, %v4042
    %4044 = vmatmul.bf16.gmra.mxu0 %v3916
    %v4045 = vpop.f32.mrf.mxu0
    %v4046 = vadd.f32 0.0, %v4045
    %v4047 = vpop.f32.mrf.mxu0
    %v4048 = vadd.f32 0.0, %v4047
    %4049 = vmatmul.bf16.gmra.mxu0 %v3917
    %v4050 = vpop.f32.mrf.mxu0
    %v4051 = vadd.f32 0.0, %v4050
    %v4052 = vpop.f32.mrf.mxu0
    %v4053 = vadd.f32 0.0, %v4052
    %4054 = vmatmul.bf16.gmra.mxu0 %v3918
    %v4055 = vpop.f32.mrf.mxu0
    %v4056 = vadd.f32 0.0, %v4055
    %v4057 = vpop.f32.mrf.mxu0
    %v4058 = vadd.f32 0.0, %v4057
    %4059 = vmatmul.bf16.gmra.mxu0 %v3919
    %v4060 = vpop.f32.mrf.mxu0
    %v4061 = vadd.f32 0.0, %v4060
    %v4062 = vpop.f32.mrf.mxu0
    %v4063 = vadd.f32 0.0, %v4062
    %4064 = vmatmul.bf16.gmra.mxu0 %v3920
    %v4065 = vpop.f32.mrf.mxu0
    %v4066 = vadd.f32 0.0, %v4065
    %v4067 = vpop.f32.mrf.mxu0
    %v4068 = vadd.f32 0.0, %v4067
    %4069 = vmatmul.bf16.gmra.mxu0 %v3921
    %v4070 = vpop.f32.mrf.mxu0
    %v4071 = vadd.f32 0.0, %v4070
    %v4072 = vpop.f32.mrf.mxu0
    %v4073 = vadd.f32 0.0, %v4072
    %4074 = vdwg.mxu0
    %v4091 = vunpack.c.l.b16 %v3890
    %v4092 = vunpack.c.l.b16 %v3891
    %v4093 = vunpack.c.l.b16 %v3892
    %v4094 = vunpack.c.l.b16 %v3893
    %v4095 = vunpack.c.l.b16 %v3894
    %v4096 = vunpack.c.l.b16 %v3895
    %v4097 = vunpack.c.l.b16 %v3896
    %v4098 = vunpack.c.l.b16 %v3897
    %v4099 = vunpack.c.l.b16 %v3898
    %v4100 = vunpack.c.l.b16 %v3899
    %v4101 = vunpack.c.l.b16 %v3900
    %v4102 = vunpack.c.l.b16 %v3901
    %v4103 = vunpack.c.l.b16 %v3902
    %v4104 = vunpack.c.l.b16 %v3903
    %v4105 = vunpack.c.l.b16 %v3904
    %v4106 = vunpack.c.l.b16 %v3905
    %v4107 = vpack.c.b16 %v4092, %v4091
    %v4108 = vpack.c.b16 %v4094, %v4093
    %v4109 = vpack.c.b16 %v4096, %v4095
    %v4110 = vpack.c.b16 %v4098, %v4097
    %v4111 = vpack.c.b16 %v4100, %v4099
    %v4112 = vpack.c.b16 %v4102, %v4101
    %v4113 = vpack.c.b16 %v4104, %v4103
    %v4114 = vpack.c.b16 %v4106, %v4105
    %4123 = vmatpush.bf16.msra.mxu0 %v4114
    %4124 = vmatpush.bf16.msra.mxu0 %v4113
    %4125 = vmatpush.bf16.msra.mxu0 %v4112
    %4126 = vmatpush.bf16.msra.mxu0 %v4111
    %4127 = vmatpush.bf16.msra.mxu0 %v4110
    %4128 = vmatpush.bf16.msra.mxu0 %v4109
    %4129 = vmatpush.bf16.msra.mxu0 %v4108
    %4130 = vmatpush.bf16.msra.mxu0 %v4107
    %4131 = vmatmul.bf16.gmra.mxu0 %v3874
    %v4132 = vpop.f32.mrf.mxu0
    %v4133 = vadd.f32 %v3996, %v4132
    %v4134 = vpop.f32.mrf.mxu0
    %v4135 = vadd.f32 %v3998, %v4134
    %4136 = vmatmul.bf16.gmra.mxu0 %v3875
    %v4137 = vpop.f32.mrf.mxu0
    %v4138 = vadd.f32 %v4001, %v4137
    %v4139 = vpop.f32.mrf.mxu0
    %v4140 = vadd.f32 %v4003, %v4139
    %4141 = vmatmul.bf16.gmra.mxu0 %v3876
    %v4142 = vpop.f32.mrf.mxu0
    %v4143 = vadd.f32 %v4006, %v4142
    %v4144 = vpop.f32.mrf.mxu0
    %v4145 = vadd.f32 %v4008, %v4144
    %4146 = vmatmul.bf16.gmra.mxu0 %v3877
    %v4147 = vpop.f32.mrf.mxu0
    %v4148 = vadd.f32 %v4011, %v4147
    %v4149 = vpop.f32.mrf.mxu0
    %v4150 = vadd.f32 %v4013, %v4149
    %4151 = vmatmul.bf16.gmra.mxu0 %v3878
    %v4152 = vpop.f32.mrf.mxu0
    %v4153 = vadd.f32 %v4016, %v4152
    %v4154 = vpop.f32.mrf.mxu0
    %v4155 = vadd.f32 %v4018, %v4154
    %4156 = vmatmul.bf16.gmra.mxu0 %v3879
    %v4157 = vpop.f32.mrf.mxu0
    %v4158 = vadd.f32 %v4021, %v4157
    %v4159 = vpop.f32.mrf.mxu0
    %v4160 = vadd.f32 %v4023, %v4159
    %4161 = vmatmul.bf16.gmra.mxu0 %v3880
    %v4162 = vpop.f32.mrf.mxu0
    %v4163 = vadd.f32 %v4026, %v4162
    %v4164 = vpop.f32.mrf.mxu0
    %v4165 = vadd.f32 %v4028, %v4164
    %4166 = vmatmul.bf16.gmra.mxu0 %v3881
    %v4167 = vpop.f32.mrf.mxu0
    %v4168 = vadd.f32 %v4031, %v4167
    %v4169 = vpop.f32.mrf.mxu0
    %v4170 = vadd.f32 %v4033, %v4169
    %4171 = vmatmul.bf16.gmra.mxu0 %v3882
    %v4172 = vpop.f32.mrf.mxu0
    %v4173 = vadd.f32 %v4036, %v4172
    %v4174 = vpop.f32.mrf.mxu0
    %v4175 = vadd.f32 %v4038, %v4174
    %4176 = vmatmul.bf16.gmra.mxu0 %v3883
    %v4177 = vpop.f32.mrf.mxu0
    %v4178 = vadd.f32 %v4041, %v4177
    %v4179 = vpop.f32.mrf.mxu0
    %v4180 = vadd.f32 %v4043, %v4179
    %4181 = vmatmul.bf16.gmra.mxu0 %v3884
    %v4182 = vpop.f32.mrf.mxu0
    %v4183 = vadd.f32 %v4046, %v4182
    %v4184 = vpop.f32.mrf.mxu0
    %v4185 = vadd.f32 %v4048, %v4184
    %4186 = vmatmul.bf16.gmra.mxu0 %v3885
    %v4187 = vpop.f32.mrf.mxu0
    %v4188 = vadd.f32 %v4051, %v4187
    %v4189 = vpop.f32.mrf.mxu0
    %v4190 = vadd.f32 %v4053, %v4189
    %4191 = vmatmul.bf16.gmra.mxu0 %v3886
    %v4192 = vpop.f32.mrf.mxu0
    %v4193 = vadd.f32 %v4056, %v4192
    %v4194 = vpop.f32.mrf.mxu0
    %v4195 = vadd.f32 %v4058, %v4194
    %4196 = vmatmul.bf16.gmra.mxu0 %v3887
    %v4197 = vpop.f32.mrf.mxu0
    %v4198 = vadd.f32 %v4061, %v4197
    %v4199 = vpop.f32.mrf.mxu0
    %v4200 = vadd.f32 %v4063, %v4199
    %4201 = vmatmul.bf16.gmra.mxu0 %v3888
    %v4202 = vpop.f32.mrf.mxu0
    %v4203 = vadd.f32 %v4066, %v4202
    %v4204 = vpop.f32.mrf.mxu0
    %v4205 = vadd.f32 %v4068, %v4204
    %4206 = vmatmul.bf16.gmra.mxu0 %v3889
    %v4207 = vpop.f32.mrf.mxu0
    %v4208 = vadd.f32 %v4071, %v4207
    %v4209 = vpop.f32.mrf.mxu0
    %v4210 = vadd.f32 %v4073, %v4209
    %4211 = vdwg.mxu0
    %v4212 = vld [vmem:[%s8] sm:$0x1]
    %v4214 = vperm.slane %v4212, 0
    %v4216 = vadd.f32 %v4133, %v4214
    %v4217 = vadd.f32 %v4135, %v4214
    %v4218 = vadd.f32 %v4138, %v4214
    %v4219 = vadd.f32 %v4140, %v4214
    %v4220 = vadd.f32 %v4143, %v4214
    %v4221 = vadd.f32 %v4145, %v4214
    %v4222 = vadd.f32 %v4148, %v4214
    %v4223 = vadd.f32 %v4150, %v4214
    %v4224 = vadd.f32 %v4153, %v4214
    %v4225 = vadd.f32 %v4155, %v4214
    %v4226 = vadd.f32 %v4158, %v4214
    %v4227 = vadd.f32 %v4160, %v4214
    %v4228 = vadd.f32 %v4163, %v4214
    %v4229 = vadd.f32 %v4165, %v4214
    %v4230 = vadd.f32 %v4168, %v4214
    %v4231 = vadd.f32 %v4170, %v4214
    %v4232 = vadd.f32 %v4173, %v4214
    %v4233 = vadd.f32 %v4175, %v4214
    %v4234 = vadd.f32 %v4178, %v4214
    %v4235 = vadd.f32 %v4180, %v4214
    %v4236 = vadd.f32 %v4183, %v4214
    %v4237 = vadd.f32 %v4185, %v4214
    %v4238 = vadd.f32 %v4188, %v4214
    %v4239 = vadd.f32 %v4190, %v4214
    %v4240 = vadd.f32 %v4193, %v4214
    %v4241 = vadd.f32 %v4195, %v4214
    %v4242 = vadd.f32 %v4198, %v4214
    %v4243 = vadd.f32 %v4200, %v4214
    %v4244 = vadd.f32 %v4203, %v4214
    %v4245 = vadd.f32 %v4205, %v4214
    %v4246 = vadd.f32 %v4208, %v4214
    %v4247 = vadd.f32 %v4210, %v4214
    %vm4248 = vcmp.gt.f32.partialorder %v4216, 0.0
    %vm4249 = vcmp.gt.f32.partialorder %v4217, 0.0
    %vm4250 = vcmp.gt.f32.partialorder %v4218, 0.0
    %vm4251 = vcmp.gt.f32.partialorder %v4219, 0.0
    %vm4252 = vcmp.gt.f32.partialorder %v4220, 0.0
    %vm4253 = vcmp.gt.f32.partialorder %v4221, 0.0
    %vm4254 = vcmp.gt.f32.partialorder %v4222, 0.0
    %vm4255 = vcmp.gt.f32.partialorder %v4223, 0.0
    %vm4256 = vcmp.gt.f32.partialorder %v4224, 0.0
    %vm4257 = vcmp.gt.f32.partialorder %v4225, 0.0
    %vm4258 = vcmp.gt.f32.partialorder %v4226, 0.0
    %vm4259 = vcmp.gt.f32.partialorder %v4227, 0.0
    %vm4260 = vcmp.gt.f32.partialorder %v4228, 0.0
    %vm4261 = vcmp.gt.f32.partialorder %v4229, 0.0
    %vm4262 = vcmp.gt.f32.partialorder %v4230, 0.0
    %vm4263 = vcmp.gt.f32.partialorder %v4231, 0.0
    %vm4264 = vcmp.gt.f32.partialorder %v4232, 0.0
    %vm4265 = vcmp.gt.f32.partialorder %v4233, 0.0
    %vm4266 = vcmp.gt.f32.partialorder %v4234, 0.0
    %vm4267 = vcmp.gt.f32.partialorder %v4235, 0.0
    %vm4268 = vcmp.gt.f32.partialorder %v4236, 0.0
    %vm4269 = vcmp.gt.f32.partialorder %v4237, 0.0
    %vm4270 = vcmp.gt.f32.partialorder %v4238, 0.0
    %vm4271 = vcmp.gt.f32.partialorder %v4239, 0.0
    %vm4272 = vcmp.gt.f32.partialorder %v4240, 0.0
    %vm4273 = vcmp.gt.f32.partialorder %v4241, 0.0
    %vm4274 = vcmp.gt.f32.partialorder %v4242, 0.0
    %vm4275 = vcmp.gt.f32.partialorder %v4243, 0.0
    %vm4276 = vcmp.gt.f32.partialorder %v4244, 0.0
    %vm4277 = vcmp.gt.f32.partialorder %v4245, 0.0
    %vm4278 = vcmp.gt.f32.partialorder %v4246, 0.0
    %vm4279 = vcmp.gt.f32.partialorder %v4247, 0.0
    %v4280 = vmul.f32 %v4216, 0.01
    %v4281 = vmul.f32 %v4217, 0.01
    %v4282 = vmul.f32 %v4218, 0.01
    %v4283 = vmul.f32 %v4219, 0.01
    %v4284 = vmul.f32 %v4220, 0.01
    %v4285 = vmul.f32 %v4221, 0.01
    %v4286 = vmul.f32 %v4222, 0.01
    %v4287 = vmul.f32 %v4223, 0.01
    %v4288 = vmul.f32 %v4224, 0.01
    %v4289 = vmul.f32 %v4225, 0.01
    %v4290 = vmul.f32 %v4226, 0.01
    %v4291 = vmul.f32 %v4227, 0.01
    %v4292 = vmul.f32 %v4228, 0.01
    %v4293 = vmul.f32 %v4229, 0.01
    %v4294 = vmul.f32 %v4230, 0.01
    %v4295 = vmul.f32 %v4231, 0.01
    %v4296 = vmul.f32 %v4232, 0.01
    %v4297 = vmul.f32 %v4233, 0.01
    %v4298 = vmul.f32 %v4234, 0.01
    %v4299 = vmul.f32 %v4235, 0.01
    %v4300 = vmul.f32 %v4236, 0.01
    %v4301 = vmul.f32 %v4237, 0.01
    %v4302 = vmul.f32 %v4238, 0.01
    %v4303 = vmul.f32 %v4239, 0.01
    %v4304 = vmul.f32 %v4240, 0.01
    %v4305 = vmul.f32 %v4241, 0.01
    %v4306 = vmul.f32 %v4242, 0.01
    %v4307 = vmul.f32 %v4243, 0.01
    %v4308 = vmul.f32 %v4244, 0.01
    %v4309 = vmul.f32 %v4245, 0.01
    %v4310 = vmul.f32 %v4246, 0.01
    %v4311 = vmul.f32 %v4247, 0.01
    %v4312 = vsel %vm4248, %v4216, %v4280
    %v4313 = vsel %vm4249, %v4217, %v4281
    %v4314 = vsel %vm4250, %v4218, %v4282
    %v4315 = vsel %vm4251, %v4219, %v4283
    %v4316 = vsel %vm4252, %v4220, %v4284
    %v4317 = vsel %vm4253, %v4221, %v4285
    %v4318 = vsel %vm4254, %v4222, %v4286
    %v4319 = vsel %vm4255, %v4223, %v4287
    %v4320 = vsel %vm4256, %v4224, %v4288
    %v4321 = vsel %vm4257, %v4225, %v4289
    %v4322 = vsel %vm4258, %v4226, %v4290
    %v4323 = vsel %vm4259, %v4227, %v4291
    %v4324 = vsel %vm4260, %v4228, %v4292
    %v4325 = vsel %vm4261, %v4229, %v4293
    %v4326 = vsel %vm4262, %v4230, %v4294
    %v4327 = vsel %vm4263, %v4231, %v4295
    %v4328 = vsel %vm4264, %v4232, %v4296
    %v4329 = vsel %vm4265, %v4233, %v4297
    %v4330 = vsel %vm4266, %v4234, %v4298
    %v4331 = vsel %vm4267, %v4235, %v4299
    %v4332 = vsel %vm4268, %v4236, %v4300
    %v4333 = vsel %vm4269, %v4237, %v4301
    %v4334 = vsel %vm4270, %v4238, %v4302
    %v4335 = vsel %vm4271, %v4239, %v4303
    %v4336 = vsel %vm4272, %v4240, %v4304
    %v4337 = vsel %vm4273, %v4241, %v4305
    %v4338 = vsel %vm4274, %v4242, %v4306
    %v4339 = vsel %vm4275, %v4243, %v4307
    %v4340 = vsel %vm4276, %v4244, %v4308
    %v4341 = vsel %vm4277, %v4245, %v4309
    %v4342 = vsel %vm4278, %v4246, %v4310
    %v4343 = vsel %vm4279, %v4247, %v4311
    %v4344 = vpack.c.bf16 %v4313, %v4312
    %v4345 = vpack.c.bf16 %v4315, %v4314
    %v4346 = vpack.c.bf16 %v4317, %v4316
    %v4347 = vpack.c.bf16 %v4319, %v4318
    %v4348 = vpack.c.bf16 %v4321, %v4320
    %v4349 = vpack.c.bf16 %v4323, %v4322
    %v4350 = vpack.c.bf16 %v4325, %v4324
    %v4351 = vpack.c.bf16 %v4327, %v4326
    %v4352 = vpack.c.bf16 %v4329, %v4328
    %v4353 = vpack.c.bf16 %v4331, %v4330
    %v4354 = vpack.c.bf16 %v4333, %v4332
    %v4355 = vpack.c.bf16 %v4335, %v4334
    %v4356 = vpack.c.bf16 %v4337, %v4336
    %v4357 = vpack.c.bf16 %v4339, %v4338
    %v4358 = vpack.c.bf16 %v4341, %v4340
    %v4359 = vpack.c.bf16 %v4343, %v4342
    %v4360 = vld [vmem:[%s9] sm:$0xf]
    %v4361 = vld [vmem:[%s9 + $0x4] sm:$0xf]
    %v4362 = vld [vmem:[%s9 + $0x8] sm:$0xf]
    %v4363 = vld [vmem:[%s9 + $0xc] sm:$0xf]
    %v4364 = vld [vmem:[%s9 + $0x10] sm:$0xf]
    %v4365 = vld [vmem:[%s9 + $0x14] sm:$0xf]
    %v4366 = vld [vmem:[%s9 + $0x18] sm:$0xf]
    %v4367 = vld [vmem:[%s9 + $0x1c] sm:$0xf]
    %v4368 = vld [vmem:[%s9 + $0x20] sm:$0xf]
    %v4369 = vld [vmem:[%s9 + $0x24] sm:$0xf]
    %v4370 = vld [vmem:[%s9 + $0x28] sm:$0xf]
    %v4371 = vld [vmem:[%s9 + $0x2c] sm:$0xf]
    %v4372 = vld [vmem:[%s9 + $0x30] sm:$0xf]
    %v4373 = vld [vmem:[%s9 + $0x34] sm:$0xf]
    %v4374 = vld [vmem:[%s9 + $0x38] sm:$0xf]
    %v4375 = vld [vmem:[%s9 + $0x3c] sm:$0xf]
    %v4376 = vld [vmem:[%s10] sm:$0x1]
    %v4378 = vperm.slane %v4376, 0
    %v4396 = vunpack.c.l.b16 %v4360
    %v4397 = vunpack.c.l.b16 %v4361
    %v4398 = vunpack.c.l.b16 %v4362
    %v4399 = vunpack.c.l.b16 %v4363
    %v4400 = vunpack.c.l.b16 %v4364
    %v4401 = vunpack.c.l.b16 %v4365
    %v4402 = vunpack.c.l.b16 %v4366
    %v4403 = vunpack.c.l.b16 %v4367
    %v4404 = vunpack.c.l.b16 %v4368
    %v4405 = vunpack.c.l.b16 %v4369
    %v4406 = vunpack.c.l.b16 %v4370
    %v4407 = vunpack.c.l.b16 %v4371
    %v4408 = vunpack.c.l.b16 %v4372
    %v4409 = vunpack.c.l.b16 %v4373
    %v4410 = vunpack.c.l.b16 %v4374
    %v4411 = vunpack.c.l.b16 %v4375
    %v4412 = vpack.c.b16 %v4397, %v4396
    %v4413 = vpack.c.b16 %v4399, %v4398
    %v4414 = vpack.c.b16 %v4401, %v4400
    %v4415 = vpack.c.b16 %v4403, %v4402
    %v4416 = vpack.c.b16 %v4405, %v4404
    %v4417 = vpack.c.b16 %v4407, %v4406
    %v4418 = vpack.c.b16 %v4409, %v4408
    %v4419 = vpack.c.b16 %v4411, %v4410
    %4428 = vmatpush.bf16.msra.mxu0 %v4419
    %4429 = vmatpush.bf16.msra.mxu0 %v4418
    %4430 = vmatpush.bf16.msra.mxu0 %v4417
    %4431 = vmatpush.bf16.msra.mxu0 %v4416
    %4432 = vmatpush.bf16.msra.mxu0 %v4415
    %4433 = vmatpush.bf16.msra.mxu0 %v4414
    %4434 = vmatpush.bf16.msra.mxu0 %v4413
    %4435 = vmatpush.bf16.msra.mxu0 %v4412
    %4436 = vmatmul.bf16.gmra.mxu0 %v4344
    %v4437 = vpop.f32.mrf.mxu0
    %v4438 = vadd.f32 %v4378, %v4437
    %v4439 = vpop.f32.mrf.mxu0
    %v4440 = vadd.f32 %v4378, %v4439
    %4441 = vmatmul.bf16.gmra.mxu0 %v4345
    %v4442 = vpop.f32.mrf.mxu0
    %v4443 = vadd.f32 %v4378, %v4442
    %v4444 = vpop.f32.mrf.mxu0
    %v4445 = vadd.f32 %v4378, %v4444
    %4446 = vmatmul.bf16.gmra.mxu0 %v4346
    %v4447 = vpop.f32.mrf.mxu0
    %v4448 = vadd.f32 %v4378, %v4447
    %v4449 = vpop.f32.mrf.mxu0
    %v4450 = vadd.f32 %v4378, %v4449
    %4451 = vmatmul.bf16.gmra.mxu0 %v4347
    %v4452 = vpop.f32.mrf.mxu0
    %v4453 = vadd.f32 %v4378, %v4452
    %v4454 = vpop.f32.mrf.mxu0
    %v4455 = vadd.f32 %v4378, %v4454
    %4456 = vmatmul.bf16.gmra.mxu0 %v4348
    %v4457 = vpop.f32.mrf.mxu0
    %v4458 = vadd.f32 %v4378, %v4457
    %v4459 = vpop.f32.mrf.mxu0
    %v4460 = vadd.f32 %v4378, %v4459
    %4461 = vmatmul.bf16.gmra.mxu0 %v4349
    %v4462 = vpop.f32.mrf.mxu0
    %v4463 = vadd.f32 %v4378, %v4462
    %v4464 = vpop.f32.mrf.mxu0
    %v4465 = vadd.f32 %v4378, %v4464
    %4466 = vmatmul.bf16.gmra.mxu0 %v4350
    %v4467 = vpop.f32.mrf.mxu0
    %v4468 = vadd.f32 %v4378, %v4467
    %v4469 = vpop.f32.mrf.mxu0
    %v4470 = vadd.f32 %v4378, %v4469
    %4471 = vmatmul.bf16.gmra.mxu0 %v4351
    %v4472 = vpop.f32.mrf.mxu0
    %v4473 = vadd.f32 %v4378, %v4472
    %v4474 = vpop.f32.mrf.mxu0
    %v4475 = vadd.f32 %v4378, %v4474
    %4476 = vmatmul.bf16.gmra.mxu0 %v4352
    %v4477 = vpop.f32.mrf.mxu0
    %v4478 = vadd.f32 %v4378, %v4477
    %v4479 = vpop.f32.mrf.mxu0
    %v4480 = vadd.f32 %v4378, %v4479
    %4481 = vmatmul.bf16.gmra.mxu0 %v4353
    %v4482 = vpop.f32.mrf.mxu0
    %v4483 = vadd.f32 %v4378, %v4482
    %v4484 = vpop.f32.mrf.mxu0
    %v4485 = vadd.f32 %v4378, %v4484
    %4486 = vmatmul.bf16.gmra.mxu0 %v4354
    %v4487 = vpop.f32.mrf.mxu0
    %v4488 = vadd.f32 %v4378, %v4487
    %v4489 = vpop.f32.mrf.mxu0
    %v4490 = vadd.f32 %v4378, %v4489
    %4491 = vmatmul.bf16.gmra.mxu0 %v4355
    %v4492 = vpop.f32.mrf.mxu0
    %v4493 = vadd.f32 %v4378, %v4492
    %v4494 = vpop.f32.mrf.mxu0
    %v4495 = vadd.f32 %v4378, %v4494
    %4496 = vmatmul.bf16.gmra.mxu0 %v4356
    %v4497 = vpop.f32.mrf.mxu0
    %v4498 = vadd.f32 %v4378, %v4497
    %v4499 = vpop.f32.mrf.mxu0
    %v4500 = vadd.f32 %v4378, %v4499
    %4501 = vmatmul.bf16.gmra.mxu0 %v4357
    %v4502 = vpop.f32.mrf.mxu0
    %v4503 = vadd.f32 %v4378, %v4502
    %v4504 = vpop.f32.mrf.mxu0
    %v4505 = vadd.f32 %v4378, %v4504
    %4506 = vmatmul.bf16.gmra.mxu0 %v4358
    %v4507 = vpop.f32.mrf.mxu0
    %v4508 = vadd.f32 %v4378, %v4507
    %v4509 = vpop.f32.mrf.mxu0
    %v4510 = vadd.f32 %v4378, %v4509
    %4511 = vmatmul.bf16.gmra.mxu0 %v4359
    %v4512 = vpop.f32.mrf.mxu0
    %v4513 = vadd.f32 %v4378, %v4512
    %v4514 = vpop.f32.mrf.mxu0
    %v4515 = vadd.f32 %v4378, %v4514
    %4516 = vdwg.mxu0
    %vm4517 = vcmp.gt.f32.partialorder %v4438, 0.0
    %vm4518 = vcmp.gt.f32.partialorder %v4440, 0.0
    %vm4519 = vcmp.gt.f32.partialorder %v4443, 0.0
    %vm4520 = vcmp.gt.f32.partialorder %v4445, 0.0
    %vm4521 = vcmp.gt.f32.partialorder %v4448, 0.0
    %vm4522 = vcmp.gt.f32.partialorder %v4450, 0.0
    %vm4523 = vcmp.gt.f32.partialorder %v4453, 0.0
    %vm4524 = vcmp.gt.f32.partialorder %v4455, 0.0
    %vm4525 = vcmp.gt.f32.partialorder %v4458, 0.0
    %vm4526 = vcmp.gt.f32.partialorder %v4460, 0.0
    %vm4527 = vcmp.gt.f32.partialorder %v4463, 0.0
    %vm4528 = vcmp.gt.f32.partialorder %v4465, 0.0
    %vm4529 = vcmp.gt.f32.partialorder %v4468, 0.0
    %vm4530 = vcmp.gt.f32.partialorder %v4470, 0.0
    %vm4531 = vcmp.gt.f32.partialorder %v4473, 0.0
    %vm4532 = vcmp.gt.f32.partialorder %v4475, 0.0
    %vm4533 = vcmp.gt.f32.partialorder %v4478, 0.0
    %vm4534 = vcmp.gt.f32.partialorder %v4480, 0.0
    %vm4535 = vcmp.gt.f32.partialorder %v4483, 0.0
    %vm4536 = vcmp.gt.f32.partialorder %v4485, 0.0
    %vm4537 = vcmp.gt.f32.partialorder %v4488, 0.0
    %vm4538 = vcmp.gt.f32.partialorder %v4490, 0.0
    %vm4539 = vcmp.gt.f32.partialorder %v4493, 0.0
    %vm4540 = vcmp.gt.f32.partialorder %v4495, 0.0
    %vm4541 = vcmp.gt.f32.partialorder %v4498, 0.0
    %vm4542 = vcmp.gt.f32.partialorder %v4500, 0.0
    %vm4543 = vcmp.gt.f32.partialorder %v4503, 0.0
    %vm4544 = vcmp.gt.f32.partialorder %v4505, 0.0
    %vm4545 = vcmp.gt.f32.partialorder %v4508, 0.0
    %vm4546 = vcmp.gt.f32.partialorder %v4510, 0.0
    %vm4547 = vcmp.gt.f32.partialorder %v4513, 0.0
    %vm4548 = vcmp.gt.f32.partialorder %v4515, 0.0
    %v4549 = vmul.f32 %v4438, 0.01
    %v4550 = vmul.f32 %v4440, 0.01
    %v4551 = vmul.f32 %v4443, 0.01
    %v4552 = vmul.f32 %v4445, 0.01
    %v4553 = vmul.f32 %v4448, 0.01
    %v4554 = vmul.f32 %v4450, 0.01
    %v4555 = vmul.f32 %v4453, 0.01
    %v4556 = vmul.f32 %v4455, 0.01
    %v4557 = vmul.f32 %v4458, 0.01
    %v4558 = vmul.f32 %v4460, 0.01
    %v4559 = vmul.f32 %v4463, 0.01
    %v4560 = vmul.f32 %v4465, 0.01
    %v4561 = vmul.f32 %v4468, 0.01
    %v4562 = vmul.f32 %v4470, 0.01
    %v4563 = vmul.f32 %v4473, 0.01
    %v4564 = vmul.f32 %v4475, 0.01
    %v4565 = vmul.f32 %v4478, 0.01
    %v4566 = vmul.f32 %v4480, 0.01
    %v4567 = vmul.f32 %v4483, 0.01
    %v4568 = vmul.f32 %v4485, 0.01
    %v4569 = vmul.f32 %v4488, 0.01
    %v4570 = vmul.f32 %v4490, 0.01
    %v4571 = vmul.f32 %v4493, 0.01
    %v4572 = vmul.f32 %v4495, 0.01
    %v4573 = vmul.f32 %v4498, 0.01
    %v4574 = vmul.f32 %v4500, 0.01
    %v4575 = vmul.f32 %v4503, 0.01
    %v4576 = vmul.f32 %v4505, 0.01
    %v4577 = vmul.f32 %v4508, 0.01
    %v4578 = vmul.f32 %v4510, 0.01
    %v4579 = vmul.f32 %v4513, 0.01
    %v4580 = vmul.f32 %v4515, 0.01
    %v4581 = vsel %vm4517, %v4438, %v4549
    %v4582 = vsel %vm4518, %v4440, %v4550
    %v4583 = vsel %vm4519, %v4443, %v4551
    %v4584 = vsel %vm4520, %v4445, %v4552
    %v4585 = vsel %vm4521, %v4448, %v4553
    %v4586 = vsel %vm4522, %v4450, %v4554
    %v4587 = vsel %vm4523, %v4453, %v4555
    %v4588 = vsel %vm4524, %v4455, %v4556
    %v4589 = vsel %vm4525, %v4458, %v4557
    %v4590 = vsel %vm4526, %v4460, %v4558
    %v4591 = vsel %vm4527, %v4463, %v4559
    %v4592 = vsel %vm4528, %v4465, %v4560
    %v4593 = vsel %vm4529, %v4468, %v4561
    %v4594 = vsel %vm4530, %v4470, %v4562
    %v4595 = vsel %vm4531, %v4473, %v4563
    %v4596 = vsel %vm4532, %v4475, %v4564
    %v4597 = vsel %vm4533, %v4478, %v4565
    %v4598 = vsel %vm4534, %v4480, %v4566
    %v4599 = vsel %vm4535, %v4483, %v4567
    %v4600 = vsel %vm4536, %v4485, %v4568
    %v4601 = vsel %vm4537, %v4488, %v4569
    %v4602 = vsel %vm4538, %v4490, %v4570
    %v4603 = vsel %vm4539, %v4493, %v4571
    %v4604 = vsel %vm4540, %v4495, %v4572
    %v4605 = vsel %vm4541, %v4498, %v4573
    %v4606 = vsel %vm4542, %v4500, %v4574
    %v4607 = vsel %vm4543, %v4503, %v4575
    %v4608 = vsel %vm4544, %v4505, %v4576
    %v4609 = vsel %vm4545, %v4508, %v4577
    %v4610 = vsel %vm4546, %v4510, %v4578
    %v4611 = vsel %vm4547, %v4513, %v4579
    %v4612 = vsel %vm4548, %v4515, %v4580
    %v4613 = vpack.c.bf16 %v4582, %v4581
    %v4614 = vpack.c.bf16 %v4584, %v4583
    %v4615 = vpack.c.bf16 %v4586, %v4585
    %v4616 = vpack.c.bf16 %v4588, %v4587
    %v4617 = vpack.c.bf16 %v4590, %v4589
    %v4618 = vpack.c.bf16 %v4592, %v4591
    %v4619 = vpack.c.bf16 %v4594, %v4593
    %v4620 = vpack.c.bf16 %v4596, %v4595
    %v4621 = vpack.c.bf16 %v4598, %v4597
    %v4622 = vpack.c.bf16 %v4600, %v4599
    %v4623 = vpack.c.bf16 %v4602, %v4601
    %v4624 = vpack.c.bf16 %v4604, %v4603
    %v4625 = vpack.c.bf16 %v4606, %v4605
    %v4626 = vpack.c.bf16 %v4608, %v4607
    %v4627 = vpack.c.bf16 %v4610, %v4609
    %v4628 = vpack.c.bf16 %v4612, %v4611
    %v4629 = vld [vmem:[%s11] sm:$0xf]
    %v4630 = vld [vmem:[%s11 + $0x4] sm:$0xf]
    %v4631 = vld [vmem:[%s11 + $0x8] sm:$0xf]
    %v4632 = vld [vmem:[%s11 + $0xc] sm:$0xf]
    %v4633 = vld [vmem:[%s11 + $0x10] sm:$0xf]
    %v4634 = vld [vmem:[%s11 + $0x14] sm:$0xf]
    %v4635 = vld [vmem:[%s11 + $0x18] sm:$0xf]
    %v4636 = vld [vmem:[%s11 + $0x1c] sm:$0xf]
    %v4637 = vld [vmem:[%s12] sm:$0x1]
    %v4639 = vperm.slane %v4637, 0
    %v4649 = vunpack.c.l.b16 %v4629
    %v4650 = vunpack.c.l.b16 %v4630
    %v4651 = vunpack.c.l.b16 %v4631
    %v4652 = vunpack.c.l.b16 %v4632
    %v4653 = vunpack.c.l.b16 %v4633
    %v4654 = vunpack.c.l.b16 %v4634
    %v4655 = vunpack.c.l.b16 %v4635
    %v4656 = vunpack.c.l.b16 %v4636
    %v4657 = vpack.c.b16 %v4650, %v4649
    %v4658 = vpack.c.b16 %v4652, %v4651
    %v4659 = vpack.c.b16 %v4654, %v4653
    %v4660 = vpack.c.b16 %v4656, %v4655
    %vm4665 = vcmask 523264
    %v4667 = vsel %vm4665, %v4613, 0
    %v4670 = vsel %vm4665, %v4614, 0
    %v4673 = vsel %vm4665, %v4615, 0
    %v4676 = vsel %vm4665, %v4616, 0
    %v4679 = vsel %vm4665, %v4617, 0
    %v4682 = vsel %vm4665, %v4618, 0
    %v4685 = vsel %vm4665, %v4619, 0
    %v4688 = vsel %vm4665, %v4620, 0
    %v4691 = vsel %vm4665, %v4621, 0
    %v4694 = vsel %vm4665, %v4622, 0
    %v4697 = vsel %vm4665, %v4623, 0
    %v4700 = vsel %vm4665, %v4624, 0
    %v4703 = vsel %vm4665, %v4625, 0
    %v4706 = vsel %vm4665, %v4626, 0
    %v4709 = vsel %vm4665, %v4627, 0
    %v4712 = vsel %vm4665, %v4628, 0
    %4714 = vmatpush.bf16.msra.mxu0 0
    %4715 = vmatpush.bf16.msra.mxu0 0
    %4716 = vmatpush.bf16.msra.mxu0 0
    %4717 = vmatpush.bf16.msra.mxu0 0
    %4718 = vmatpush.bf16.msra.mxu0 %v4660
    %4719 = vmatpush.bf16.msra.mxu0 %v4659
    %4720 = vmatpush.bf16.msra.mxu0 %v4658
    %4721 = vmatpush.bf16.msra.mxu0 %v4657
    %4722 = vmatmul.bf16.gmra.mxu0 %v4667
    %v4723 = vpop.f32.mrf.mxu0
    %v4724 = vadd.f32 %v4639, %v4723
    %v4725 = vpop.f32.mrf.mxu0
    %v4726 = vadd.f32 %v4639, %v4725
    %4727 = vmatmul.bf16.gmra.mxu0 %v4670
    %v4728 = vpop.f32.mrf.mxu0
    %v4729 = vadd.f32 %v4639, %v4728
    %v4730 = vpop.f32.mrf.mxu0
    %v4731 = vadd.f32 %v4639, %v4730
    %4732 = vmatmul.bf16.gmra.mxu0 %v4673
    %v4733 = vpop.f32.mrf.mxu0
    %v4734 = vadd.f32 %v4639, %v4733
    %v4735 = vpop.f32.mrf.mxu0
    %v4736 = vadd.f32 %v4639, %v4735
    %4737 = vmatmul.bf16.gmra.mxu0 %v4676
    %v4738 = vpop.f32.mrf.mxu0
    %v4739 = vadd.f32 %v4639, %v4738
    %v4740 = vpop.f32.mrf.mxu0
    %v4741 = vadd.f32 %v4639, %v4740
    %4742 = vmatmul.bf16.gmra.mxu0 %v4679
    %v4743 = vpop.f32.mrf.mxu0
    %v4744 = vadd.f32 %v4639, %v4743
    %v4745 = vpop.f32.mrf.mxu0
    %v4746 = vadd.f32 %v4639, %v4745
    %4747 = vmatmul.bf16.gmra.mxu0 %v4682
    %v4748 = vpop.f32.mrf.mxu0
    %v4749 = vadd.f32 %v4639, %v4748
    %v4750 = vpop.f32.mrf.mxu0
    %v4751 = vadd.f32 %v4639, %v4750
    %4752 = vmatmul.bf16.gmra.mxu0 %v4685
    %v4753 = vpop.f32.mrf.mxu0
    %v4754 = vadd.f32 %v4639, %v4753
    %v4755 = vpop.f32.mrf.mxu0
    %v4756 = vadd.f32 %v4639, %v4755
    %4757 = vmatmul.bf16.gmra.mxu0 %v4688
    %v4758 = vpop.f32.mrf.mxu0
    %v4759 = vadd.f32 %v4639, %v4758
    %v4760 = vpop.f32.mrf.mxu0
    %v4761 = vadd.f32 %v4639, %v4760
    %4762 = vmatmul.bf16.gmra.mxu0 %v4691
    %v4763 = vpop.f32.mrf.mxu0
    %v4764 = vadd.f32 %v4639, %v4763
    %v4765 = vpop.f32.mrf.mxu0
    %v4766 = vadd.f32 %v4639, %v4765
    %4767 = vmatmul.bf16.gmra.mxu0 %v4694
    %v4768 = vpop.f32.mrf.mxu0
    %v4769 = vadd.f32 %v4639, %v4768
    %v4770 = vpop.f32.mrf.mxu0
    %v4771 = vadd.f32 %v4639, %v4770
    %4772 = vmatmul.bf16.gmra.mxu0 %v4697
    %v4773 = vpop.f32.mrf.mxu0
    %v4774 = vadd.f32 %v4639, %v4773
    %v4775 = vpop.f32.mrf.mxu0
    %v4776 = vadd.f32 %v4639, %v4775
    %4777 = vmatmul.bf16.gmra.mxu0 %v4700
    %v4778 = vpop.f32.mrf.mxu0
    %v4779 = vadd.f32 %v4639, %v4778
    %v4780 = vpop.f32.mrf.mxu0
    %v4781 = vadd.f32 %v4639, %v4780
    %4782 = vmatmul.bf16.gmra.mxu0 %v4703
    %v4783 = vpop.f32.mrf.mxu0
    %v4784 = vadd.f32 %v4639, %v4783
    %v4785 = vpop.f32.mrf.mxu0
    %v4786 = vadd.f32 %v4639, %v4785
    %4787 = vmatmul.bf16.gmra.mxu0 %v4706
    %v4788 = vpop.f32.mrf.mxu0
    %v4789 = vadd.f32 %v4639, %v4788
    %v4790 = vpop.f32.mrf.mxu0
    %v4791 = vadd.f32 %v4639, %v4790
    %4792 = vmatmul.bf16.gmra.mxu0 %v4709
    %v4793 = vpop.f32.mrf.mxu0
    %v4794 = vadd.f32 %v4639, %v4793
    %v4795 = vpop.f32.mrf.mxu0
    %v4796 = vadd.f32 %v4639, %v4795
    %4797 = vmatmul.bf16.gmra.mxu0 %v4712
    %v4798 = vpop.f32.mrf.mxu0
    %v4799 = vadd.f32 %v4639, %v4798
    %v4800 = vpop.f32.mrf.mxu0
    %v4801 = vadd.f32 %v4639, %v4800
    %4802 = vdwg.mxu0
    %vm4803 = vcmp.gt.f32.partialorder %v4724, 0.0
    %vm4804 = vcmp.gt.f32.partialorder %v4726, 0.0
    %vm4805 = vcmp.gt.f32.partialorder %v4729, 0.0
    %vm4806 = vcmp.gt.f32.partialorder %v4731, 0.0
    %vm4807 = vcmp.gt.f32.partialorder %v4734, 0.0
    %vm4808 = vcmp.gt.f32.partialorder %v4736, 0.0
    %vm4809 = vcmp.gt.f32.partialorder %v4739, 0.0
    %vm4810 = vcmp.gt.f32.partialorder %v4741, 0.0
    %vm4811 = vcmp.gt.f32.partialorder %v4744, 0.0
    %vm4812 = vcmp.gt.f32.partialorder %v4746, 0.0
    %vm4813 = vcmp.gt.f32.partialorder %v4749, 0.0
    %vm4814 = vcmp.gt.f32.partialorder %v4751, 0.0
    %vm4815 = vcmp.gt.f32.partialorder %v4754, 0.0
    %vm4816 = vcmp.gt.f32.partialorder %v4756, 0.0
    %vm4817 = vcmp.gt.f32.partialorder %v4759, 0.0
    %vm4818 = vcmp.gt.f32.partialorder %v4761, 0.0
    %vm4819 = vcmp.gt.f32.partialorder %v4764, 0.0
    %vm4820 = vcmp.gt.f32.partialorder %v4766, 0.0
    %vm4821 = vcmp.gt.f32.partialorder %v4769, 0.0
    %vm4822 = vcmp.gt.f32.partialorder %v4771, 0.0
    %vm4823 = vcmp.gt.f32.partialorder %v4774, 0.0
    %vm4824 = vcmp.gt.f32.partialorder %v4776, 0.0
    %vm4825 = vcmp.gt.f32.partialorder %v4779, 0.0
    %vm4826 = vcmp.gt.f32.partialorder %v4781, 0.0
    %vm4827 = vcmp.gt.f32.partialorder %v4784, 0.0
    %vm4828 = vcmp.gt.f32.partialorder %v4786, 0.0
    %vm4829 = vcmp.gt.f32.partialorder %v4789, 0.0
    %vm4830 = vcmp.gt.f32.partialorder %v4791, 0.0
    %vm4831 = vcmp.gt.f32.partialorder %v4794, 0.0
    %vm4832 = vcmp.gt.f32.partialorder %v4796, 0.0
    %vm4833 = vcmp.gt.f32.partialorder %v4799, 0.0
    %vm4834 = vcmp.gt.f32.partialorder %v4801, 0.0
    %v4835 = vmul.f32 %v4724, 0.01
    %v4836 = vmul.f32 %v4726, 0.01
    %v4837 = vmul.f32 %v4729, 0.01
    %v4838 = vmul.f32 %v4731, 0.01
    %v4839 = vmul.f32 %v4734, 0.01
    %v4840 = vmul.f32 %v4736, 0.01
    %v4841 = vmul.f32 %v4739, 0.01
    %v4842 = vmul.f32 %v4741, 0.01
    %v4843 = vmul.f32 %v4744, 0.01
    %v4844 = vmul.f32 %v4746, 0.01
    %v4845 = vmul.f32 %v4749, 0.01
    %v4846 = vmul.f32 %v4751, 0.01
    %v4847 = vmul.f32 %v4754, 0.01
    %v4848 = vmul.f32 %v4756, 0.01
    %v4849 = vmul.f32 %v4759, 0.01
    %v4850 = vmul.f32 %v4761, 0.01
    %v4851 = vmul.f32 %v4764, 0.01
    %v4852 = vmul.f32 %v4766, 0.01
    %v4853 = vmul.f32 %v4769, 0.01
    %v4854 = vmul.f32 %v4771, 0.01
    %v4855 = vmul.f32 %v4774, 0.01
    %v4856 = vmul.f32 %v4776, 0.01
    %v4857 = vmul.f32 %v4779, 0.01
    %v4858 = vmul.f32 %v4781, 0.01
    %v4859 = vmul.f32 %v4784, 0.01
    %v4860 = vmul.f32 %v4786, 0.01
    %v4861 = vmul.f32 %v4789, 0.01
    %v4862 = vmul.f32 %v4791, 0.01
    %v4863 = vmul.f32 %v4794, 0.01
    %v4864 = vmul.f32 %v4796, 0.01
    %v4865 = vmul.f32 %v4799, 0.01
    %v4866 = vmul.f32 %v4801, 0.01
    %v4867 = vsel %vm4803, %v4724, %v4835
    %v4868 = vsel %vm4804, %v4726, %v4836
    %v4869 = vsel %vm4805, %v4729, %v4837
    %v4870 = vsel %vm4806, %v4731, %v4838
    %v4871 = vsel %vm4807, %v4734, %v4839
    %v4872 = vsel %vm4808, %v4736, %v4840
    %v4873 = vsel %vm4809, %v4739, %v4841
    %v4874 = vsel %vm4810, %v4741, %v4842
    %v4875 = vsel %vm4811, %v4744, %v4843
    %v4876 = vsel %vm4812, %v4746, %v4844
    %v4877 = vsel %vm4813, %v4749, %v4845
    %v4878 = vsel %vm4814, %v4751, %v4846
    %v4879 = vsel %vm4815, %v4754, %v4847
    %v4880 = vsel %vm4816, %v4756, %v4848
    %v4881 = vsel %vm4817, %v4759, %v4849
    %v4882 = vsel %vm4818, %v4761, %v4850
    %v4883 = vsel %vm4819, %v4764, %v4851
    %v4884 = vsel %vm4820, %v4766, %v4852
    %v4885 = vsel %vm4821, %v4769, %v4853
    %v4886 = vsel %vm4822, %v4771, %v4854
    %v4887 = vsel %vm4823, %v4774, %v4855
    %v4888 = vsel %vm4824, %v4776, %v4856
    %v4889 = vsel %vm4825, %v4779, %v4857
    %v4890 = vsel %vm4826, %v4781, %v4858
    %v4891 = vsel %vm4827, %v4784, %v4859
    %v4892 = vsel %vm4828, %v4786, %v4860
    %v4893 = vsel %vm4829, %v4789, %v4861
    %v4894 = vsel %vm4830, %v4791, %v4862
    %v4895 = vsel %vm4831, %v4794, %v4863
    %v4896 = vsel %vm4832, %v4796, %v4864
    %v4897 = vsel %vm4833, %v4799, %v4865
    %v4898 = vsel %vm4834, %v4801, %v4866
    %v4899 = vpack.c.bf16 %v4868, %v4867
    %v4900 = vpack.c.bf16 %v4870, %v4869
    %v4901 = vpack.c.bf16 %v4872, %v4871
    %v4902 = vpack.c.bf16 %v4874, %v4873
    %v4903 = vpack.c.bf16 %v4876, %v4875
    %v4904 = vpack.c.bf16 %v4878, %v4877
    %v4905 = vpack.c.bf16 %v4880, %v4879
    %v4906 = vpack.c.bf16 %v4882, %v4881
    %v4907 = vpack.c.bf16 %v4884, %v4883
    %v4908 = vpack.c.bf16 %v4886, %v4885
    %v4909 = vpack.c.bf16 %v4888, %v4887
    %v4910 = vpack.c.bf16 %v4890, %v4889
    %v4911 = vpack.c.bf16 %v4892, %v4891
    %v4912 = vpack.c.bf16 %v4894, %v4893
    %v4913 = vpack.c.bf16 %v4896, %v4895
    %v4914 = vpack.c.bf16 %v4898, %v4897
    %v4915 = vld [vmem:[%s13] sm:$0xf]
    %v4916 = vld [vmem:[%s13 + $0x4] sm:$0xf]
    %v4917 = vld [vmem:[%s13 + $0x8] sm:$0xf]
    %v4918 = vld [vmem:[%s13 + $0xc] sm:$0xf]
    %v4919 = vld [vmem:[%s14] sm:$0x1]
    %v4921 = vperm.slane %v4919, 0
    %v4927 = vunpack.c.l.b16 %v4915
    %v4928 = vunpack.c.l.b16 %v4916
    %v4929 = vunpack.c.l.b16 %v4917
    %v4930 = vunpack.c.l.b16 %v4918
    %v4931 = vpack.c.b16 %v4928, %v4927
    %v4932 = vpack.c.b16 %v4930, %v4929
    %vm4935 = vcmask 261120
    %v4937 = vsel %vm4935, %v4899, 0
    %v4940 = vsel %vm4935, %v4900, 0
    %v4943 = vsel %vm4935, %v4901, 0
    %v4946 = vsel %vm4935, %v4902, 0
    %v4949 = vsel %vm4935, %v4903, 0
    %v4952 = vsel %vm4935, %v4904, 0
    %v4955 = vsel %vm4935, %v4905, 0
    %v4958 = vsel %vm4935, %v4906, 0
    %v4961 = vsel %vm4935, %v4907, 0
    %v4964 = vsel %vm4935, %v4908, 0
    %v4967 = vsel %vm4935, %v4909, 0
    %v4970 = vsel %vm4935, %v4910, 0
    %v4973 = vsel %vm4935, %v4911, 0
    %v4976 = vsel %vm4935, %v4912, 0
    %v4979 = vsel %vm4935, %v4913, 0
    %v4982 = vsel %vm4935, %v4914, 0
    %4984 = vmatpush.bf16.msra.mxu0 0
    %4985 = vmatpush.bf16.msra.mxu0 0
    %4986 = vmatpush.bf16.msra.mxu0 0
    %4987 = vmatpush.bf16.msra.mxu0 0
    %4988 = vmatpush.bf16.msra.mxu0 0
    %4989 = vmatpush.bf16.msra.mxu0 0
    %4990 = vmatpush.bf16.msra.mxu0 %v4932
    %4991 = vmatpush.bf16.msra.mxu0 %v4931
    %4992 = vmatmul.bf16.gmra.mxu0 %v4937
    %v4993 = vpop.f32.mrf.mxu0
    %v4994 = vadd.f32 %v4921, %v4993
    %v4995 = vpop.f32.mrf.mxu0
    %v4996 = vadd.f32 %v4921, %v4995
    %4997 = vmatmul.bf16.gmra.mxu0 %v4940
    %v4998 = vpop.f32.mrf.mxu0
    %v4999 = vadd.f32 %v4921, %v4998
    %v5000 = vpop.f32.mrf.mxu0
    %v5001 = vadd.f32 %v4921, %v5000
    %5002 = vmatmul.bf16.gmra.mxu0 %v4943
    %v5003 = vpop.f32.mrf.mxu0
    %v5004 = vadd.f32 %v4921, %v5003
    %v5005 = vpop.f32.mrf.mxu0
    %v5006 = vadd.f32 %v4921, %v5005
    %5007 = vmatmul.bf16.gmra.mxu0 %v4946
    %v5008 = vpop.f32.mrf.mxu0
    %v5009 = vadd.f32 %v4921, %v5008
    %v5010 = vpop.f32.mrf.mxu0
    %v5011 = vadd.f32 %v4921, %v5010
    %5012 = vmatmul.bf16.gmra.mxu0 %v4949
    %v5013 = vpop.f32.mrf.mxu0
    %v5014 = vadd.f32 %v4921, %v5013
    %v5015 = vpop.f32.mrf.mxu0
    %v5016 = vadd.f32 %v4921, %v5015
    %5017 = vmatmul.bf16.gmra.mxu0 %v4952
    %v5018 = vpop.f32.mrf.mxu0
    %v5019 = vadd.f32 %v4921, %v5018
    %v5020 = vpop.f32.mrf.mxu0
    %v5021 = vadd.f32 %v4921, %v5020
    %5022 = vmatmul.bf16.gmra.mxu0 %v4955
    %v5023 = vpop.f32.mrf.mxu0
    %v5024 = vadd.f32 %v4921, %v5023
    %v5025 = vpop.f32.mrf.mxu0
    %v5026 = vadd.f32 %v4921, %v5025
    %5027 = vmatmul.bf16.gmra.mxu0 %v4958
    %v5028 = vpop.f32.mrf.mxu0
    %v5029 = vadd.f32 %v4921, %v5028
    %v5030 = vpop.f32.mrf.mxu0
    %v5031 = vadd.f32 %v4921, %v5030
    %5032 = vmatmul.bf16.gmra.mxu0 %v4961
    %v5033 = vpop.f32.mrf.mxu0
    %v5034 = vadd.f32 %v4921, %v5033
    %v5035 = vpop.f32.mrf.mxu0
    %v5036 = vadd.f32 %v4921, %v5035
    %5037 = vmatmul.bf16.gmra.mxu0 %v4964
    %v5038 = vpop.f32.mrf.mxu0
    %v5039 = vadd.f32 %v4921, %v5038
    %v5040 = vpop.f32.mrf.mxu0
    %v5041 = vadd.f32 %v4921, %v5040
    %5042 = vmatmul.bf16.gmra.mxu0 %v4967
    %v5043 = vpop.f32.mrf.mxu0
    %v5044 = vadd.f32 %v4921, %v5043
    %v5045 = vpop.f32.mrf.mxu0
    %v5046 = vadd.f32 %v4921, %v5045
    %5047 = vmatmul.bf16.gmra.mxu0 %v4970
    %v5048 = vpop.f32.mrf.mxu0
    %v5049 = vadd.f32 %v4921, %v5048
    %v5050 = vpop.f32.mrf.mxu0
    %v5051 = vadd.f32 %v4921, %v5050
    %5052 = vmatmul.bf16.gmra.mxu0 %v4973
    %v5053 = vpop.f32.mrf.mxu0
    %v5054 = vadd.f32 %v4921, %v5053
    %v5055 = vpop.f32.mrf.mxu0
    %v5056 = vadd.f32 %v4921, %v5055
    %5057 = vmatmul.bf16.gmra.mxu0 %v4976
    %v5058 = vpop.f32.mrf.mxu0
    %v5059 = vadd.f32 %v4921, %v5058
    %v5060 = vpop.f32.mrf.mxu0
    %v5061 = vadd.f32 %v4921, %v5060
    %5062 = vmatmul.bf16.gmra.mxu0 %v4979
    %v5063 = vpop.f32.mrf.mxu0
    %v5064 = vadd.f32 %v4921, %v5063
    %v5065 = vpop.f32.mrf.mxu0
    %v5066 = vadd.f32 %v4921, %v5065
    %5067 = vmatmul.bf16.gmra.mxu0 %v4982
    %v5068 = vpop.f32.mrf.mxu0
    %v5069 = vadd.f32 %v4921, %v5068
    %v5070 = vpop.f32.mrf.mxu0
    %v5071 = vadd.f32 %v4921, %v5070
    %5072 = vdwg.mxu0
    %v5073 = vpack.c.bf16 %v4994, %v4994
    %v5074 = vpack.c.bf16 %v4996, %v4996
    %v5075 = vpack.c.bf16 %v4999, %v4999
    %v5076 = vpack.c.bf16 %v5001, %v5001
    %v5077 = vpack.c.bf16 %v5004, %v5004
    %v5078 = vpack.c.bf16 %v5006, %v5006
    %v5079 = vpack.c.bf16 %v5009, %v5009
    %v5080 = vpack.c.bf16 %v5011, %v5011
    %v5081 = vpack.c.bf16 %v5014, %v5014
    %v5082 = vpack.c.bf16 %v5016, %v5016
    %v5083 = vpack.c.bf16 %v5019, %v5019
    %v5084 = vpack.c.bf16 %v5021, %v5021
    %v5085 = vpack.c.bf16 %v5024, %v5024
    %v5086 = vpack.c.bf16 %v5026, %v5026
    %v5087 = vpack.c.bf16 %v5029, %v5029
    %v5088 = vpack.c.bf16 %v5031, %v5031
    %v5089 = vpack.c.bf16 %v5034, %v5034
    %v5090 = vpack.c.bf16 %v5036, %v5036
    %v5091 = vpack.c.bf16 %v5039, %v5039
    %v5092 = vpack.c.bf16 %v5041, %v5041
    %v5093 = vpack.c.bf16 %v5044, %v5044
    %v5094 = vpack.c.bf16 %v5046, %v5046
    %v5095 = vpack.c.bf16 %v5049, %v5049
    %v5096 = vpack.c.bf16 %v5051, %v5051
    %v5097 = vpack.c.bf16 %v5054, %v5054
    %v5098 = vpack.c.bf16 %v5056, %v5056
    %v5099 = vpack.c.bf16 %v5059, %v5059
    %v5100 = vpack.c.bf16 %v5061, %v5061
    %v5101 = vpack.c.bf16 %v5064, %v5064
    %v5102 = vpack.c.bf16 %v5066, %v5066
    %v5103 = vpack.c.bf16 %v5069, %v5069
    %v5104 = vpack.c.bf16 %v5071, %v5071
    %v5105 = vlaneseq
    %v5106 = vshrl.u32 %v5105, 7
    %v5107 = vadd.s32 %v5106, 8
    %v5108 = vadd.s32 %v5106, 16
    %v5109 = vadd.s32 %v5106, 24
    %v5110 = vadd.s32 %v5106, 32
    %v5111 = vadd.s32 %v5106, 40
    %v5112 = vadd.s32 %v5106, 48
    %v5113 = vadd.s32 %v5106, 56
    %v5114 = vadd.s32 %v5106, 64
    %v5115 = vadd.s32 %v5106, 72
    %v5116 = vadd.s32 %v5106, 80
    %v5117 = vadd.s32 %v5106, 88
    %v5118 = vadd.s32 %v5106, 96
    %v5119 = vadd.s32 %v5106, 104
    %v5120 = vadd.s32 %v5106, 112
    %v5121 = vadd.s32 %v5106, 120
    %v5122 = vlaneseq
    %v5123 = vand.u32 %v5122, 127
    %vm5124 = vcmp.eq.s32.totalorder %v5106, %v5123
    %vm5125 = vcmp.eq.s32.totalorder %v5107, %v5123
    %vm5126 = vcmp.eq.s32.totalorder %v5108, %v5123
    %vm5127 = vcmp.eq.s32.totalorder %v5109, %v5123
    %vm5128 = vcmp.eq.s32.totalorder %v5110, %v5123
    %vm5129 = vcmp.eq.s32.totalorder %v5111, %v5123
    %vm5130 = vcmp.eq.s32.totalorder %v5112, %v5123
    %vm5131 = vcmp.eq.s32.totalorder %v5113, %v5123
    %vm5132 = vcmp.eq.s32.totalorder %v5114, %v5123
    %vm5133 = vcmp.eq.s32.totalorder %v5115, %v5123
    %vm5134 = vcmp.eq.s32.totalorder %v5116, %v5123
    %vm5135 = vcmp.eq.s32.totalorder %v5117, %v5123
    %vm5136 = vcmp.eq.s32.totalorder %v5118, %v5123
    %vm5137 = vcmp.eq.s32.totalorder %v5119, %v5123
    %vm5138 = vcmp.eq.s32.totalorder %v5120, %v5123
    %vm5139 = vcmp.eq.s32.totalorder %v5121, %v5123
    %v5156 = vunpack.c.l.b16 %v5073
    %v5157 = vunpack.c.l.b16 %v5074
    %v5158 = vunpack.c.l.b16 %v5075
    %v5159 = vunpack.c.l.b16 %v5076
    %v5160 = vunpack.c.l.b16 %v5077
    %v5161 = vunpack.c.l.b16 %v5078
    %v5162 = vunpack.c.l.b16 %v5079
    %v5163 = vunpack.c.l.b16 %v5080
    %v5164 = vunpack.c.l.b16 %v5081
    %v5165 = vunpack.c.l.b16 %v5082
    %v5166 = vunpack.c.l.b16 %v5083
    %v5167 = vunpack.c.l.b16 %v5084
    %v5168 = vunpack.c.l.b16 %v5085
    %v5169 = vunpack.c.l.b16 %v5086
    %v5170 = vunpack.c.l.b16 %v5087
    %v5171 = vunpack.c.l.b16 %v5088
    %v5172 = vpack.c.b16 %v5157, %v5156
    %v5173 = vpack.c.b16 %v5159, %v5158
    %v5174 = vpack.c.b16 %v5161, %v5160
    %v5175 = vpack.c.b16 %v5163, %v5162
    %v5176 = vpack.c.b16 %v5165, %v5164
    %v5177 = vpack.c.b16 %v5167, %v5166
    %v5178 = vpack.c.b16 %v5169, %v5168
    %v5179 = vpack.c.b16 %v5171, %v5170
    %5188 = vmatpush.bf16.xpose.msra.mxu0 %v5179
    %5189 = vmatpush.bf16.xpose.msra.mxu0 %v5178
    %5190 = vmatpush.bf16.xpose.msra.mxu0 %v5177
    %5191 = vmatpush.bf16.xpose.msra.mxu0 %v5176
    %5192 = vmatpush.bf16.xpose.msra.mxu0 %v5175
    %5193 = vmatpush.bf16.xpose.msra.mxu0 %v5174
    %5194 = vmatpush.bf16.xpose.msra.mxu0 %v5173
    %5195 = vmatpush.bf16.xpose.msra.mxu0 %v5172
    %5196 = vmatmul.bf16.gmra.mxu0 %v5172
    %v5197 = vpop.f32.mrf.mxu0
    %v5198 = vadd.f32 0.0, %v5197
    %v5199 = vpop.f32.mrf.mxu0
    %v5200 = vadd.f32 0.0, %v5199
    %5201 = vmatmul.bf16.gmra.mxu0 %v5173
    %v5202 = vpop.f32.mrf.mxu0
    %v5203 = vadd.f32 0.0, %v5202
    %v5204 = vpop.f32.mrf.mxu0
    %v5205 = vadd.f32 0.0, %v5204
    %5206 = vmatmul.bf16.gmra.mxu0 %v5174
    %v5207 = vpop.f32.mrf.mxu0
    %v5208 = vadd.f32 0.0, %v5207
    %v5209 = vpop.f32.mrf.mxu0
    %v5210 = vadd.f32 0.0, %v5209
    %5211 = vmatmul.bf16.gmra.mxu0 %v5175
    %v5212 = vpop.f32.mrf.mxu0
    %v5213 = vadd.f32 0.0, %v5212
    %v5214 = vpop.f32.mrf.mxu0
    %v5215 = vadd.f32 0.0, %v5214
    %5216 = vmatmul.bf16.gmra.mxu0 %v5176
    %v5217 = vpop.f32.mrf.mxu0
    %v5218 = vadd.f32 0.0, %v5217
    %v5219 = vpop.f32.mrf.mxu0
    %v5220 = vadd.f32 0.0, %v5219
    %5221 = vmatmul.bf16.gmra.mxu0 %v5177
    %v5222 = vpop.f32.mrf.mxu0
    %v5223 = vadd.f32 0.0, %v5222
    %v5224 = vpop.f32.mrf.mxu0
    %v5225 = vadd.f32 0.0, %v5224
    %5226 = vmatmul.bf16.gmra.mxu0 %v5178
    %v5227 = vpop.f32.mrf.mxu0
    %v5228 = vadd.f32 0.0, %v5227
    %v5229 = vpop.f32.mrf.mxu0
    %v5230 = vadd.f32 0.0, %v5229
    %5231 = vmatmul.bf16.gmra.mxu0 %v5179
    %v5232 = vpop.f32.mrf.mxu0
    %v5233 = vadd.f32 0.0, %v5232
    %v5234 = vpop.f32.mrf.mxu0
    %v5235 = vadd.f32 0.0, %v5234
    %5236 = vdwg.mxu0
    %v5237 = vsel %vm5124, %v5198, 0.0
    %v5238 = vsel %vm5125, %v5200, 0.0
    %v5239 = vsel %vm5126, %v5203, 0.0
    %v5240 = vsel %vm5127, %v5205, 0.0
    %v5241 = vsel %vm5128, %v5208, 0.0
    %v5242 = vsel %vm5129, %v5210, 0.0
    %v5243 = vsel %vm5130, %v5213, 0.0
    %v5244 = vsel %vm5131, %v5215, 0.0
    %v5245 = vsel %vm5132, %v5218, 0.0
    %v5246 = vsel %vm5133, %v5220, 0.0
    %v5247 = vsel %vm5134, %v5223, 0.0
    %v5248 = vsel %vm5135, %v5225, 0.0
    %v5249 = vsel %vm5136, %v5228, 0.0
    %v5250 = vsel %vm5137, %v5230, 0.0
    %v5251 = vsel %vm5138, %v5233, 0.0
    %v5252 = vsel %vm5139, %v5235, 0.0
    %5253 = vadd.xlane.f32.xlu0 %v5237
    %v5254 = vpop.xlane.xlu0 %5253
    %5255 = vadd.xlane.f32.xlu0 %v5238
    %v5256 = vpop.xlane.xlu0 %5255
    %5257 = vadd.xlane.f32.xlu0 %v5239
    %v5258 = vpop.xlane.xlu0 %5257
    %5259 = vadd.xlane.f32.xlu0 %v5240
    %v5260 = vpop.xlane.xlu0 %5259
    %5261 = vadd.xlane.f32.xlu0 %v5241
    %v5262 = vpop.xlane.xlu0 %5261
    %5263 = vadd.xlane.f32.xlu0 %v5242
    %v5264 = vpop.xlane.xlu0 %5263
    %5265 = vadd.xlane.f32.xlu0 %v5243
    %v5266 = vpop.xlane.xlu0 %5265
    %5267 = vadd.xlane.f32.xlu0 %v5244
    %v5268 = vpop.xlane.xlu0 %5267
    %5269 = vadd.xlane.f32.xlu0 %v5245
    %v5270 = vpop.xlane.xlu0 %5269
    %5271 = vadd.xlane.f32.xlu0 %v5246
    %v5272 = vpop.xlane.xlu0 %5271
    %5273 = vadd.xlane.f32.xlu0 %v5247
    %v5274 = vpop.xlane.xlu0 %5273
    %5275 = vadd.xlane.f32.xlu0 %v5248
    %v5276 = vpop.xlane.xlu0 %5275
    %5277 = vadd.xlane.f32.xlu0 %v5249
    %v5278 = vpop.xlane.xlu0 %5277
    %5279 = vadd.xlane.f32.xlu0 %v5250
    %v5280 = vpop.xlane.xlu0 %5279
    %5281 = vadd.xlane.f32.xlu0 %v5251
    %v5282 = vpop.xlane.xlu0 %5281
    %5283 = vadd.xlane.f32.xlu0 %v5252
    %v5284 = vpop.xlane.xlu0 %5283
    %v5285 = vadd.f32 %v5237, %v5238
    %v5286 = vadd.f32 %v5285, %v5239
    %v5287 = vadd.f32 %v5286, %v5240
    %v5288 = vadd.f32 %v5287, %v5241
    %v5289 = vadd.f32 %v5288, %v5242
    %v5290 = vadd.f32 %v5289, %v5243
    %v5291 = vadd.f32 %v5290, %v5244
    %v5292 = vadd.f32 %v5291, %v5245
    %v5293 = vadd.f32 %v5292, %v5246
    %v5294 = vadd.f32 %v5293, %v5247
    %v5295 = vadd.f32 %v5294, %v5248
    %v5296 = vadd.f32 %v5295, %v5249
    %v5297 = vadd.f32 %v5296, %v5250
    %v5298 = vadd.f32 %v5297, %v5251
    %v5299 = vadd.f32 %v5298, %v5252
    %v5300 = vrot.slane %v5299, 4
    %v5301 = vadd.f32 %v5299, %v5300
    %v5302 = vrot.slane %v5301, 2
    %v5303 = vadd.f32 %v5301, %v5302
    %v5304 = vrot.slane %v5303, 1
    %v5305 = vadd.f32 %v5303, %v5304
    %v5306 = vadd.f32 %v5254, %v5305
    %v5307 = vadd.f32 %v5256, %v5305
    %v5308 = vadd.f32 %v5258, %v5305
    %v5309 = vadd.f32 %v5260, %v5305
    %v5310 = vadd.f32 %v5262, %v5305
    %v5311 = vadd.f32 %v5264, %v5305
    %v5312 = vadd.f32 %v5266, %v5305
    %v5313 = vadd.f32 %v5268, %v5305
    %v5314 = vadd.f32 %v5270, %v5305
    %v5315 = vadd.f32 %v5272, %v5305
    %v5316 = vadd.f32 %v5274, %v5305
    %v5317 = vadd.f32 %v5276, %v5305
    %v5318 = vadd.f32 %v5278, %v5305
    %v5319 = vadd.f32 %v5280, %v5305
    %v5320 = vadd.f32 %v5282, %v5305
    %v5321 = vadd.f32 %v5284, %v5305
    %v5322 = vmul.f32 %v5198, 2.0
    %v5323 = vmul.f32 %v5200, 2.0
    %v5324 = vmul.f32 %v5203, 2.0
    %v5325 = vmul.f32 %v5205, 2.0
    %v5326 = vmul.f32 %v5208, 2.0
    %v5327 = vmul.f32 %v5210, 2.0
    %v5328 = vmul.f32 %v5213, 2.0
    %v5329 = vmul.f32 %v5215, 2.0
    %v5330 = vmul.f32 %v5218, 2.0
    %v5331 = vmul.f32 %v5220, 2.0
    %v5332 = vmul.f32 %v5223, 2.0
    %v5333 = vmul.f32 %v5225, 2.0
    %v5334 = vmul.f32 %v5228, 2.0
    %v5335 = vmul.f32 %v5230, 2.0
    %v5336 = vmul.f32 %v5233, 2.0
    %v5337 = vmul.f32 %v5235, 2.0
    %v5338 = vsub.f32 %v5306, %v5322
    %v5339 = vsub.f32 %v5307, %v5323
    %v5340 = vsub.f32 %v5308, %v5324
    %v5341 = vsub.f32 %v5309, %v5325
    %v5342 = vsub.f32 %v5310, %v5326
    %v5343 = vsub.f32 %v5311, %v5327
    %v5344 = vsub.f32 %v5312, %v5328
    %v5345 = vsub.f32 %v5313, %v5329
    %v5346 = vsub.f32 %v5314, %v5330
    %v5347 = vsub.f32 %v5315, %v5331
    %v5348 = vsub.f32 %v5316, %v5332
    %v5349 = vsub.f32 %v5317, %v5333
    %v5350 = vsub.f32 %v5318, %v5334
    %v5351 = vsub.f32 %v5319, %v5335
    %v5352 = vsub.f32 %v5320, %v5336
    %v5353 = vsub.f32 %v5321, %v5337
    %v5354 = vmax.f32 %v5338, 0.0
    %v5355 = vmax.f32 %v5339, 0.0
    %v5356 = vmax.f32 %v5340, 0.0
    %v5357 = vmax.f32 %v5341, 0.0
    %v5358 = vmax.f32 %v5342, 0.0
    %v5359 = vmax.f32 %v5343, 0.0
    %v5360 = vmax.f32 %v5344, 0.0
    %v5361 = vmax.f32 %v5345, 0.0
    %v5362 = vmax.f32 %v5346, 0.0
    %v5363 = vmax.f32 %v5347, 0.0
    %v5364 = vmax.f32 %v5348, 0.0
    %v5365 = vmax.f32 %v5349, 0.0
    %v5366 = vmax.f32 %v5350, 0.0
    %v5367 = vmax.f32 %v5351, 0.0
    %v5368 = vmax.f32 %v5352, 0.0
    %v5369 = vmax.f32 %v5353, 0.0
    %v5370 = vrsqrt.pop %v5354
    %v5371 = vmul.f32 %v5370, %v5354
    %v5372 = vmul.f32 %v5371, %v5370
    %v5373 = vmul.f32 0.5, %v5372
    %v5374 = vsub.f32 1.5, %v5373
    %v5375 = vmul.f32 %v5370, %v5374
    %v5376 = vmul.f32 %v5354, %v5375
    %vm5377 = vcmp.eq.f32.partialorder %v5354, inf
    %v5378 = vsel %vm5377, %v5354, %v5376
    %vm5379 = vcmp.eq.f32.partialorder %v5354, 0.0
    %v5380 = vand.u32 %v5354, 2147483648
    %v5381 = vsel %vm5379, %v5380, %v5378
    %v5382 = vrsqrt.pop %v5355
    %v5383 = vmul.f32 %v5382, %v5355
    %v5384 = vmul.f32 %v5383, %v5382
    %v5385 = vmul.f32 0.5, %v5384
    %v5386 = vsub.f32 1.5, %v5385
    %v5387 = vmul.f32 %v5382, %v5386
    %v5388 = vmul.f32 %v5355, %v5387
    %vm5389 = vcmp.eq.f32.partialorder %v5355, inf
    %v5390 = vsel %vm5389, %v5355, %v5388
    %vm5391 = vcmp.eq.f32.partialorder %v5355, 0.0
    %v5392 = vand.u32 %v5355, 2147483648
    %v5393 = vsel %vm5391, %v5392, %v5390
    %v5394 = vrsqrt.pop %v5356
    %v5395 = vmul.f32 %v5394, %v5356
    %v5396 = vmul.f32 %v5395, %v5394
    %v5397 = vmul.f32 0.5, %v5396
    %v5398 = vsub.f32 1.5, %v5397
    %v5399 = vmul.f32 %v5394, %v5398
    %v5400 = vmul.f32 %v5356, %v5399
    %vm5401 = vcmp.eq.f32.partialorder %v5356, inf
    %v5402 = vsel %vm5401, %v5356, %v5400
    %vm5403 = vcmp.eq.f32.partialorder %v5356, 0.0
    %v5404 = vand.u32 %v5356, 2147483648
    %v5405 = vsel %vm5403, %v5404, %v5402
    %v5406 = vrsqrt.pop %v5357
    %v5407 = vmul.f32 %v5406, %v5357
    %v5408 = vmul.f32 %v5407, %v5406
    %v5409 = vmul.f32 0.5, %v5408
    %v5410 = vsub.f32 1.5, %v5409
    %v5411 = vmul.f32 %v5406, %v5410
    %v5412 = vmul.f32 %v5357, %v5411
    %vm5413 = vcmp.eq.f32.partialorder %v5357, inf
    %v5414 = vsel %vm5413, %v5357, %v5412
    %vm5415 = vcmp.eq.f32.partialorder %v5357, 0.0
    %v5416 = vand.u32 %v5357, 2147483648
    %v5417 = vsel %vm5415, %v5416, %v5414
    %v5418 = vrsqrt.pop %v5358
    %v5419 = vmul.f32 %v5418, %v5358
    %v5420 = vmul.f32 %v5419, %v5418
    %v5421 = vmul.f32 0.5, %v5420
    %v5422 = vsub.f32 1.5, %v5421
    %v5423 = vmul.f32 %v5418, %v5422
    %v5424 = vmul.f32 %v5358, %v5423
    %vm5425 = vcmp.eq.f32.partialorder %v5358, inf
    %v5426 = vsel %vm5425, %v5358, %v5424
    %vm5427 = vcmp.eq.f32.partialorder %v5358, 0.0
    %v5428 = vand.u32 %v5358, 2147483648
    %v5429 = vsel %vm5427, %v5428, %v5426
    %v5430 = vrsqrt.pop %v5359
    %v5431 = vmul.f32 %v5430, %v5359
    %v5432 = vmul.f32 %v5431, %v5430
    %v5433 = vmul.f32 0.5, %v5432
    %v5434 = vsub.f32 1.5, %v5433
    %v5435 = vmul.f32 %v5430, %v5434
    %v5436 = vmul.f32 %v5359, %v5435
    %vm5437 = vcmp.eq.f32.partialorder %v5359, inf
    %v5438 = vsel %vm5437, %v5359, %v5436
    %vm5439 = vcmp.eq.f32.partialorder %v5359, 0.0
    %v5440 = vand.u32 %v5359, 2147483648
    %v5441 = vsel %vm5439, %v5440, %v5438
    %v5442 = vrsqrt.pop %v5360
    %v5443 = vmul.f32 %v5442, %v5360
    %v5444 = vmul.f32 %v5443, %v5442
    %v5445 = vmul.f32 0.5, %v5444
    %v5446 = vsub.f32 1.5, %v5445
    %v5447 = vmul.f32 %v5442, %v5446
    %v5448 = vmul.f32 %v5360, %v5447
    %vm5449 = vcmp.eq.f32.partialorder %v5360, inf
    %v5450 = vsel %vm5449, %v5360, %v5448
    %vm5451 = vcmp.eq.f32.partialorder %v5360, 0.0
    %v5452 = vand.u32 %v5360, 2147483648
    %v5453 = vsel %vm5451, %v5452, %v5450
    %v5454 = vrsqrt.pop %v5361
    %v5455 = vmul.f32 %v5454, %v5361
    %v5456 = vmul.f32 %v5455, %v5454
    %v5457 = vmul.f32 0.5, %v5456
    %v5458 = vsub.f32 1.5, %v5457
    %v5459 = vmul.f32 %v5454, %v5458
    %v5460 = vmul.f32 %v5361, %v5459
    %vm5461 = vcmp.eq.f32.partialorder %v5361, inf
    %v5462 = vsel %vm5461, %v5361, %v5460
    %vm5463 = vcmp.eq.f32.partialorder %v5361, 0.0
    %v5464 = vand.u32 %v5361, 2147483648
    %v5465 = vsel %vm5463, %v5464, %v5462
    %v5466 = vrsqrt.pop %v5362
    %v5467 = vmul.f32 %v5466, %v5362
    %v5468 = vmul.f32 %v5467, %v5466
    %v5469 = vmul.f32 0.5, %v5468
    %v5470 = vsub.f32 1.5, %v5469
    %v5471 = vmul.f32 %v5466, %v5470
    %v5472 = vmul.f32 %v5362, %v5471
    %vm5473 = vcmp.eq.f32.partialorder %v5362, inf
    %v5474 = vsel %vm5473, %v5362, %v5472
    %vm5475 = vcmp.eq.f32.partialorder %v5362, 0.0
    %v5476 = vand.u32 %v5362, 2147483648
    %v5477 = vsel %vm5475, %v5476, %v5474
    %v5478 = vrsqrt.pop %v5363
    %v5479 = vmul.f32 %v5478, %v5363
    %v5480 = vmul.f32 %v5479, %v5478
    %v5481 = vmul.f32 0.5, %v5480
    %v5482 = vsub.f32 1.5, %v5481
    %v5483 = vmul.f32 %v5478, %v5482
    %v5484 = vmul.f32 %v5363, %v5483
    %vm5485 = vcmp.eq.f32.partialorder %v5363, inf
    %v5486 = vsel %vm5485, %v5363, %v5484
    %vm5487 = vcmp.eq.f32.partialorder %v5363, 0.0
    %v5488 = vand.u32 %v5363, 2147483648
    %v5489 = vsel %vm5487, %v5488, %v5486
    %v5490 = vrsqrt.pop %v5364
    %v5491 = vmul.f32 %v5490, %v5364
    %v5492 = vmul.f32 %v5491, %v5490
    %v5493 = vmul.f32 0.5, %v5492
    %v5494 = vsub.f32 1.5, %v5493
    %v5495 = vmul.f32 %v5490, %v5494
    %v5496 = vmul.f32 %v5364, %v5495
    %vm5497 = vcmp.eq.f32.partialorder %v5364, inf
    %v5498 = vsel %vm5497, %v5364, %v5496
    %vm5499 = vcmp.eq.f32.partialorder %v5364, 0.0
    %v5500 = vand.u32 %v5364, 2147483648
    %v5501 = vsel %vm5499, %v5500, %v5498
    %v5502 = vrsqrt.pop %v5365
    %v5503 = vmul.f32 %v5502, %v5365
    %v5504 = vmul.f32 %v5503, %v5502
    %v5505 = vmul.f32 0.5, %v5504
    %v5506 = vsub.f32 1.5, %v5505
    %v5507 = vmul.f32 %v5502, %v5506
    %v5508 = vmul.f32 %v5365, %v5507
    %vm5509 = vcmp.eq.f32.partialorder %v5365, inf
    %v5510 = vsel %vm5509, %v5365, %v5508
    %vm5511 = vcmp.eq.f32.partialorder %v5365, 0.0
    %v5512 = vand.u32 %v5365, 2147483648
    %v5513 = vsel %vm5511, %v5512, %v5510
    %v5514 = vrsqrt.pop %v5366
    %v5515 = vmul.f32 %v5514, %v5366
    %v5516 = vmul.f32 %v5515, %v5514
    %v5517 = vmul.f32 0.5, %v5516
    %v5518 = vsub.f32 1.5, %v5517
    %v5519 = vmul.f32 %v5514, %v5518
    %v5520 = vmul.f32 %v5366, %v5519
    %vm5521 = vcmp.eq.f32.partialorder %v5366, inf
    %v5522 = vsel %vm5521, %v5366, %v5520
    %vm5523 = vcmp.eq.f32.partialorder %v5366, 0.0
    %v5524 = vand.u32 %v5366, 2147483648
    %v5525 = vsel %vm5523, %v5524, %v5522
    %v5526 = vrsqrt.pop %v5367
    %v5527 = vmul.f32 %v5526, %v5367
    %v5528 = vmul.f32 %v5527, %v5526
    %v5529 = vmul.f32 0.5, %v5528
    %v5530 = vsub.f32 1.5, %v5529
    %v5531 = vmul.f32 %v5526, %v5530
    %v5532 = vmul.f32 %v5367, %v5531
    %vm5533 = vcmp.eq.f32.partialorder %v5367, inf
    %v5534 = vsel %vm5533, %v5367, %v5532
    %vm5535 = vcmp.eq.f32.partialorder %v5367, 0.0
    %v5536 = vand.u32 %v5367, 2147483648
    %v5537 = vsel %vm5535, %v5536, %v5534
    %v5538 = vrsqrt.pop %v5368
    %v5539 = vmul.f32 %v5538, %v5368
    %v5540 = vmul.f32 %v5539, %v5538
    %v5541 = vmul.f32 0.5, %v5540
    %v5542 = vsub.f32 1.5, %v5541
    %v5543 = vmul.f32 %v5538, %v5542
    %v5544 = vmul.f32 %v5368, %v5543
    %vm5545 = vcmp.eq.f32.partialorder %v5368, inf
    %v5546 = vsel %vm5545, %v5368, %v5544
    %vm5547 = vcmp.eq.f32.partialorder %v5368, 0.0
    %v5548 = vand.u32 %v5368, 2147483648
    %v5549 = vsel %vm5547, %v5548, %v5546
    %v5550 = vrsqrt.pop %v5369
    %v5551 = vmul.f32 %v5550, %v5369
    %v5552 = vmul.f32 %v5551, %v5550
    %v5553 = vmul.f32 0.5, %v5552
    %v5554 = vsub.f32 1.5, %v5553
    %v5555 = vmul.f32 %v5550, %v5554
    %v5556 = vmul.f32 %v5369, %v5555
    %vm5557 = vcmp.eq.f32.partialorder %v5369, inf
    %v5558 = vsel %vm5557, %v5369, %v5556
    %vm5559 = vcmp.eq.f32.partialorder %v5369, 0.0
    %v5560 = vand.u32 %v5369, 2147483648
    %v5561 = vsel %vm5559, %v5560, %v5558
    %5562 = vst [vmem:[#allocation7] sm:$0xff] %v5381
    %5563 = vst [vmem:[#allocation7 + $0x8] sm:$0xff] %v5393
    %5564 = vst [vmem:[#allocation7 + $0x10] sm:$0xff] %v5405
    %5565 = vst [vmem:[#allocation7 + $0x18] sm:$0xff] %v5417
    %5566 = vst [vmem:[#allocation7 + $0x20] sm:$0xff] %v5429
    %5567 = vst [vmem:[#allocation7 + $0x28] sm:$0xff] %v5441
    %5568 = vst [vmem:[#allocation7 + $0x30] sm:$0xff] %v5453
    %5569 = vst [vmem:[#allocation7 + $0x38] sm:$0xff] %v5465
    %5570 = vst [vmem:[#allocation7 + $0x40] sm:$0xff] %v5477
    %5571 = vst [vmem:[#allocation7 + $0x48] sm:$0xff] %v5489
    %5572 = vst [vmem:[#allocation7 + $0x50] sm:$0xff] %v5501
    %5573 = vst [vmem:[#allocation7 + $0x58] sm:$0xff] %v5513
    %5574 = vst [vmem:[#allocation7 + $0x60] sm:$0xff] %v5525
    %5575 = vst [vmem:[#allocation7 + $0x68] sm:$0xff] %v5537
    %5576 = vst [vmem:[#allocation7 + $0x70] sm:$0xff] %v5549
    %5577 = vst [vmem:[#allocation7 + $0x78] sm:$0xff] %v5561
    %v5594 = vunpack.c.l.b16 %v5089
    %v5595 = vunpack.c.l.b16 %v5090
    %v5596 = vunpack.c.l.b16 %v5091
    %v5597 = vunpack.c.l.b16 %v5092
    %v5598 = vunpack.c.l.b16 %v5093
    %v5599 = vunpack.c.l.b16 %v5094
    %v5600 = vunpack.c.l.b16 %v5095
    %v5601 = vunpack.c.l.b16 %v5096
    %v5602 = vunpack.c.l.b16 %v5097
    %v5603 = vunpack.c.l.b16 %v5098
    %v5604 = vunpack.c.l.b16 %v5099
    %v5605 = vunpack.c.l.b16 %v5100
    %v5606 = vunpack.c.l.b16 %v5101
    %v5607 = vunpack.c.l.b16 %v5102
    %v5608 = vunpack.c.l.b16 %v5103
    %v5609 = vunpack.c.l.b16 %v5104
    %v5610 = vpack.c.b16 %v5595, %v5594
    %v5611 = vpack.c.b16 %v5597, %v5596
    %v5612 = vpack.c.b16 %v5599, %v5598
    %v5613 = vpack.c.b16 %v5601, %v5600
    %v5614 = vpack.c.b16 %v5603, %v5602
    %v5615 = vpack.c.b16 %v5605, %v5604
    %v5616 = vpack.c.b16 %v5607, %v5606
    %v5617 = vpack.c.b16 %v5609, %v5608
    %5626 = vmatpush.bf16.xpose.msra.mxu0 %v5617
    %5627 = vmatpush.bf16.xpose.msra.mxu0 %v5616
    %5628 = vmatpush.bf16.xpose.msra.mxu0 %v5615
    %5629 = vmatpush.bf16.xpose.msra.mxu0 %v5614
    %5630 = vmatpush.bf16.xpose.msra.mxu0 %v5613
    %5631 = vmatpush.bf16.xpose.msra.mxu0 %v5612
    %5632 = vmatpush.bf16.xpose.msra.mxu0 %v5611
    %5633 = vmatpush.bf16.xpose.msra.mxu0 %v5610
    %5634 = vmatmul.bf16.gmra.mxu0 %v5610
    %v5635 = vpop.f32.mrf.mxu0
    %v5636 = vadd.f32 0.0, %v5635
    %v5637 = vpop.f32.mrf.mxu0
    %v5638 = vadd.f32 0.0, %v5637
    %5639 = vmatmul.bf16.gmra.mxu0 %v5611
    %v5640 = vpop.f32.mrf.mxu0
    %v5641 = vadd.f32 0.0, %v5640
    %v5642 = vpop.f32.mrf.mxu0
    %v5643 = vadd.f32 0.0, %v5642
    %5644 = vmatmul.bf16.gmra.mxu0 %v5612
    %v5645 = vpop.f32.mrf.mxu0
    %v5646 = vadd.f32 0.0, %v5645
    %v5647 = vpop.f32.mrf.mxu0
    %v5648 = vadd.f32 0.0, %v5647
    %5649 = vmatmul.bf16.gmra.mxu0 %v5613
    %v5650 = vpop.f32.mrf.mxu0
    %v5651 = vadd.f32 0.0, %v5650
    %v5652 = vpop.f32.mrf.mxu0
    %v5653 = vadd.f32 0.0, %v5652
    %5654 = vmatmul.bf16.gmra.mxu0 %v5614
    %v5655 = vpop.f32.mrf.mxu0
    %v5656 = vadd.f32 0.0, %v5655
    %v5657 = vpop.f32.mrf.mxu0
    %v5658 = vadd.f32 0.0, %v5657
    %5659 = vmatmul.bf16.gmra.mxu0 %v5615
    %v5660 = vpop.f32.mrf.mxu0
    %v5661 = vadd.f32 0.0, %v5660
    %v5662 = vpop.f32.mrf.mxu0
    %v5663 = vadd.f32 0.0, %v5662
    %5664 = vmatmul.bf16.gmra.mxu0 %v5616
    %v5665 = vpop.f32.mrf.mxu0
    %v5666 = vadd.f32 0.0, %v5665
    %v5667 = vpop.f32.mrf.mxu0
    %v5668 = vadd.f32 0.0, %v5667
    %5669 = vmatmul.bf16.gmra.mxu0 %v5617
    %v5670 = vpop.f32.mrf.mxu0
    %v5671 = vadd.f32 0.0, %v5670
    %v5672 = vpop.f32.mrf.mxu0
    %v5673 = vadd.f32 0.0, %v5672
    %5674 = vdwg.mxu0
    %v5675 = vsel %vm5124, %v5636, 0.0
    %v5676 = vsel %vm5125, %v5638, 0.0
    %v5677 = vsel %vm5126, %v5641, 0.0
    %v5678 = vsel %vm5127, %v5643, 0.0
    %v5679 = vsel %vm5128, %v5646, 0.0
    %v5680 = vsel %vm5129, %v5648, 0.0
    %v5681 = vsel %vm5130, %v5651, 0.0
    %v5682 = vsel %vm5131, %v5653, 0.0
    %v5683 = vsel %vm5132, %v5656, 0.0
    %v5684 = vsel %vm5133, %v5658, 0.0
    %v5685 = vsel %vm5134, %v5661, 0.0
    %v5686 = vsel %vm5135, %v5663, 0.0
    %v5687 = vsel %vm5136, %v5666, 0.0
    %v5688 = vsel %vm5137, %v5668, 0.0
    %v5689 = vsel %vm5138, %v5671, 0.0
    %v5690 = vsel %vm5139, %v5673, 0.0
    %5691 = vadd.xlane.f32.xlu0 %v5675
    %v5692 = vpop.xlane.xlu0 %5691
    %5693 = vadd.xlane.f32.xlu0 %v5676
    %v5694 = vpop.xlane.xlu0 %5693
    %5695 = vadd.xlane.f32.xlu0 %v5677
    %v5696 = vpop.xlane.xlu0 %5695
    %5697 = vadd.xlane.f32.xlu0 %v5678
    %v5698 = vpop.xlane.xlu0 %5697
    %5699 = vadd.xlane.f32.xlu0 %v5679
    %v5700 = vpop.xlane.xlu0 %5699
    %5701 = vadd.xlane.f32.xlu0 %v5680
    %v5702 = vpop.xlane.xlu0 %5701
    %5703 = vadd.xlane.f32.xlu0 %v5681
    %v5704 = vpop.xlane.xlu0 %5703
    %5705 = vadd.xlane.f32.xlu0 %v5682
    %v5706 = vpop.xlane.xlu0 %5705
    %5707 = vadd.xlane.f32.xlu0 %v5683
    %v5708 = vpop.xlane.xlu0 %5707
    %5709 = vadd.xlane.f32.xlu0 %v5684
    %v5710 = vpop.xlane.xlu0 %5709
    %5711 = vadd.xlane.f32.xlu0 %v5685
    %v5712 = vpop.xlane.xlu0 %5711
    %5713 = vadd.xlane.f32.xlu0 %v5686
    %v5714 = vpop.xlane.xlu0 %5713
    %5715 = vadd.xlane.f32.xlu0 %v5687
    %v5716 = vpop.xlane.xlu0 %5715
    %5717 = vadd.xlane.f32.xlu0 %v5688
    %v5718 = vpop.xlane.xlu0 %5717
    %5719 = vadd.xlane.f32.xlu0 %v5689
    %v5720 = vpop.xlane.xlu0 %5719
    %5721 = vadd.xlane.f32.xlu0 %v5690
    %v5722 = vpop.xlane.xlu0 %5721
    %v5723 = vadd.f32 %v5675, %v5676
    %v5724 = vadd.f32 %v5723, %v5677
    %v5725 = vadd.f32 %v5724, %v5678
    %v5726 = vadd.f32 %v5725, %v5679
    %v5727 = vadd.f32 %v5726, %v5680
    %v5728 = vadd.f32 %v5727, %v5681
    %v5729 = vadd.f32 %v5728, %v5682
    %v5730 = vadd.f32 %v5729, %v5683
    %v5731 = vadd.f32 %v5730, %v5684
    %v5732 = vadd.f32 %v5731, %v5685
    %v5733 = vadd.f32 %v5732, %v5686
    %v5734 = vadd.f32 %v5733, %v5687
    %v5735 = vadd.f32 %v5734, %v5688
    %v5736 = vadd.f32 %v5735, %v5689
    %v5737 = vadd.f32 %v5736, %v5690
    %v5738 = vrot.slane %v5737, 4
    %v5739 = vadd.f32 %v5737, %v5738
    %v5740 = vrot.slane %v5739, 2
    %v5741 = vadd.f32 %v5739, %v5740
    %v5742 = vrot.slane %v5741, 1
    %v5743 = vadd.f32 %v5741, %v5742
    %v5744 = vadd.f32 %v5692, %v5743
    %v5745 = vadd.f32 %v5694, %v5743
    %v5746 = vadd.f32 %v5696, %v5743
    %v5747 = vadd.f32 %v5698, %v5743
    %v5748 = vadd.f32 %v5700, %v5743
    %v5749 = vadd.f32 %v5702, %v5743
    %v5750 = vadd.f32 %v5704, %v5743
    %v5751 = vadd.f32 %v5706, %v5743
    %v5752 = vadd.f32 %v5708, %v5743
    %v5753 = vadd.f32 %v5710, %v5743
    %v5754 = vadd.f32 %v5712, %v5743
    %v5755 = vadd.f32 %v5714, %v5743
    %v5756 = vadd.f32 %v5716, %v5743
    %v5757 = vadd.f32 %v5718, %v5743
    %v5758 = vadd.f32 %v5720, %v5743
    %v5759 = vadd.f32 %v5722, %v5743
    %v5760 = vmul.f32 %v5636, 2.0
    %v5761 = vmul.f32 %v5638, 2.0
    %v5762 = vmul.f32 %v5641, 2.0
    %v5763 = vmul.f32 %v5643, 2.0
    %v5764 = vmul.f32 %v5646, 2.0
    %v5765 = vmul.f32 %v5648, 2.0
    %v5766 = vmul.f32 %v5651, 2.0
    %v5767 = vmul.f32 %v5653, 2.0
    %v5768 = vmul.f32 %v5656, 2.0
    %v5769 = vmul.f32 %v5658, 2.0
    %v5770 = vmul.f32 %v5661, 2.0
    %v5771 = vmul.f32 %v5663, 2.0
    %v5772 = vmul.f32 %v5666, 2.0
    %v5773 = vmul.f32 %v5668, 2.0
    %v5774 = vmul.f32 %v5671, 2.0
    %v5775 = vmul.f32 %v5673, 2.0
    %v5776 = vsub.f32 %v5744, %v5760
    %v5777 = vsub.f32 %v5745, %v5761
    %v5778 = vsub.f32 %v5746, %v5762
    %v5779 = vsub.f32 %v5747, %v5763
    %v5780 = vsub.f32 %v5748, %v5764
    %v5781 = vsub.f32 %v5749, %v5765
    %v5782 = vsub.f32 %v5750, %v5766
    %v5783 = vsub.f32 %v5751, %v5767
    %v5784 = vsub.f32 %v5752, %v5768
    %v5785 = vsub.f32 %v5753, %v5769
    %v5786 = vsub.f32 %v5754, %v5770
    %v5787 = vsub.f32 %v5755, %v5771
    %v5788 = vsub.f32 %v5756, %v5772
    %v5789 = vsub.f32 %v5757, %v5773
    %v5790 = vsub.f32 %v5758, %v5774
    %v5791 = vsub.f32 %v5759, %v5775
    %v5792 = vmax.f32 %v5776, 0.0
    %v5793 = vmax.f32 %v5777, 0.0
    %v5794 = vmax.f32 %v5778, 0.0
    %v5795 = vmax.f32 %v5779, 0.0
    %v5796 = vmax.f32 %v5780, 0.0
    %v5797 = vmax.f32 %v5781, 0.0
    %v5798 = vmax.f32 %v5782, 0.0
    %v5799 = vmax.f32 %v5783, 0.0
    %v5800 = vmax.f32 %v5784, 0.0
    %v5801 = vmax.f32 %v5785, 0.0
    %v5802 = vmax.f32 %v5786, 0.0
    %v5803 = vmax.f32 %v5787, 0.0
    %v5804 = vmax.f32 %v5788, 0.0
    %v5805 = vmax.f32 %v5789, 0.0
    %v5806 = vmax.f32 %v5790, 0.0
    %v5807 = vmax.f32 %v5791, 0.0
    %v5808 = vrsqrt.pop %v5792
    %v5809 = vmul.f32 %v5808, %v5792
    %v5810 = vmul.f32 %v5809, %v5808
    %v5811 = vmul.f32 0.5, %v5810
    %v5812 = vsub.f32 1.5, %v5811
    %v5813 = vmul.f32 %v5808, %v5812
    %v5814 = vmul.f32 %v5792, %v5813
    %vm5815 = vcmp.eq.f32.partialorder %v5792, inf
    %v5816 = vsel %vm5815, %v5792, %v5814
    %vm5817 = vcmp.eq.f32.partialorder %v5792, 0.0
    %v5818 = vand.u32 %v5792, 2147483648
    %v5819 = vsel %vm5817, %v5818, %v5816
    %v5820 = vrsqrt.pop %v5793
    %v5821 = vmul.f32 %v5820, %v5793
    %v5822 = vmul.f32 %v5821, %v5820
    %v5823 = vmul.f32 0.5, %v5822
    %v5824 = vsub.f32 1.5, %v5823
    %v5825 = vmul.f32 %v5820, %v5824
    %v5826 = vmul.f32 %v5793, %v5825
    %vm5827 = vcmp.eq.f32.partialorder %v5793, inf
    %v5828 = vsel %vm5827, %v5793, %v5826
    %vm5829 = vcmp.eq.f32.partialorder %v5793, 0.0
    %v5830 = vand.u32 %v5793, 2147483648
    %v5831 = vsel %vm5829, %v5830, %v5828
    %v5832 = vrsqrt.pop %v5794
    %v5833 = vmul.f32 %v5832, %v5794
    %v5834 = vmul.f32 %v5833, %v5832
    %v5835 = vmul.f32 0.5, %v5834
    %v5836 = vsub.f32 1.5, %v5835
    %v5837 = vmul.f32 %v5832, %v5836
    %v5838 = vmul.f32 %v5794, %v5837
    %vm5839 = vcmp.eq.f32.partialorder %v5794, inf
    %v5840 = vsel %vm5839, %v5794, %v5838
    %vm5841 = vcmp.eq.f32.partialorder %v5794, 0.0
    %v5842 = vand.u32 %v5794, 2147483648
    %v5843 = vsel %vm5841, %v5842, %v5840
    %v5844 = vrsqrt.pop %v5795
    %v5845 = vmul.f32 %v5844, %v5795
    %v5846 = vmul.f32 %v5845, %v5844
    %v5847 = vmul.f32 0.5, %v5846
    %v5848 = vsub.f32 1.5, %v5847
    %v5849 = vmul.f32 %v5844, %v5848
    %v5850 = vmul.f32 %v5795, %v5849
    %vm5851 = vcmp.eq.f32.partialorder %v5795, inf
    %v5852 = vsel %vm5851, %v5795, %v5850
    %vm5853 = vcmp.eq.f32.partialorder %v5795, 0.0
    %v5854 = vand.u32 %v5795, 2147483648
    %v5855 = vsel %vm5853, %v5854, %v5852
    %v5856 = vrsqrt.pop %v5796
    %v5857 = vmul.f32 %v5856, %v5796
    %v5858 = vmul.f32 %v5857, %v5856
    %v5859 = vmul.f32 0.5, %v5858
    %v5860 = vsub.f32 1.5, %v5859
    %v5861 = vmul.f32 %v5856, %v5860
    %v5862 = vmul.f32 %v5796, %v5861
    %vm5863 = vcmp.eq.f32.partialorder %v5796, inf
    %v5864 = vsel %vm5863, %v5796, %v5862
    %vm5865 = vcmp.eq.f32.partialorder %v5796, 0.0
    %v5866 = vand.u32 %v5796, 2147483648
    %v5867 = vsel %vm5865, %v5866, %v5864
    %v5868 = vrsqrt.pop %v5797
    %v5869 = vmul.f32 %v5868, %v5797
    %v5870 = vmul.f32 %v5869, %v5868
    %v5871 = vmul.f32 0.5, %v5870
    %v5872 = vsub.f32 1.5, %v5871
    %v5873 = vmul.f32 %v5868, %v5872
    %v5874 = vmul.f32 %v5797, %v5873
    %vm5875 = vcmp.eq.f32.partialorder %v5797, inf
    %v5876 = vsel %vm5875, %v5797, %v5874
    %vm5877 = vcmp.eq.f32.partialorder %v5797, 0.0
    %v5878 = vand.u32 %v5797, 2147483648
    %v5879 = vsel %vm5877, %v5878, %v5876
    %v5880 = vrsqrt.pop %v5798
    %v5881 = vmul.f32 %v5880, %v5798
    %v5882 = vmul.f32 %v5881, %v5880
    %v5883 = vmul.f32 0.5, %v5882
    %v5884 = vsub.f32 1.5, %v5883
    %v5885 = vmul.f32 %v5880, %v5884
    %v5886 = vmul.f32 %v5798, %v5885
    %vm5887 = vcmp.eq.f32.partialorder %v5798, inf
    %v5888 = vsel %vm5887, %v5798, %v5886
    %vm5889 = vcmp.eq.f32.partialorder %v5798, 0.0
    %v5890 = vand.u32 %v5798, 2147483648
    %v5891 = vsel %vm5889, %v5890, %v5888
    %v5892 = vrsqrt.pop %v5799
    %v5893 = vmul.f32 %v5892, %v5799
    %v5894 = vmul.f32 %v5893, %v5892
    %v5895 = vmul.f32 0.5, %v5894
    %v5896 = vsub.f32 1.5, %v5895
    %v5897 = vmul.f32 %v5892, %v5896
    %v5898 = vmul.f32 %v5799, %v5897
    %vm5899 = vcmp.eq.f32.partialorder %v5799, inf
    %v5900 = vsel %vm5899, %v5799, %v5898
    %vm5901 = vcmp.eq.f32.partialorder %v5799, 0.0
    %v5902 = vand.u32 %v5799, 2147483648
    %v5903 = vsel %vm5901, %v5902, %v5900
    %v5904 = vrsqrt.pop %v5800
    %v5905 = vmul.f32 %v5904, %v5800
    %v5906 = vmul.f32 %v5905, %v5904
    %v5907 = vmul.f32 0.5, %v5906
    %v5908 = vsub.f32 1.5, %v5907
    %v5909 = vmul.f32 %v5904, %v5908
    %v5910 = vmul.f32 %v5800, %v5909
    %vm5911 = vcmp.eq.f32.partialorder %v5800, inf
    %v5912 = vsel %vm5911, %v5800, %v5910
    %vm5913 = vcmp.eq.f32.partialorder %v5800, 0.0
    %v5914 = vand.u32 %v5800, 2147483648
    %v5915 = vsel %vm5913, %v5914, %v5912
    %v5916 = vrsqrt.pop %v5801
    %v5917 = vmul.f32 %v5916, %v5801
    %v5918 = vmul.f32 %v5917, %v5916
    %v5919 = vmul.f32 0.5, %v5918
    %v5920 = vsub.f32 1.5, %v5919
    %v5921 = vmul.f32 %v5916, %v5920
    %v5922 = vmul.f32 %v5801, %v5921
    %vm5923 = vcmp.eq.f32.partialorder %v5801, inf
    %v5924 = vsel %vm5923, %v5801, %v5922
    %vm5925 = vcmp.eq.f32.partialorder %v5801, 0.0
    %v5926 = vand.u32 %v5801, 2147483648
    %v5927 = vsel %vm5925, %v5926, %v5924
    %v5928 = vrsqrt.pop %v5802
    %v5929 = vmul.f32 %v5928, %v5802
    %v5930 = vmul.f32 %v5929, %v5928
    %v5931 = vmul.f32 0.5, %v5930
    %v5932 = vsub.f32 1.5, %v5931
    %v5933 = vmul.f32 %v5928, %v5932
    %v5934 = vmul.f32 %v5802, %v5933
    %vm5935 = vcmp.eq.f32.partialorder %v5802, inf
    %v5936 = vsel %vm5935, %v5802, %v5934
    %vm5937 = vcmp.eq.f32.partialorder %v5802, 0.0
    %v5938 = vand.u32 %v5802, 2147483648
    %v5939 = vsel %vm5937, %v5938, %v5936
    %v5940 = vrsqrt.pop %v5803
    %v5941 = vmul.f32 %v5940, %v5803
    %v5942 = vmul.f32 %v5941, %v5940
    %v5943 = vmul.f32 0.5, %v5942
    %v5944 = vsub.f32 1.5, %v5943
    %v5945 = vmul.f32 %v5940, %v5944
    %v5946 = vmul.f32 %v5803, %v5945
    %vm5947 = vcmp.eq.f32.partialorder %v5803, inf
    %v5948 = vsel %vm5947, %v5803, %v5946
    %vm5949 = vcmp.eq.f32.partialorder %v5803, 0.0
    %v5950 = vand.u32 %v5803, 2147483648
    %v5951 = vsel %vm5949, %v5950, %v5948
    %v5952 = vrsqrt.pop %v5804
    %v5953 = vmul.f32 %v5952, %v5804
    %v5954 = vmul.f32 %v5953, %v5952
    %v5955 = vmul.f32 0.5, %v5954
    %v5956 = vsub.f32 1.5, %v5955
    %v5957 = vmul.f32 %v5952, %v5956
    %v5958 = vmul.f32 %v5804, %v5957
    %vm5959 = vcmp.eq.f32.partialorder %v5804, inf
    %v5960 = vsel %vm5959, %v5804, %v5958
    %vm5961 = vcmp.eq.f32.partialorder %v5804, 0.0
    %v5962 = vand.u32 %v5804, 2147483648
    %v5963 = vsel %vm5961, %v5962, %v5960
    %v5964 = vrsqrt.pop %v5805
    %v5965 = vmul.f32 %v5964, %v5805
    %v5966 = vmul.f32 %v5965, %v5964
    %v5967 = vmul.f32 0.5, %v5966
    %v5968 = vsub.f32 1.5, %v5967
    %v5969 = vmul.f32 %v5964, %v5968
    %v5970 = vmul.f32 %v5805, %v5969
    %vm5971 = vcmp.eq.f32.partialorder %v5805, inf
    %v5972 = vsel %vm5971, %v5805, %v5970
    %vm5973 = vcmp.eq.f32.partialorder %v5805, 0.0
    %v5974 = vand.u32 %v5805, 2147483648
    %v5975 = vsel %vm5973, %v5974, %v5972
    %v5976 = vrsqrt.pop %v5806
    %v5977 = vmul.f32 %v5976, %v5806
    %v5978 = vmul.f32 %v5977, %v5976
    %v5979 = vmul.f32 0.5, %v5978
    %v5980 = vsub.f32 1.5, %v5979
    %v5981 = vmul.f32 %v5976, %v5980
    %v5982 = vmul.f32 %v5806, %v5981
    %vm5983 = vcmp.eq.f32.partialorder %v5806, inf
    %v5984 = vsel %vm5983, %v5806, %v5982
    %vm5985 = vcmp.eq.f32.partialorder %v5806, 0.0
    %v5986 = vand.u32 %v5806, 2147483648
    %v5987 = vsel %vm5985, %v5986, %v5984
    %v5988 = vrsqrt.pop %v5807
    %v5989 = vmul.f32 %v5988, %v5807
    %v5990 = vmul.f32 %v5989, %v5988
    %v5991 = vmul.f32 0.5, %v5990
    %v5992 = vsub.f32 1.5, %v5991
    %v5993 = vmul.f32 %v5988, %v5992
    %v5994 = vmul.f32 %v5807, %v5993
    %vm5995 = vcmp.eq.f32.partialorder %v5807, inf
    %v5996 = vsel %vm5995, %v5807, %v5994
    %vm5997 = vcmp.eq.f32.partialorder %v5807, 0.0
    %v5998 = vand.u32 %v5807, 2147483648
    %v5999 = vsel %vm5997, %v5998, %v5996
    %s6000 = scalar_lea.vmem [#allocation7], 128
    %6001 = vst [vmem:[%s6000] sm:$0xff] %v5819
    %6002 = vst [vmem:[%s6000 + $0x8] sm:$0xff] %v5831
    %6003 = vst [vmem:[%s6000 + $0x10] sm:$0xff] %v5843
    %6004 = vst [vmem:[%s6000 + $0x18] sm:$0xff] %v5855
    %6005 = vst [vmem:[%s6000 + $0x20] sm:$0xff] %v5867
    %6006 = vst [vmem:[%s6000 + $0x28] sm:$0xff] %v5879
    %6007 = vst [vmem:[%s6000 + $0x30] sm:$0xff] %v5891
    %6008 = vst [vmem:[%s6000 + $0x38] sm:$0xff] %v5903
    %6009 = vst [vmem:[%s6000 + $0x40] sm:$0xff] %v5915
    %6010 = vst [vmem:[%s6000 + $0x48] sm:$0xff] %v5927
    %6011 = vst [vmem:[%s6000 + $0x50] sm:$0xff] %v5939
    %6012 = vst [vmem:[%s6000 + $0x58] sm:$0xff] %v5951
    %6013 = vst [vmem:[%s6000 + $0x60] sm:$0xff] %v5963
    %6014 = vst [vmem:[%s6000 + $0x68] sm:$0xff] %v5975
    %6015 = vst [vmem:[%s6000 + $0x70] sm:$0xff] %v5987
    %6016 = vst [vmem:[%s6000 + $0x78] sm:$0xff] %v5999
    // Predicated region
    $region70: #{tpu_custom_call.1} parent=1 // pred_check
      _
    $region71: #{tpu_custom_call.1} parent=1 // pred_check_branch
      %6018 = sbr.rel (0) target = $region73
    $region72: #{tpu_custom_call.1} parent=1 // pred_region
      %6020 = vsyncadd [#allocation4], 0
      %s6021 = sshll.u32 [#allocation7], 4
      %s6022 = int_to_ptr.vmem [resolvable:$true] %s6021
      %s6023 = sshll.u32 %s15, 4
      %s6024 = int_to_ptr.hbm [resolvable:$true] %s6023
      %6029 = dma.vmem_to_hbm [thread:$0]  %s6022, 4096, %s6024, [#allocation4], 128, 128, 8
    $region73: #{tpu_custom_call.1} parent=1 // pred_fallthru
      _
    // Predicated region
    $region74: #{tpu_custom_call.1} parent=1 // pred_check
      _
    $region75: #{tpu_custom_call.1} parent=1 // pred_check_branch
      %6031 = sbr.rel (0) target = $region77
    $region76: #{tpu_custom_call.1} parent=1 // pred_region
      %6033 = dma.done [#allocation4], 4096
    $region77: #{tpu_custom_call.1} parent=1 // pred_fallthru
      _
    %6034 = vsyncpa [#allocation3], 1
    %6035 = vsyncpa [#allocation6], 1
    %6036 = vsyncpa [#allocation4], 1

</llo_original>
